<compile_context>
chip_gen: v7x
topology: tpu7x:2x2x1
jax: 0.10.0
libtpu: 0.0.40
codegen_flags: <defaults>
</compile_context>

<pallas_src>
import functools

import numpy as np
import jax
import jax.numpy as jnp
from jax.experimental import pallas as pl
from jax.experimental.pallas import tpu as pltpu


CAPTURED_CHANNELS = [32, 64, 128, 256]   # scaled-down [128, 256, 512, 1024]
_EPS = 1e-6
_STEM_K = 4
_STEM_KPAD = 128                          # 4*4*3 = 48, zero-padded to 128 lanes


# ---------------------------------------------------------------------------
# Fused encoder kernel: one grid step == one image, everything stays in VMEM.
# ---------------------------------------------------------------------------
def _layernorm(x, gamma, beta, eps):
    """Per-pixel LayerNorm over the channel (lane) dim, fp32 math (=LayerNorm2d)."""
    mean = jnp.mean(x, axis=-1, keepdims=True)
    xc = x - mean
    var = jnp.mean(xc * xc, axis=-1, keepdims=True)
    return xc * jax.lax.rsqrt(var + eps) * gamma + beta


def _down_layer(x, sel_ref, g_ref, be_ref, w_ref, b_ref, eps):
    """LayerNorm2d + Conv2d(C, Cout, k=2, s=2) on a VMEM-resident (P, C) map.

    The 2x2 patch regrouping is expressed as four constant 0/1 row-selection
    matmuls (sel_ref[j] @ x gathers rows (2ho+kh, 2wo+kw)), so the only shape
    ops in the kernel are static ref slices - everything runs on the MXU/VPU.
    """
    cin = x.shape[-1]
    xn = _layernorm(x, g_ref[...], be_ref[...], eps).astype(jnp.bfloat16)
    acc = b_ref[...]                                    # (1, Cout) fp32, broadcasts
    for j in range(4):                                  # j = kh*2 + kw, static unroll
        rows = jnp.dot(sel_ref[j], xn,                  # exact row gather via MXU
                       preferred_element_type=jnp.float32)
        acc = acc + jnp.dot(rows.astype(jnp.bfloat16),
                            w_ref[j * cin:(j + 1) * cin, :],
                            preferred_element_type=jnp.float32)
    return acc                                          # (Pout, Cout) fp32


def _encoder_kernel(patches_ref,
                    sw_ref, sb_ref, sg_ref, sbe_ref,
                    sel0_ref, g0_ref, be0_ref, w0_ref, b0_ref,
                    sel1_ref, g1_ref, be1_ref, w1_ref, b1_ref,
                    sel2_ref, g2_ref, be2_ref, w2_ref, b2_ref,
                    f0_ref, f1_ref, f2_ref, f3_ref,
                    *, eps):
    # --- stem: Conv2d(3, C0, k=4, s=4) as a K-padded bf16 matmul + LayerNorm2d ---
    p = patches_ref[...].astype(jnp.bfloat16)                           # (64, 128)
    y = jnp.dot(p, sw_ref[...], preferred_element_type=jnp.float32) + sb_ref[...]
    y0 = _layernorm(y, sg_ref[...], sbe_ref[...], eps)                  # (64, 32) f32
    f0_ref[...] = y0.astype(f0_ref.dtype)

    # --- three LayerNorm2d + Conv2d(C, 2C, k=2, s=2) downsample layers ---
    y1 = _down_layer(y0, sel0_ref, g0_ref, be0_ref, w0_ref, b0_ref, eps)  # (16, 64)
    f1_ref[...] = y1.astype(f1_ref.dtype)
    y2 = _down_layer(y1, sel1_ref, g1_ref, be1_ref, w1_ref, b1_ref, eps)  # (4, 128)
    f2_ref[...] = y2.astype(f2_ref.dtype)
    y3 = _down_layer(y2, sel2_ref, g2_ref, be2_ref, w2_ref, b2_ref, eps)  # (1, 256)
    f3_ref[...] = y3.astype(f3_ref.dtype)


# ---------------------------------------------------------------------------
# Wrapper-side helpers (run once on the input / as compile-time constants)
# ---------------------------------------------------------------------------
def _stem_patches(x_nhwc, k, k_pad):
    """im2col for the non-overlapping stem conv (k == stride), K zero-padded.

    Applied once to the network input; XLA fuses the NCHW->NHWC transpose,
    the patch rearrangement and the pad into the single HBM pass that has to
    read the input anyway.  Patch row order is row-major (ho, wo); K order is
    (kh, kw, cin)."""
    N, H, W, C = x_nhwc.shape
    Ho, Wo = H // k, W // k
    p = x_nhwc.reshape(N, Ho, k, Wo, k, C)
    p = jnp.transpose(p, (0, 1, 3, 2, 4, 5)).reshape(N, Ho * Wo, k * k * C)
    if k_pad > k * k * C:
        p = jnp.pad(p, ((0, 0), (0, 0), (0, k_pad - k * k * C)))
    return p, (Ho, Wo)


def _make_selection(h_in, w_in):
    """Constant 0/1 matrices: sel[kh*2+kw, p, q] = 1 iff input pixel-row q is
    the (kh, kw) element of the 2x2 patch of output pixel p (row-major)."""
    h_out, w_out = h_in // 2, w_in // 2
    sel = np.zeros((4, h_out * w_out, h_in * w_in), np.float32)
    for kh in range(2):
        for kw in range(2):
            j = kh * 2 + kw
            for ho in range(h_out):
                for wo in range(w_out):
                    q = (2 * ho + kh) * w_in + (2 * wo + kw)
                    sel[j, ho * w_out + wo, q] = 1.0
    return jnp.asarray(sel, jnp.bfloat16)


def _const_spec(arr):
    """Grid-invariant full-array BlockSpec (weights / params / sel matrices)."""
    zeros = (0,) * arr.ndim
    return pl.BlockSpec(arr.shape, lambda n: zeros)


# ---------------------------------------------------------------------------
# Parameters (deterministic synthetic init; shapes mimic a small convnext4x)
# ---------------------------------------------------------------------------
def init_params(key):
    c0 = CAPTURED_CHANNELS[0]
    k0, key = jax.random.split(key)
    w_stem = 0.02 * jax.random.normal(k0, (_STEM_K * _STEM_K * 3, c0), jnp.float32)
    w_stem = jnp.pad(w_stem, ((0, _STEM_KPAD - w_stem.shape[0]), (0, 0)))  # K -> 128
    params = {"stem": dict(
        w=w_stem.astype(jnp.bfloat16),          # (128, 32), K-order (kh, kw, cin)
        b=jnp.zeros((1, c0), jnp.float32),
        gamma=jnp.ones((1, c0), jnp.float32),
        beta=jnp.zeros((1, c0), jnp.float32),
    )}
    for i in range(3):
        cin, cout = CAPTURED_CHANNELS[i], CAPTURED_CHANNELS[i + 1]
        kw_, key = jax.random.split(key)
        params[f"down{i}"] = dict(
            ln_gamma=jnp.ones((1, cin), jnp.float32),
            ln_beta=jnp.zeros((1, cin), jnp.float32),
            # (2*2*cin, cout) with K-order (kh, kw, cin).  NOTE: real torchvision
            # OIHW weights would need a permute to (kh, kw, cin, cout) before the
            # reshape; the synthetic init is self-consistent with the kernel.
            w=(0.02 * jax.random.normal(kw_, (4 * cin, cout), jnp.float32)
               ).astype(jnp.bfloat16),
            b=jnp.zeros((1, cout), jnp.float32),
        )
    return params


# ---------------------------------------------------------------------------
# Encoder forward: returns list of 4 feature maps (NCHW, like the PyTorch module)
# ---------------------------------------------------------------------------
@jax.jit
def encoder_forward(x_nchw, params):
    N = x_nchw.shape[0]
    x = jnp.transpose(x_nchw, (0, 2, 3, 1))                          # NCHW -> NHWC
    patches, (H0, W0) = _stem_patches(x, _STEM_K, _STEM_KPAD)        # (N, 64, 128)

    grids = [(H0, W0)]
    for _ in range(3):
        grids.append((grids[-1][0] // 2, grids[-1][1] // 2))
    pixels = [h * w for h, w in grids]
    chans = CAPTURED_CHANNELS
    sels = [_make_selection(*grids[i]) for i in range(3)]

    st = params["stem"]
    args = [patches, st["w"], st["b"], st["gamma"], st["beta"]]
    for i in range(3):
        d = params[f"down{i}"]
        args += [sels[i], d["ln_gamma"], d["ln_beta"], d["w"], d["b"]]

    in_specs = [pl.BlockSpec((None, pixels[0], _STEM_KPAD), lambda n: (n, 0, 0))]
    in_specs += [_const_spec(a) for a in args[1:]]

    out_shape = tuple(
        jax.ShapeDtypeStruct((N, pixels[i], chans[i]), jnp.float32) for i in range(4))
    out_specs = tuple(
        pl.BlockSpec((None, pixels[i], chans[i]), lambda n: (n, 0, 0))
        for i in range(4))

    feats_flat = pl.pallas_call(
        functools.partial(_encoder_kernel, eps=_EPS),
        out_shape=out_shape,
        grid_spec=pltpu.PrefetchScalarGridSpec(
            num_scalar_prefetch=0,
            grid=(N,),                       # one image per grid step (>= 2 steps)
            in_specs=in_specs,
            out_specs=out_specs,
        ),
        compiler_params=pltpu.CompilerParams(
            dimension_semantics=("parallel",),   # images independent (megacore)
            vmem_limit_bytes=16 * 1024 * 1024,
        ),
    )(*args)

    feats = []
    for (h, w), c, y in zip(grids, chans, feats_flat):
        feats.append(jnp.transpose(y.reshape(N, h, w, c), (0, 3, 1, 2)))  # NCHW
    return feats


# ---------------------------------------------------------------------------
# Pure-JAX reference with matching numerics (bf16 matmul operands, fp32 LN)
# ---------------------------------------------------------------------------
def _reference_forward(x_nchw, params):
    N = x_nchw.shape[0]
    x = jnp.transpose(x_nchw, (0, 2, 3, 1))
    patches, (H, W) = _stem_patches(x, _STEM_K, _STEM_KPAD)
    st = params["stem"]
    y = jnp.dot(patches.reshape(N * H * W, -1).astype(jnp.bfloat16), st["w"],
                preferred_element_type=jnp.float32) + st["b"]
    m = jnp.mean(y, -1, keepdims=True)
    v = jnp.mean((y - m) ** 2, -1, keepdims=True)
    y = (y - m) * jax.lax.rsqrt(v + _EPS) * st["gamma"] + st["beta"]
    cur = y.reshape(N, H, W, CAPTURED_CHANNELS[0])
    feats = [cur]
    for i in range(3):
        d = params[f"down{i}"]
        n, h, w, c = cur.shape
        flat = cur.reshape(-1, c)
        m = jnp.mean(flat, -1, keepdims=True)
        v = jnp.mean((flat - m) ** 2, -1, keepdims=True)
        xn = ((flat - m) * jax.lax.rsqrt(v + _EPS) * d["ln_gamma"]
              + d["ln_beta"]).reshape(n, h, w, c)
        p = xn.reshape(n, h // 2, 2, w // 2, 2, c)
        p = jnp.transpose(p, (0, 1, 3, 2, 4, 5)).reshape(
            n * (h // 2) * (w // 2), 4 * c)
        yy = jnp.dot(p.astype(jnp.bfloat16), d["w"],
                     preferred_element_type=jnp.float32) + d["b"]
        cur = yy.reshape(n, h // 2, w // 2, -1)
        feats.append(cur)
    return [jnp.transpose(f, (0, 3, 1, 2)) for f in feats]


# ---------------------------------------------------------------------------
if __name__ == "__main__":
    key = jax.random.PRNGKey(0)
    pkey, xkey = jax.random.split(key)
    params = init_params(pkey)

    x = jax.random.normal(xkey, (2, 3, 32, 32), jnp.float32)   # NCHW input

    feats = encoder_forward(x, params)
    for f in feats:
        jax.block_until_ready(f)

    expected = [(2, 32, 8, 8), (2, 64, 4, 4), (2, 128, 2, 2), (2, 256, 1, 1)]
    assert [tuple(f.shape) for f in feats] == expected, [f.shape for f in feats]

    refs = _reference_forward(x, params)
    for f, r in zip(feats, refs):
        assert jnp.allclose(f, r, rtol=5e-2, atol=5e-2), \
            float(jnp.max(jnp.abs(f - r)))

    print("KERNEL_OK")
</pallas_src>

<mosaic_0001>
module attributes {stable_mosaic.version = 11 : i64} {
  func.func @_encoder_kernel(%arg0: i32, %arg1: memref<1x64x128xf32, #tpu.memory_space<vmem>>, %arg2: memref<128x32xbf16, #tpu.memory_space<vmem>>, %arg3: memref<1x32xf32, #tpu.memory_space<vmem>>, %arg4: memref<1x32xf32, #tpu.memory_space<vmem>>, %arg5: memref<1x32xf32, #tpu.memory_space<vmem>>, %arg6: memref<4x16x64xbf16, #tpu.memory_space<vmem>>, %arg7: memref<1x32xf32, #tpu.memory_space<vmem>>, %arg8: memref<1x32xf32, #tpu.memory_space<vmem>>, %arg9: memref<128x64xbf16, #tpu.memory_space<vmem>>, %arg10: memref<1x64xf32, #tpu.memory_space<vmem>>, %arg11: memref<4x4x16xbf16, #tpu.memory_space<vmem>>, %arg12: memref<1x64xf32, #tpu.memory_space<vmem>>, %arg13: memref<1x64xf32, #tpu.memory_space<vmem>>, %arg14: memref<256x128xbf16, #tpu.memory_space<vmem>>, %arg15: memref<1x128xf32, #tpu.memory_space<vmem>>, %arg16: memref<4x1x4xbf16, #tpu.memory_space<vmem>>, %arg17: memref<1x128xf32, #tpu.memory_space<vmem>>, %arg18: memref<1x128xf32, #tpu.memory_space<vmem>>, %arg19: memref<512x256xbf16, #tpu.memory_space<vmem>>, %arg20: memref<1x256xf32, #tpu.memory_space<vmem>>, %arg21: memref<1x64x32xf32, #tpu.memory_space<vmem>>, %arg22: memref<1x16x64xf32, #tpu.memory_space<vmem>>, %arg23: memref<1x4x128xf32, #tpu.memory_space<vmem>>, %arg24: memref<1x1x256xf32, #tpu.memory_space<vmem>>) attributes {dimension_semantics = [#tpu.dimension_semantics<parallel>], iteration_bounds = array<i64: 2>, scalar_prefetch = 0 : i64, scratch_operands = 0 : i64, tpu.core_type = #tpu.core_type<tc>, window_params = [{transform_indices = @transform_0, window_bounds = array<i64: 1, 64, 128>}, {pipeline_mode = #tpu.pipeline_mode<synchronous>, transform_indices = @transform_1, window_bounds = array<i64: 128, 32>}, {pipeline_mode = #tpu.pipeline_mode<synchronous>, transform_indices = @transform_2, window_bounds = array<i64: 1, 32>}, {pipeline_mode = #tpu.pipeline_mode<synchronous>, transform_indices = @transform_3, window_bounds = array<i64: 1, 32>}, {pipeline_mode = #tpu.pipeline_mode<synchronous>, transform_indices = @transform_4, window_bounds = array<i64: 1, 32>}, {pipeline_mode = #tpu.pipeline_mode<synchronous>, transform_indices = @transform_5, window_bounds = array<i64: 4, 16, 64>}, {pipeline_mode = #tpu.pipeline_mode<synchronous>, transform_indices = @transform_6, window_bounds = array<i64: 1, 32>}, {pipeline_mode = #tpu.pipeline_mode<synchronous>, transform_indices = @transform_7, window_bounds = array<i64: 1, 32>}, {pipeline_mode = #tpu.pipeline_mode<synchronous>, transform_indices = @transform_8, window_bounds = array<i64: 128, 64>}, {pipeline_mode = #tpu.pipeline_mode<synchronous>, transform_indices = @transform_9, window_bounds = array<i64: 1, 64>}, {pipeline_mode = #tpu.pipeline_mode<synchronous>, transform_indices = @transform_10, window_bounds = array<i64: 4, 4, 16>}, {pipeline_mode = #tpu.pipeline_mode<synchronous>, transform_indices = @transform_11, window_bounds = array<i64: 1, 64>}, {pipeline_mode = #tpu.pipeline_mode<synchronous>, transform_indices = @transform_12, window_bounds = array<i64: 1, 64>}, {pipeline_mode = #tpu.pipeline_mode<synchronous>, transform_indices = @transform_13, window_bounds = array<i64: 256, 128>}, {pipeline_mode = #tpu.pipeline_mode<synchronous>, transform_indices = @transform_14, window_bounds = array<i64: 1, 128>}, {pipeline_mode = #tpu.pipeline_mode<synchronous>, transform_indices = @transform_15, window_bounds = array<i64: 4, 1, 4>}, {pipeline_mode = #tpu.pipeline_mode<synchronous>, transform_indices = @transform_16, window_bounds = array<i64: 1, 128>}, {pipeline_mode = #tpu.pipeline_mode<synchronous>, transform_indices = @transform_17, window_bounds = array<i64: 1, 128>}, {pipeline_mode = #tpu.pipeline_mode<synchronous>, transform_indices = @transform_18, window_bounds = array<i64: 512, 256>}, {pipeline_mode = #tpu.pipeline_mode<synchronous>, transform_indices = @transform_19, window_bounds = array<i64: 1, 256>}, {transform_indices = @transform_20, window_bounds = array<i64: 1, 64, 32>}, {transform_indices = @transform_21, window_bounds = array<i64: 1, 16, 64>}, {transform_indices = @transform_22, window_bounds = array<i64: 1, 4, 128>}, {transform_indices = @transform_23, window_bounds = array<i64: 1, 1, 256>}]} {
    %c0 = arith.constant 0 : index
    %c0_0 = arith.constant 0 : index
    %c0_1 = arith.constant 0 : index
    %0 = vector.load %arg1[%c0, %c0_0, %c0_1] : memref<1x64x128xf32, #tpu.memory_space<vmem>>, vector<1x64x128xf32>
    %1 = vector.shape_cast %0 : vector<1x64x128xf32> to vector<64x128xf32>
    %2 = arith.truncf %1 : vector<64x128xf32> to vector<64x128xbf16>
    %c0_2 = arith.constant 0 : index
    %c0_3 = arith.constant 0 : index
    %3 = vector.load %arg2[%c0_2, %c0_3] : memref<128x32xbf16, #tpu.memory_space<vmem>>, vector<128x32xbf16>
    %cst = arith.constant dense<0.000000e+00> : vector<64x32xf32>
    %4 = tpu.matmul %2, %3, %cst {dimension_numbers = #tpu.dot_dimension_numbers<[1], [0], [0], [1], [0, 0, 1, 1], [], []>} : vector<64x128xbf16>, vector<128x32xbf16>, vector<64x32xf32> -> vector<64x32xf32>
    %c0_4 = arith.constant 0 : index
    %c0_5 = arith.constant 0 : index
    %5 = vector.load %arg3[%c0_4, %c0_5] : memref<1x32xf32, #tpu.memory_space<vmem>>, vector<1x32xf32>
    %6 = vector.broadcast %5 : vector<1x32xf32> to vector<64x32xf32>
    %7 = arith.addf %4, %6 : vector<64x32xf32>
    %c0_6 = arith.constant 0 : index
    %c0_7 = arith.constant 0 : index
    %8 = vector.load %arg4[%c0_6, %c0_7] : memref<1x32xf32, #tpu.memory_space<vmem>>, vector<1x32xf32>
    %c0_8 = arith.constant 0 : index
    %c0_9 = arith.constant 0 : index
    %9 = vector.load %arg5[%c0_8, %c0_9] : memref<1x32xf32, #tpu.memory_space<vmem>>, vector<1x32xf32>
    %cst_10 = arith.constant dense<0.000000e+00> : vector<64xf32>
    %10 = vector.multi_reduction <add>, %7, %cst_10 [1] : vector<64x32xf32> to vector<64xf32>
    %11 = vector.shape_cast %10 : vector<64xf32> to vector<64x1xf32>
    %cst_11 = arith.constant 3.200000e+01 : f32
    %12 = vector.broadcast %cst_11 : f32 to vector<64x1xf32>
    %13 = arith.divf %11, %12 : vector<64x1xf32>
    %14 = vector.broadcast %13 : vector<64x1xf32> to vector<64x32xf32>
    %15 = arith.subf %7, %14 : vector<64x32xf32>
    %16 = arith.mulf %15, %15 : vector<64x32xf32>
    %cst_12 = arith.constant dense<0.000000e+00> : vector<64xf32>
    %17 = vector.multi_reduction <add>, %16, %cst_12 [1] : vector<64x32xf32> to vector<64xf32>
    %18 = vector.shape_cast %17 : vector<64xf32> to vector<64x1xf32>
    %cst_13 = arith.constant 3.200000e+01 : f32
    %19 = vector.broadcast %cst_13 : f32 to vector<64x1xf32>
    %20 = arith.divf %18, %19 : vector<64x1xf32>
    %cst_14 = arith.constant 9.99999997E-7 : f32
    %21 = vector.broadcast %cst_14 : f32 to vector<64x1xf32>
    %22 = arith.addf %20, %21 : vector<64x1xf32>
    %23 = math.rsqrt %22 : vector<64x1xf32>
    %24 = vector.broadcast %23 : vector<64x1xf32> to vector<64x32xf32>
    %25 = arith.mulf %15, %24 : vector<64x32xf32>
    %26 = vector.broadcast %8 : vector<1x32xf32> to vector<64x32xf32>
    %27 = arith.mulf %25, %26 : vector<64x32xf32>
    %28 = vector.broadcast %9 : vector<1x32xf32> to vector<64x32xf32>
    %29 = arith.addf %27, %28 : vector<64x32xf32>
    %c0_15 = arith.constant 0 : index
    %c0_16 = arith.constant 0 : index
    %c0_17 = arith.constant 0 : index
    %30 = vector.load %arg21[%c0_15, %c0_16, %c0_17] : memref<1x64x32xf32, #tpu.memory_space<vmem>>, vector<1x64x32xf32>
    %31 = vector.shape_cast %30 : vector<1x64x32xf32> to vector<64x32xf32>
    %32 = vector.shape_cast %29 : vector<64x32xf32> to vector<1x64x32xf32>
    tpu.vector_store %arg21[%c0_15, %c0_16, %c0_17], %32 {strides = array<i32>} : memref<1x64x32xf32, #tpu.memory_space<vmem>>, vector<1x64x32xf32>,
    %c0_18 = arith.constant 0 : index
    %c0_19 = arith.constant 0 : index
    %33 = vector.load %arg7[%c0_18, %c0_19] : memref<1x32xf32, #tpu.memory_space<vmem>>, vector<1x32xf32>
    %c0_20 = arith.constant 0 : index
    %c0_21 = arith.constant 0 : index
    %34 = vector.load %arg8[%c0_20, %c0_21] : memref<1x32xf32, #tpu.memory_space<vmem>>, vector<1x32xf32>
    %cst_22 = arith.constant dense<0.000000e+00> : vector<64xf32>
    %35 = vector.multi_reduction <add>, %29, %cst_22 [1] : vector<64x32xf32> to vector<64xf32>
    %36 = vector.shape_cast %35 : vector<64xf32> to vector<64x1xf32>
    %cst_23 = arith.constant 3.200000e+01 : f32
    %37 = vector.broadcast %cst_23 : f32 to vector<64x1xf32>
    %38 = arith.divf %36, %37 : vector<64x1xf32>
    %39 = vector.broadcast %38 : vector<64x1xf32> to vector<64x32xf32>
    %40 = arith.subf %29, %39 : vector<64x32xf32>
    %41 = arith.mulf %40, %40 : vector<64x32xf32>
    %cst_24 = arith.constant dense<0.000000e+00> : vector<64xf32>
    %42 = vector.multi_reduction <add>, %41, %cst_24 [1] : vector<64x32xf32> to vector<64xf32>
    %43 = vector.shape_cast %42 : vector<64xf32> to vector<64x1xf32>
    %cst_25 = arith.constant 3.200000e+01 : f32
    %44 = vector.broadcast %cst_25 : f32 to vector<64x1xf32>
    %45 = arith.divf %43, %44 : vector<64x1xf32>
    %cst_26 = arith.constant 9.99999997E-7 : f32
    %46 = vector.broadcast %cst_26 : f32 to vector<64x1xf32>
    %47 = arith.addf %45, %46 : vector<64x1xf32>
    %48 = math.rsqrt %47 : vector<64x1xf32>
    %49 = vector.broadcast %48 : vector<64x1xf32> to vector<64x32xf32>
    %50 = arith.mulf %40, %49 : vector<64x32xf32>
    %51 = vector.broadcast %33 : vector<1x32xf32> to vector<64x32xf32>
    %52 = arith.mulf %50, %51 : vector<64x32xf32>
    %53 = vector.broadcast %34 : vector<1x32xf32> to vector<64x32xf32>
    %54 = arith.addf %52, %53 : vector<64x32xf32>
    %55 = arith.truncf %54 : vector<64x32xf32> to vector<64x32xbf16>
    %c0_27 = arith.constant 0 : index
    %c0_28 = arith.constant 0 : index
    %56 = vector.load %arg10[%c0_27, %c0_28] : memref<1x64xf32, #tpu.memory_space<vmem>>, vector<1x64xf32>
    %c0_29 = arith.constant 0 : index
    %c0_30 = arith.constant 0 : index
    %c0_31 = arith.constant 0 : index
    %57 = vector.load %arg6[%c0_29, %c0_30, %c0_31] : memref<4x16x64xbf16, #tpu.memory_space<vmem>>, vector<1x16x64xbf16>
    %58 = vector.shape_cast %57 : vector<1x16x64xbf16> to vector<16x64xbf16>
    %cst_32 = arith.constant dense<0.000000e+00> : vector<16x32xf32>
    %59 = tpu.matmul %58, %55, %cst_32 {dimension_numbers = #tpu.dot_dimension_numbers<[1], [0], [0], [1], [0, 0, 1, 1], [], []>} : vector<16x64xbf16>, vector<64x32xbf16>, vector<16x32xf32> -> vector<16x32xf32>
    %60 = arith.truncf %59 : vector<16x32xf32> to vector<16x32xbf16>
    %c0_33 = arith.constant 0 : index
    %c0_34 = arith.constant 0 : index
    %61 = vector.load %arg9[%c0_33, %c0_34] : memref<128x64xbf16, #tpu.memory_space<vmem>>, vector<32x64xbf16>
    %cst_35 = arith.constant dense<0.000000e+00> : vector<16x64xf32>
    %62 = tpu.matmul %60, %61, %cst_35 {dimension_numbers = #tpu.dot_dimension_numbers<[1], [0], [0], [1], [0, 0, 1, 1], [], []>} : vector<16x32xbf16>, vector<32x64xbf16>, vector<16x64xf32> -> vector<16x64xf32>
    %63 = vector.broadcast %56 : vector<1x64xf32> to vector<16x64xf32>
    %64 = arith.addf %63, %62 : vector<16x64xf32>
    %c1 = arith.constant 1 : index
    %c0_36 = arith.constant 0 : index
    %c0_37 = arith.constant 0 : index
    %65 = vector.load %arg6[%c1, %c0_36, %c0_37] : memref<4x16x64xbf16, #tpu.memory_space<vmem>>, vector<1x16x64xbf16>
    %66 = vector.shape_cast %65 : vector<1x16x64xbf16> to vector<16x64xbf16>
    %cst_38 = arith.constant dense<0.000000e+00> : vector<16x32xf32>
    %67 = tpu.matmul %66, %55, %cst_38 {dimension_numbers = #tpu.dot_dimension_numbers<[1], [0], [0], [1], [0, 0, 1, 1], [], []>} : vector<16x64xbf16>, vector<64x32xbf16>, vector<16x32xf32> -> vector<16x32xf32>
    %68 = arith.truncf %67 : vector<16x32xf32> to vector<16x32xbf16>
    %c32 = arith.constant 32 : index
    %c0_39 = arith.constant 0 : index
    %69 = vector.load %arg9[%c32, %c0_39] : memref<128x64xbf16, #tpu.memory_space<vmem>>, vector<32x64xbf16>
    %cst_40 = arith.constant dense<0.000000e+00> : vector<16x64xf32>
    %70 = tpu.matmul %68, %69, %cst_40 {dimension_numbers = #tpu.dot_dimension_numbers<[1], [0], [0], [1], [0, 0, 1, 1], [], []>} : vector<16x32xbf16>, vector<32x64xbf16>, vector<16x64xf32> -> vector<16x64xf32>
    %71 = arith.addf %64, %70 : vector<16x64xf32>
    %c2 = arith.constant 2 : index
    %c0_41 = arith.constant 0 : index
    %c0_42 = arith.constant 0 : index
    %72 = vector.load %arg6[%c2, %c0_41, %c0_42] : memref<4x16x64xbf16, #tpu.memory_space<vmem>>, vector<1x16x64xbf16>
    %73 = vector.shape_cast %72 : vector<1x16x64xbf16> to vector<16x64xbf16>
    %cst_43 = arith.constant dense<0.000000e+00> : vector<16x32xf32>
    %74 = tpu.matmul %73, %55, %cst_43 {dimension_numbers = #tpu.dot_dimension_numbers<[1], [0], [0], [1], [0, 0, 1, 1], [], []>} : vector<16x64xbf16>, vector<64x32xbf16>, vector<16x32xf32> -> vector<16x32xf32>
    %75 = arith.truncf %74 : vector<16x32xf32> to vector<16x32xbf16>
    %c64 = arith.constant 64 : index
    %c0_44 = arith.constant 0 : index
    %76 = vector.load %arg9[%c64, %c0_44] : memref<128x64xbf16, #tpu.memory_space<vmem>>, vector<32x64xbf16>
    %cst_45 = arith.constant dense<0.000000e+00> : vector<16x64xf32>
    %77 = tpu.matmul %75, %76, %cst_45 {dimension_numbers = #tpu.dot_dimension_numbers<[1], [0], [0], [1], [0, 0, 1, 1], [], []>} : vector<16x32xbf16>, vector<32x64xbf16>, vector<16x64xf32> -> vector<16x64xf32>
    %78 = arith.addf %71, %77 : vector<16x64xf32>
    %c3 = arith.constant 3 : index
    %c0_46 = arith.constant 0 : index
    %c0_47 = arith.constant 0 : index
    %79 = vector.load %arg6[%c3, %c0_46, %c0_47] : memref<4x16x64xbf16, #tpu.memory_space<vmem>>, vector<1x16x64xbf16>
    %80 = vector.shape_cast %79 : vector<1x16x64xbf16> to vector<16x64xbf16>
    %cst_48 = arith.constant dense<0.000000e+00> : vector<16x32xf32>
    %81 = tpu.matmul %80, %55, %cst_48 {dimension_numbers = #tpu.dot_dimension_numbers<[1], [0], [0], [1], [0, 0, 1, 1], [], []>} : vector<16x64xbf16>, vector<64x32xbf16>, vector<16x32xf32> -> vector<16x32xf32>
    %82 = arith.truncf %81 : vector<16x32xf32> to vector<16x32xbf16>
    %c96 = arith.constant 96 : index
    %c0_49 = arith.constant 0 : index
    %83 = vector.load %arg9[%c96, %c0_49] : memref<128x64xbf16, #tpu.memory_space<vmem>>, vector<32x64xbf16>
    %cst_50 = arith.constant dense<0.000000e+00> : vector<16x64xf32>
    %84 = tpu.matmul %82, %83, %cst_50 {dimension_numbers = #tpu.dot_dimension_numbers<[1], [0], [0], [1], [0, 0, 1, 1], [], []>} : vector<16x32xbf16>, vector<32x64xbf16>, vector<16x64xf32> -> vector<16x64xf32>
    %85 = arith.addf %78, %84 : vector<16x64xf32>
    %c0_51 = arith.constant 0 : index
    %c0_52 = arith.constant 0 : index
    %c0_53 = arith.constant 0 : index
    %86 = vector.load %arg22[%c0_51, %c0_52, %c0_53] : memref<1x16x64xf32, #tpu.memory_space<vmem>>, vector<1x16x64xf32>
    %87 = vector.shape_cast %86 : vector<1x16x64xf32> to vector<16x64xf32>
    %88 = vector.shape_cast %85 : vector<16x64xf32> to vector<1x16x64xf32>
    tpu.vector_store %arg22[%c0_51, %c0_52, %c0_53], %88 {strides = array<i32>} : memref<1x16x64xf32, #tpu.memory_space<vmem>>, vector<1x16x64xf32>,
    %c0_54 = arith.constant 0 : index
    %c0_55 = arith.constant 0 : index
    %89 = vector.load %arg12[%c0_54, %c0_55] : memref<1x64xf32, #tpu.memory_space<vmem>>, vector<1x64xf32>
    %c0_56 = arith.constant 0 : index
    %c0_57 = arith.constant 0 : index
    %90 = vector.load %arg13[%c0_56, %c0_57] : memref<1x64xf32, #tpu.memory_space<vmem>>, vector<1x64xf32>
    %cst_58 = arith.constant dense<0.000000e+00> : vector<16xf32>
    %91 = vector.multi_reduction <add>, %85, %cst_58 [1] : vector<16x64xf32> to vector<16xf32>
    %92 = vector.shape_cast %91 : vector<16xf32> to vector<16x1xf32>
    %cst_59 = arith.constant 6.400000e+01 : f32
    %93 = vector.broadcast %cst_59 : f32 to vector<16x1xf32>
    %94 = arith.divf %92, %93 : vector<16x1xf32>
    %95 = vector.broadcast %94 : vector<16x1xf32> to vector<16x64xf32>
    %96 = arith.subf %85, %95 : vector<16x64xf32>
    %97 = arith.mulf %96, %96 : vector<16x64xf32>
    %cst_60 = arith.constant dense<0.000000e+00> : vector<16xf32>
    %98 = vector.multi_reduction <add>, %97, %cst_60 [1] : vector<16x64xf32> to vector<16xf32>
    %99 = vector.shape_cast %98 : vector<16xf32> to vector<16x1xf32>
    %cst_61 = arith.constant 6.400000e+01 : f32
    %100 = vector.broadcast %cst_61 : f32 to vector<16x1xf32>
    %101 = arith.divf %99, %100 : vector<16x1xf32>
    %cst_62 = arith.constant 9.99999997E-7 : f32
    %102 = vector.broadcast %cst_62 : f32 to vector<16x1xf32>
    %103 = arith.addf %101, %102 : vector<16x1xf32>
    %104 = math.rsqrt %103 : vector<16x1xf32>
    %105 = vector.broadcast %104 : vector<16x1xf32> to vector<16x64xf32>
    %106 = arith.mulf %96, %105 : vector<16x64xf32>
    %107 = vector.broadcast %89 : vector<1x64xf32> to vector<16x64xf32>
    %108 = arith.mulf %106, %107 : vector<16x64xf32>
    %109 = vector.broadcast %90 : vector<1x64xf32> to vector<16x64xf32>
    %110 = arith.addf %108, %109 : vector<16x64xf32>
    %111 = arith.truncf %110 : vector<16x64xf32> to vector<16x64xbf16>
    %c0_63 = arith.constant 0 : index
    %c0_64 = arith.constant 0 : index
    %112 = vector.load %arg15[%c0_63, %c0_64] : memref<1x128xf32, #tpu.memory_space<vmem>>, vector<1x128xf32>
    %c0_65 = arith.constant 0 : index
    %c0_66 = arith.constant 0 : index
    %c0_67 = arith.constant 0 : index
    %113 = vector.load %arg11[%c0_65, %c0_66, %c0_67] : memref<4x4x16xbf16, #tpu.memory_space<vmem>>, vector<1x4x16xbf16>
    %114 = vector.shape_cast %113 : vector<1x4x16xbf16> to vector<4x16xbf16>
    %cst_68 = arith.constant dense<0.000000e+00> : vector<4x64xf32>
    %115 = tpu.matmul %114, %111, %cst_68 {dimension_numbers = #tpu.dot_dimension_numbers<[1], [0], [0], [1], [0, 0, 1, 1], [], []>} : vector<4x16xbf16>, vector<16x64xbf16>, vector<4x64xf32> -> vector<4x64xf32>
    %116 = arith.truncf %115 : vector<4x64xf32> to vector<4x64xbf16>
    %c0_69 = arith.constant 0 : index
    %c0_70 = arith.constant 0 : index
    %117 = vector.load %arg14[%c0_69, %c0_70] : memref<256x128xbf16, #tpu.memory_space<vmem>>, vector<64x128xbf16>
    %cst_71 = arith.constant dense<0.000000e+00> : vector<4x128xf32>
    %118 = tpu.matmul %116, %117, %cst_71 {dimension_numbers = #tpu.dot_dimension_numbers<[1], [0], [0], [1], [0, 0, 1, 1], [], []>} : vector<4x64xbf16>, vector<64x128xbf16>, vector<4x128xf32> -> vector<4x128xf32>
    %119 = vector.broadcast %112 : vector<1x128xf32> to vector<4x128xf32>
    %120 = arith.addf %119, %118 : vector<4x128xf32>
    %c1_72 = arith.constant 1 : index
    %c0_73 = arith.constant 0 : index
    %c0_74 = arith.constant 0 : index
    %121 = vector.load %arg11[%c1_72, %c0_73, %c0_74] : memref<4x4x16xbf16, #tpu.memory_space<vmem>>, vector<1x4x16xbf16>
    %122 = vector.shape_cast %121 : vector<1x4x16xbf16> to vector<4x16xbf16>
    %cst_75 = arith.constant dense<0.000000e+00> : vector<4x64xf32>
    %123 = tpu.matmul %122, %111, %cst_75 {dimension_numbers = #tpu.dot_dimension_numbers<[1], [0], [0], [1], [0, 0, 1, 1], [], []>} : vector<4x16xbf16>, vector<16x64xbf16>, vector<4x64xf32> -> vector<4x64xf32>
    %124 = arith.truncf %123 : vector<4x64xf32> to vector<4x64xbf16>
    %c64_76 = arith.constant 64 : index
    %c0_77 = arith.constant 0 : index
    %125 = vector.load %arg14[%c64_76, %c0_77] : memref<256x128xbf16, #tpu.memory_space<vmem>>, vector<64x128xbf16>
    %cst_78 = arith.constant dense<0.000000e+00> : vector<4x128xf32>
    %126 = tpu.matmul %124, %125, %cst_78 {dimension_numbers = #tpu.dot_dimension_numbers<[1], [0], [0], [1], [0, 0, 1, 1], [], []>} : vector<4x64xbf16>, vector<64x128xbf16>, vector<4x128xf32> -> vector<4x128xf32>
    %127 = arith.addf %120, %126 : vector<4x128xf32>
    %c2_79 = arith.constant 2 : index
    %c0_80 = arith.constant 0 : index
    %c0_81 = arith.constant 0 : index
    %128 = vector.load %arg11[%c2_79, %c0_80, %c0_81] : memref<4x4x16xbf16, #tpu.memory_space<vmem>>, vector<1x4x16xbf16>
    %129 = vector.shape_cast %128 : vector<1x4x16xbf16> to vector<4x16xbf16>
    %cst_82 = arith.constant dense<0.000000e+00> : vector<4x64xf32>
    %130 = tpu.matmul %129, %111, %cst_82 {dimension_numbers = #tpu.dot_dimension_numbers<[1], [0], [0], [1], [0, 0, 1, 1], [], []>} : vector<4x16xbf16>, vector<16x64xbf16>, vector<4x64xf32> -> vector<4x64xf32>
    %131 = arith.truncf %130 : vector<4x64xf32> to vector<4x64xbf16>
    %c128 = arith.constant 128 : index
    %c0_83 = arith.constant 0 : index
    %132 = vector.load %arg14[%c128, %c0_83] : memref<256x128xbf16, #tpu.memory_space<vmem>>, vector<64x128xbf16>
    %cst_84 = arith.constant dense<0.000000e+00> : vector<4x128xf32>
    %133 = tpu.matmul %131, %132, %cst_84 {dimension_numbers = #tpu.dot_dimension_numbers<[1], [0], [0], [1], [0, 0, 1, 1], [], []>} : vector<4x64xbf16>, vector<64x128xbf16>, vector<4x128xf32> -> vector<4x128xf32>
    %134 = arith.addf %127, %133 : vector<4x128xf32>
    %c3_85 = arith.constant 3 : index
    %c0_86 = arith.constant 0 : index
    %c0_87 = arith.constant 0 : index
    %135 = vector.load %arg11[%c3_85, %c0_86, %c0_87] : memref<4x4x16xbf16, #tpu.memory_space<vmem>>, vector<1x4x16xbf16>
    %136 = vector.shape_cast %135 : vector<1x4x16xbf16> to vector<4x16xbf16>
    %cst_88 = arith.constant dense<0.000000e+00> : vector<4x64xf32>
    %137 = tpu.matmul %136, %111, %cst_88 {dimension_numbers = #tpu.dot_dimension_numbers<[1], [0], [0], [1], [0, 0, 1, 1], [], []>} : vector<4x16xbf16>, vector<16x64xbf16>, vector<4x64xf32> -> vector<4x64xf32>
    %138 = arith.truncf %137 : vector<4x64xf32> to vector<4x64xbf16>
    %c192 = arith.constant 192 : index
    %c0_89 = arith.constant 0 : index
    %139 = vector.load %arg14[%c192, %c0_89] : memref<256x128xbf16, #tpu.memory_space<vmem>>, vector<64x128xbf16>
    %cst_90 = arith.constant dense<0.000000e+00> : vector<4x128xf32>
    %140 = tpu.matmul %138, %139, %cst_90 {dimension_numbers = #tpu.dot_dimension_numbers<[1], [0], [0], [1], [0, 0, 1, 1], [], []>} : vector<4x64xbf16>, vector<64x128xbf16>, vector<4x128xf32> -> vector<4x128xf32>
    %141 = arith.addf %134, %140 : vector<4x128xf32>
    %c0_91 = arith.constant 0 : index
    %c0_92 = arith.constant 0 : index
    %c0_93 = arith.constant 0 : index
    %142 = vector.load %arg23[%c0_91, %c0_92, %c0_93] : memref<1x4x128xf32, #tpu.memory_space<vmem>>, vector<1x4x128xf32>
    %143 = vector.shape_cast %142 : vector<1x4x128xf32> to vector<4x128xf32>
    %144 = vector.shape_cast %141 : vector<4x128xf32> to vector<1x4x128xf32>
    tpu.vector_store %arg23[%c0_91, %c0_92, %c0_93], %144 {strides = array<i32>} : memref<1x4x128xf32, #tpu.memory_space<vmem>>, vector<1x4x128xf32>,
    %c0_94 = arith.constant 0 : index
    %c0_95 = arith.constant 0 : index
    %145 = vector.load %arg17[%c0_94, %c0_95] : memref<1x128xf32, #tpu.memory_space<vmem>>, vector<1x128xf32>
    %c0_96 = arith.constant 0 : index
    %c0_97 = arith.constant 0 : index
    %146 = vector.load %arg18[%c0_96, %c0_97] : memref<1x128xf32, #tpu.memory_space<vmem>>, vector<1x128xf32>
    %cst_98 = arith.constant dense<0.000000e+00> : vector<4xf32>
    %147 = vector.multi_reduction <add>, %141, %cst_98 [1] : vector<4x128xf32> to vector<4xf32>
    %148 = vector.shape_cast %147 : vector<4xf32> to vector<4x1xf32>
    %cst_99 = arith.constant 1.280000e+02 : f32
    %149 = vector.broadcast %cst_99 : f32 to vector<4x1xf32>
    %150 = arith.divf %148, %149 : vector<4x1xf32>
    %151 = vector.broadcast %150 : vector<4x1xf32> to vector<4x128xf32>
    %152 = arith.subf %141, %151 : vector<4x128xf32>
    %153 = arith.mulf %152, %152 : vector<4x128xf32>
    %cst_100 = arith.constant dense<0.000000e+00> : vector<4xf32>
    %154 = vector.multi_reduction <add>, %153, %cst_100 [1] : vector<4x128xf32> to vector<4xf32>
    %155 = vector.shape_cast %154 : vector<4xf32> to vector<4x1xf32>
    %cst_101 = arith.constant 1.280000e+02 : f32
    %156 = vector.broadcast %cst_101 : f32 to vector<4x1xf32>
    %157 = arith.divf %155, %156 : vector<4x1xf32>
    %cst_102 = arith.constant 9.99999997E-7 : f32
    %158 = vector.broadcast %cst_102 : f32 to vector<4x1xf32>
    %159 = arith.addf %157, %158 : vector<4x1xf32>
    %160 = math.rsqrt %159 : vector<4x1xf32>
    %161 = vector.broadcast %160 : vector<4x1xf32> to vector<4x128xf32>
    %162 = arith.mulf %152, %161 : vector<4x128xf32>
    %163 = vector.broadcast %145 : vector<1x128xf32> to vector<4x128xf32>
    %164 = arith.mulf %162, %163 : vector<4x128xf32>
    %165 = vector.broadcast %146 : vector<1x128xf32> to vector<4x128xf32>
    %166 = arith.addf %164, %165 : vector<4x128xf32>
    %167 = arith.truncf %166 : vector<4x128xf32> to vector<4x128xbf16>
    %c0_103 = arith.constant 0 : index
    %c0_104 = arith.constant 0 : index
    %168 = vector.load %arg20[%c0_103, %c0_104] : memref<1x256xf32, #tpu.memory_space<vmem>>, vector<1x256xf32>
    %c0_105 = arith.constant 0 : index
    %c0_106 = arith.constant 0 : index
    %c0_107 = arith.constant 0 : index
    %169 = vector.load %arg16[%c0_105, %c0_106, %c0_107] : memref<4x1x4xbf16, #tpu.memory_space<vmem>>, vector<1x1x4xbf16>
    %170 = vector.shape_cast %169 : vector<1x1x4xbf16> to vector<1x4xbf16>
    %cst_108 = arith.constant dense<0.000000e+00> : vector<1x128xf32>
    %171 = tpu.matmul %170, %167, %cst_108 {dimension_numbers = #tpu.dot_dimension_numbers<[1], [0], [0], [1], [0, 0, 1, 1], [], []>} : vector<1x4xbf16>, vector<4x128xbf16>, vector<1x128xf32> -> vector<1x128xf32>
    %172 = arith.truncf %171 : vector<1x128xf32> to vector<1x128xbf16>
    %c0_109 = arith.constant 0 : index
    %c0_110 = arith.constant 0 : index
    %173 = vector.load %arg19[%c0_109, %c0_110] : memref<512x256xbf16, #tpu.memory_space<vmem>>, vector<128x256xbf16>
    %cst_111 = arith.constant dense<0.000000e+00> : vector<1x256xf32>
    %174 = tpu.matmul %172, %173, %cst_111 {dimension_numbers = #tpu.dot_dimension_numbers<[1], [0], [0], [1], [0, 0, 1, 1], [], []>} : vector<1x128xbf16>, vector<128x256xbf16>, vector<1x256xf32> -> vector<1x256xf32>
    %175 = arith.addf %168, %174 : vector<1x256xf32>
    %c1_112 = arith.constant 1 : index
    %c0_113 = arith.constant 0 : index
    %c0_114 = arith.constant 0 : index
    %176 = vector.load %arg16[%c1_112, %c0_113, %c0_114] : memref<4x1x4xbf16, #tpu.memory_space<vmem>>, vector<1x1x4xbf16>
    %177 = vector.shape_cast %176 : vector<1x1x4xbf16> to vector<1x4xbf16>
    %cst_115 = arith.constant dense<0.000000e+00> : vector<1x128xf32>
    %178 = tpu.matmul %177, %167, %cst_115 {dimension_numbers = #tpu.dot_dimension_numbers<[1], [0], [0], [1], [0, 0, 1, 1], [], []>} : vector<1x4xbf16>, vector<4x128xbf16>, vector<1x128xf32> -> vector<1x128xf32>
    %179 = arith.truncf %178 : vector<1x128xf32> to vector<1x128xbf16>
    %c128_116 = arith.constant 128 : index
    %c0_117 = arith.constant 0 : index
    %180 = vector.load %arg19[%c128_116, %c0_117] : memref<512x256xbf16, #tpu.memory_space<vmem>>, vector<128x256xbf16>
    %cst_118 = arith.constant dense<0.000000e+00> : vector<1x256xf32>
    %181 = tpu.matmul %179, %180, %cst_118 {dimension_numbers = #tpu.dot_dimension_numbers<[1], [0], [0], [1], [0, 0, 1, 1], [], []>} : vector<1x128xbf16>, vector<128x256xbf16>, vector<1x256xf32> -> vector<1x256xf32>
    %182 = arith.addf %175, %181 : vector<1x256xf32>
    %c2_119 = arith.constant 2 : index
    %c0_120 = arith.constant 0 : index
    %c0_121 = arith.constant 0 : index
    %183 = vector.load %arg16[%c2_119, %c0_120, %c0_121] : memref<4x1x4xbf16, #tpu.memory_space<vmem>>, vector<1x1x4xbf16>
    %184 = vector.shape_cast %183 : vector<1x1x4xbf16> to vector<1x4xbf16>
    %cst_122 = arith.constant dense<0.000000e+00> : vector<1x128xf32>
    %185 = tpu.matmul %184, %167, %cst_122 {dimension_numbers = #tpu.dot_dimension_numbers<[1], [0], [0], [1], [0, 0, 1, 1], [], []>} : vector<1x4xbf16>, vector<4x128xbf16>, vector<1x128xf32> -> vector<1x128xf32>
    %186 = arith.truncf %185 : vector<1x128xf32> to vector<1x128xbf16>
    %c256 = arith.constant 256 : index
    %c0_123 = arith.constant 0 : index
    %187 = vector.load %arg19[%c256, %c0_123] : memref<512x256xbf16, #tpu.memory_space<vmem>>, vector<128x256xbf16>
    %cst_124 = arith.constant dense<0.000000e+00> : vector<1x256xf32>
    %188 = tpu.matmul %186, %187, %cst_124 {dimension_numbers = #tpu.dot_dimension_numbers<[1], [0], [0], [1], [0, 0, 1, 1], [], []>} : vector<1x128xbf16>, vector<128x256xbf16>, vector<1x256xf32> -> vector<1x256xf32>
    %189 = arith.addf %182, %188 : vector<1x256xf32>
    %c3_125 = arith.constant 3 : index
    %c0_126 = arith.constant 0 : index
    %c0_127 = arith.constant 0 : index
    %190 = vector.load %arg16[%c3_125, %c0_126, %c0_127] : memref<4x1x4xbf16, #tpu.memory_space<vmem>>, vector<1x1x4xbf16>
    %191 = vector.shape_cast %190 : vector<1x1x4xbf16> to vector<1x4xbf16>
    %cst_128 = arith.constant dense<0.000000e+00> : vector<1x128xf32>
    %192 = tpu.matmul %191, %167, %cst_128 {dimension_numbers = #tpu.dot_dimension_numbers<[1], [0], [0], [1], [0, 0, 1, 1], [], []>} : vector<1x4xbf16>, vector<4x128xbf16>, vector<1x128xf32> -> vector<1x128xf32>
    %193 = arith.truncf %192 : vector<1x128xf32> to vector<1x128xbf16>
    %c384 = arith.constant 384 : index
    %c0_129 = arith.constant 0 : index
    %194 = vector.load %arg19[%c384, %c0_129] : memref<512x256xbf16, #tpu.memory_space<vmem>>, vector<128x256xbf16>
    %cst_130 = arith.constant dense<0.000000e+00> : vector<1x256xf32>
    %195 = tpu.matmul %193, %194, %cst_130 {dimension_numbers = #tpu.dot_dimension_numbers<[1], [0], [0], [1], [0, 0, 1, 1], [], []>} : vector<1x128xbf16>, vector<128x256xbf16>, vector<1x256xf32> -> vector<1x256xf32>
    %196 = arith.addf %189, %195 : vector<1x256xf32>
    %c0_131 = arith.constant 0 : index
    %c0_132 = arith.constant 0 : index
    %c0_133 = arith.constant 0 : index
    %197 = vector.load %arg24[%c0_131, %c0_132, %c0_133] : memref<1x1x256xf32, #tpu.memory_space<vmem>>, vector<1x1x256xf32>
    %198 = vector.shape_cast %197 : vector<1x1x256xf32> to vector<1x256xf32>
    %199 = vector.shape_cast %196 : vector<1x256xf32> to vector<1x1x256xf32>
    tpu.vector_store %arg24[%c0_131, %c0_132, %c0_133], %199 {strides = array<i32>} : memref<1x1x256xf32, #tpu.memory_space<vmem>>, vector<1x1x256xf32>,
    return
  }
  func.func @transform_0(%arg0: i32) -> (i32, i32, i32) {
    %c0_i32 = arith.constant 0 : i32
    %c0_i32_0 = arith.constant 0 : i32
    %c0_i32_1 = arith.constant 0 : i32
    return %arg0, %c0_i32, %c0_i32_0 : i32, i32, i32
  }
  func.func @transform_1(%arg0: i32) -> (i32, i32) {
    %c0_i32 = arith.constant 0 : i32
    %c0_i32_0 = arith.constant 0 : i32
    %c0_i32_1 = arith.constant 0 : i32
    return %c0_i32, %c0_i32_0 : i32, i32
  }
  func.func @transform_2(%arg0: i32) -> (i32, i32) {
    %c0_i32 = arith.constant 0 : i32
    %c0_i32_0 = arith.constant 0 : i32
    %c0_i32_1 = arith.constant 0 : i32
    return %c0_i32, %c0_i32_0 : i32, i32
  }
  func.func @transform_3(%arg0: i32) -> (i32, i32) {
    %c0_i32 = arith.constant 0 : i32
    %c0_i32_0 = arith.constant 0 : i32
    %c0_i32_1 = arith.constant 0 : i32
    return %c0_i32, %c0_i32_0 : i32, i32
  }
  func.func @transform_4(%arg0: i32) -> (i32, i32) {
    %c0_i32 = arith.constant 0 : i32
    %c0_i32_0 = arith.constant 0 : i32
    %c0_i32_1 = arith.constant 0 : i32
    return %c0_i32, %c0_i32_0 : i32, i32
  }
  func.func @transform_5(%arg0: i32) -> (i32, i32, i32) {
    %c0_i32 = arith.constant 0 : i32
    %c0_i32_0 = arith.constant 0 : i32
    %c0_i32_1 = arith.constant 0 : i32
    %c0_i32_2 = arith.constant 0 : i32
    return %c0_i32, %c0_i32_0, %c0_i32_1 : i32, i32, i32
  }
  func.func @transform_6(%arg0: i32) -> (i32, i32) {
    %c0_i32 = arith.constant 0 : i32
    %c0_i32_0 = arith.constant 0 : i32
    %c0_i32_1 = arith.constant 0 : i32
    return %c0_i32, %c0_i32_0 : i32, i32
  }
  func.func @transform_7(%arg0: i32) -> (i32, i32) {
    %c0_i32 = arith.constant 0 : i32
    %c0_i32_0 = arith.constant 0 : i32
    %c0_i32_1 = arith.constant 0 : i32
    return %c0_i32, %c0_i32_0 : i32, i32
  }
  func.func @transform_8(%arg0: i32) -> (i32, i32) {
    %c0_i32 = arith.constant 0 : i32
    %c0_i32_0 = arith.constant 0 : i32
    %c0_i32_1 = arith.constant 0 : i32
    return %c0_i32, %c0_i32_0 : i32, i32
  }
  func.func @transform_9(%arg0: i32) -> (i32, i32) {
    %c0_i32 = arith.constant 0 : i32
    %c0_i32_0 = arith.constant 0 : i32
    %c0_i32_1 = arith.constant 0 : i32
    return %c0_i32, %c0_i32_0 : i32, i32
  }
  func.func @transform_10(%arg0: i32) -> (i32, i32, i32) {
    %c0_i32 = arith.constant 0 : i32
    %c0_i32_0 = arith.constant 0 : i32
    %c0_i32_1 = arith.constant 0 : i32
    %c0_i32_2 = arith.constant 0 : i32
    return %c0_i32, %c0_i32_0, %c0_i32_1 : i32, i32, i32
  }
  func.func @transform_11(%arg0: i32) -> (i32, i32) {
    %c0_i32 = arith.constant 0 : i32
    %c0_i32_0 = arith.constant 0 : i32
    %c0_i32_1 = arith.constant 0 : i32
    return %c0_i32, %c0_i32_0 : i32, i32
  }
  func.func @transform_12(%arg0: i32) -> (i32, i32) {
    %c0_i32 = arith.constant 0 : i32
    %c0_i32_0 = arith.constant 0 : i32
    %c0_i32_1 = arith.constant 0 : i32
    return %c0_i32, %c0_i32_0 : i32, i32
  }
  func.func @transform_13(%arg0: i32) -> (i32, i32) {
    %c0_i32 = arith.constant 0 : i32
    %c0_i32_0 = arith.constant 0 : i32
    %c0_i32_1 = arith.constant 0 : i32
    return %c0_i32, %c0_i32_0 : i32, i32
  }
  func.func @transform_14(%arg0: i32) -> (i32, i32) {
    %c0_i32 = arith.constant 0 : i32
    %c0_i32_0 = arith.constant 0 : i32
    %c0_i32_1 = arith.constant 0 : i32
    return %c0_i32, %c0_i32_0 : i32, i32
  }
  func.func @transform_15(%arg0: i32) -> (i32, i32, i32) {
    %c0_i32 = arith.constant 0 : i32
    %c0_i32_0 = arith.constant 0 : i32
    %c0_i32_1 = arith.constant 0 : i32
    %c0_i32_2 = arith.constant 0 : i32
    return %c0_i32, %c0_i32_0, %c0_i32_1 : i32, i32, i32
  }
  func.func @transform_16(%arg0: i32) -> (i32, i32) {
    %c0_i32 = arith.constant 0 : i32
    %c0_i32_0 = arith.constant 0 : i32
    %c0_i32_1 = arith.constant 0 : i32
    return %c0_i32, %c0_i32_0 : i32, i32
  }
  func.func @transform_17(%arg0: i32) -> (i32, i32) {
    %c0_i32 = arith.constant 0 : i32
    %c0_i32_0 = arith.constant 0 : i32
    %c0_i32_1 = arith.constant 0 : i32
    return %c0_i32, %c0_i32_0 : i32, i32
  }
  func.func @transform_18(%arg0: i32) -> (i32, i32) {
    %c0_i32 = arith.constant 0 : i32
    %c0_i32_0 = arith.constant 0 : i32
    %c0_i32_1 = arith.constant 0 : i32
    return %c0_i32, %c0_i32_0 : i32, i32
  }
  func.func @transform_19(%arg0: i32) -> (i32, i32) {
    %c0_i32 = arith.constant 0 : i32
    %c0_i32_0 = arith.constant 0 : i32
    %c0_i32_1 = arith.constant 0 : i32
    return %c0_i32, %c0_i32_0 : i32, i32
  }
  func.func @transform_20(%arg0: i32) -> (i32, i32, i32) {
    %c0_i32 = arith.constant 0 : i32
    %c0_i32_0 = arith.constant 0 : i32
    %c0_i32_1 = arith.constant 0 : i32
    return %arg0, %c0_i32, %c0_i32_0 : i32, i32, i32
  }
  func.func @transform_21(%arg0: i32) -> (i32, i32, i32) {
    %c0_i32 = arith.constant 0 : i32
    %c0_i32_0 = arith.constant 0 : i32
    %c0_i32_1 = arith.constant 0 : i32
    return %arg0, %c0_i32, %c0_i32_0 : i32, i32, i32
  }
  func.func @transform_22(%arg0: i32) -> (i32, i32, i32) {
    %c0_i32 = arith.constant 0 : i32
    %c0_i32_0 = arith.constant 0 : i32
    %c0_i32_1 = arith.constant 0 : i32
    return %arg0, %c0_i32, %c0_i32_0 : i32, i32, i32
  }
  func.func @transform_23(%arg0: i32) -> (i32, i32, i32) {
    %c0_i32 = arith.constant 0 : i32
    %c0_i32_0 = arith.constant 0 : i32
    %c0_i32_1 = arith.constant 0 : i32
    return %arg0, %c0_i32, %c0_i32_0 : i32, i32, i32
  }
}

</mosaic_0001>

<llo_original>
// kernel: encoder_forward.1
$region0: #{encoder_forward.1}
  #allocation0 [shape = 'u32[]', space=smem, size = 0x4, offset = 0x4, fixed_abs, tag = 'smem constant byte address 0x4 - core index']
  #allocation1 [shape = 'u32[144,128]{1,0:T(1,128)}', space=vmem, size = 0x12000, scoped, tag = 'internal scratch']
  %s0 = inlined_call_operand.vmem [shape: f32[2,64,128], index: 0, kind: input, shape index: {}]
  %s1 = inlined_call_operand.vmem [shape: bf16[128,32], index: 1, kind: input, shape index: {}]
  %s2 = inlined_call_operand.vmem [shape: f32[1,32], index: 2, kind: input, shape index: {}]
  %s3 = inlined_call_operand.vmem [shape: f32[1,32], index: 3, kind: input, shape index: {}]
  %s4 = inlined_call_operand.vmem [shape: f32[1,32], index: 4, kind: input, shape index: {}]
  %s5 = inlined_call_operand.vmem [shape: bf16[4,16,64], index: 5, kind: input, shape index: {}]
  %s6 = inlined_call_operand.vmem [shape: f32[1,32], index: 6, kind: input, shape index: {}]
  %s7 = inlined_call_operand.vmem [shape: f32[1,32], index: 7, kind: input, shape index: {}]
  %s8 = inlined_call_operand.vmem [shape: bf16[128,64], index: 8, kind: input, shape index: {}]
  %s9 = inlined_call_operand.vmem [shape: f32[1,64], index: 9, kind: input, shape index: {}]
  %s10 = inlined_call_operand.vmem [shape: bf16[4,4,16], index: 10, kind: input, shape index: {}]
  %s11 = inlined_call_operand.vmem [shape: f32[1,64], index: 11, kind: input, shape index: {}]
  %s12 = inlined_call_operand.vmem [shape: f32[1,64], index: 12, kind: input, shape index: {}]
  %s13 = inlined_call_operand.vmem [shape: bf16[256,128], index: 13, kind: input, shape index: {}]
  %s14 = inlined_call_operand.vmem [shape: f32[1,128], index: 14, kind: input, shape index: {}]
  %s15 = inlined_call_operand.vmem [shape: bf16[4,1,4], index: 15, kind: input, shape index: {}]
  %s16 = inlined_call_operand.vmem [shape: f32[1,128], index: 16, kind: input, shape index: {}]
  %s17 = inlined_call_operand.vmem [shape: f32[1,128], index: 17, kind: input, shape index: {}]
  %s18 = inlined_call_operand.vmem [shape: bf16[512,256], index: 18, kind: input, shape index: {}]
  %s19 = inlined_call_operand.vmem [shape: f32[1,256], index: 19, kind: input, shape index: {}]
  %s20 = inlined_call_operand.hbm [shape: f32[2,64,32], index: 20, kind: output, shape index: {0}]
  %s21 = inlined_call_operand.hbm [shape: f32[2,16,64], index: 21, kind: output, shape index: {1}]
  %s22 = inlined_call_operand.hbm [shape: f32[2,4,128], index: 22, kind: output, shape index: {2}]
  %s23 = inlined_call_operand.hbm [shape: f32[2,1,256], index: 23, kind: output, shape index: {3}]
  %24 = xla_tuple %s20, %s21, %s22, %s23
  %s25 = sld [smem:[#allocation0]]
  $region137: #{encoder_forward.1} parent=0
    _
  %s27 = ssub.s32 1, %s25
  %s28 = scalar_select 0, %s27, %s25
  $region1: #{encoder_forward.1} parent=0
    #allocation2 [shape = 'u8[65536]{0}', space=vmem, size = 0x10000, scoped, tag = 'output window, operand 0']
    #allocation3 [shape = 's32[2]{0}', space=sflag, size = 0x8, scoped, tag = 'scoped memory for encoder_forward.1']
    #allocation4 [shape = 'u8[16384]{0}', space=vmem, size = 0x4000, scoped, tag = 'output window, operand 1']
    #allocation5 [shape = 's32[2]{0}', space=sflag, size = 0x8, scoped, tag = 'scoped memory for encoder_forward.1']
    #allocation6 [shape = 'u8[4096]{0}', space=vmem, size = 0x1000, scoped, tag = 'output window, operand 2']
    #allocation7 [shape = 'u8[2048]{0}', space=vmem, size = 0x800, scoped, tag = 'output window, operand 3']
    #allocation8 [shape = 's32[2]{0}', space=sflag, size = 0x8, scoped, tag = 'scoped memory for encoder_forward.1']
    %29 = vsyncpa [#allocation3], 0
    %s30 = scalar_lea.sflag [#allocation3], 1
    %31 = vsyncpa %s30, 0
    %32 = vsyncpa [#allocation5], 0
    %s33 = scalar_lea.sflag [#allocation5], 1
    %34 = vsyncpa %s33, 0
    %35 = vsyncpa [#allocation8], 0
    %s36 = scalar_lea.sflag [#allocation8], 1
    %37 = vsyncpa %s36, 0
    loop: start=0, step=1, limit=4
    $region2: #{encoder_forward.1} parent=1 // loop_pre_header
      _
    $region3: #{encoder_forward.1} parent=1 // loop_header
      %s39 = sphi 0, %s43
      %p40 = scmp.ge.s32.totalorder %s39, 4
      %s49 = sphi 0, %s51
      %s52 = sphi 0, %s49
      %s53 = sphi 0, %s52
      %s69 = sphi 0, %s53
      %s73 = sphi 0, %s73
      %s75 = sphi 0, %s73
      %s76 = sphi 0, %s75
      %s90 = sphi 0, %s76
      %s94 = sphi 0, %s94
      %s96 = sphi 0, %s94
      %s97 = sphi 0, %s96
      %s111 = sphi 0, %s97
      %s115 = sphi 0, %s115
      %s117 = sphi 0, %s115
      %s118 = sphi 0, %s117
      %s132 = sphi 0, %s118
      %s136 = sphi 0, %s136
      %s138 = sphi 0, %s136
      %s139 = sphi 0, %s138
      %s153 = sphi 0, %s139
      %s157 = sphi 0, %s157
      %s159 = sphi 0, %s157
      %s160 = sphi 0, %s159
      %s174 = sphi 0, %s160
      %s178 = sphi 0, %s178
      %s180 = sphi 0, %s178
      %s181 = sphi 0, %s180
      %s195 = sphi 0, %s181
      %s199 = sphi 0, %s199
      %s201 = sphi 0, %s199
      %s202 = sphi 0, %s201
      %s216 = sphi 0, %s202
      %s220 = sphi 0, %s220
      %s222 = sphi 0, %s220
      %s223 = sphi 0, %s222
      %s237 = sphi 0, %s223
      %s241 = sphi 0, %s241
      %s243 = sphi 0, %s241
      %s244 = sphi 0, %s243
      %s258 = sphi 0, %s244
      %s262 = sphi 0, %s262
      %s264 = sphi 0, %s262
      %s265 = sphi 0, %s264
      %s279 = sphi 0, %s265
      %s283 = sphi 0, %s283
      %s285 = sphi 0, %s283
      %s286 = sphi 0, %s285
      %s300 = sphi 0, %s286
      %s304 = sphi 0, %s304
      %s306 = sphi 0, %s304
      %s307 = sphi 0, %s306
      %s321 = sphi 0, %s307
      %s325 = sphi 0, %s325
      %s327 = sphi 0, %s325
      %s328 = sphi 0, %s327
      %s342 = sphi 0, %s328
      %s346 = sphi 0, %s346
      %s348 = sphi 0, %s346
      %s349 = sphi 0, %s348
      %s363 = sphi 0, %s349
      %s367 = sphi 0, %s367
      %s369 = sphi 0, %s367
      %s370 = sphi 0, %s369
      %s384 = sphi 0, %s370
      %s388 = sphi 0, %s388
      %s390 = sphi 0, %s388
      %s391 = sphi 0, %s390
      %s405 = sphi 0, %s391
      %s409 = sphi 0, %s409
      %s411 = sphi 0, %s409
      %s412 = sphi 0, %s411
      %s426 = sphi 0, %s412
      %s430 = sphi 0, %s430
      %s432 = sphi 0, %s430
      %s433 = sphi 0, %s432
      %s447 = sphi 0, %s433
      %s451 = sphi 0, %s451
      %s453 = sphi 0, %s451
      %s454 = sphi 0, %s453
      %s468 = sphi 0, %s454
      %s474 = sphi 0, %s476
      %s477 = sphi 0, %s474
      %s478 = sphi 0, %s477
      %s494 = sphi 0, %s478
      %s500 = sphi 0, %s502
      %s503 = sphi 0, %s500
      %s504 = sphi 0, %s503
      %s520 = sphi 0, %s504
      %s526 = sphi 0, %s528
      %s529 = sphi 0, %s526
      %s530 = sphi 0, %s529
      %s546 = sphi 0, %s530
      %s552 = sphi 0, %s554
      %s555 = sphi 0, %s552
      %s556 = sphi 0, %s555
      %s572 = sphi 0, %s556
    $region4: #{encoder_forward.1} parent=1 // loop_header_branch
      %42 = sbr.rel (%p40) target = $region8
    $region5: #{encoder_forward.1} parent=1 // loop_body
      %s44 = ssub.s32 %s39, 1
      %s45 = ssub.s32 %s39, 2
      %s46 = sadd.s32 %s39, 1
      %s47 = ssub.s32 %s39, %s46
      %p48 = scmp.eq.s32.totalorder %s47, 0
      %s50 = sadd.s32 %s49, 1
      %s51 = scalar_select %p48, %s49, %s50
      %p54 = pneg %p48
      %p55 = scmp.eq.s32.totalorder %s39, 1
      %p56 = por %p54, %p55
      %p57 = scmp.ne.s32.totalorder %s49, %s52
      %p58 = scmp.eq.s32.totalorder %s39, 0
      %p59 = por %p57, %p58
      %p60 = scmp.ne.s32.totalorder %s49, %s52
      %p61 = scmp.eq.s32.totalorder %s44, 1
      %p62 = por %p60, %p61
      %p63 = scmp.ne.s32.totalorder %s52, %s53
      %p64 = scmp.eq.s32.totalorder %s44, 0
      %p65 = por %p63, %p64
      %p66 = scmp.ne.s32.totalorder %s52, %s53
      %p67 = scmp.eq.s32.totalorder %s45, 1
      %p68 = por %p66, %p67
      %p70 = scmp.ne.s32.totalorder %s53, %s69
      %p71 = scmp.eq.s32.totalorder %s45, 0
      %p72 = por %p70, %p71
      %s74 = sadd.s32 %s73, 1
      %p77 = scmp.eq.s32.totalorder %s39, 1
      %p78 = scmp.ne.s32.totalorder %s73, %s75
      %p79 = scmp.eq.s32.totalorder %s39, 0
      %p80 = por %p78, %p79
      %p81 = scmp.ne.s32.totalorder %s73, %s75
      %p82 = scmp.eq.s32.totalorder %s44, 1
      %p83 = por %p81, %p82
      %p84 = scmp.ne.s32.totalorder %s75, %s76
      %p85 = scmp.eq.s32.totalorder %s44, 0
      %p86 = por %p84, %p85
      %p87 = scmp.ne.s32.totalorder %s75, %s76
      %p88 = scmp.eq.s32.totalorder %s45, 1
      %p89 = por %p87, %p88
      %p91 = scmp.ne.s32.totalorder %s76, %s90
      %p92 = scmp.eq.s32.totalorder %s45, 0
      %p93 = por %p91, %p92
      %s95 = sadd.s32 %s94, 1
      %p98 = scmp.eq.s32.totalorder %s39, 1
      %p99 = scmp.ne.s32.totalorder %s94, %s96
      %p100 = scmp.eq.s32.totalorder %s39, 0
      %p101 = por %p99, %p100
      %p102 = scmp.ne.s32.totalorder %s94, %s96
      %p103 = scmp.eq.s32.totalorder %s44, 1
      %p104 = por %p102, %p103
      %p105 = scmp.ne.s32.totalorder %s96, %s97
      %p106 = scmp.eq.s32.totalorder %s44, 0
      %p107 = por %p105, %p106
      %p108 = scmp.ne.s32.totalorder %s96, %s97
      %p109 = scmp.eq.s32.totalorder %s45, 1
      %p110 = por %p108, %p109
      %p112 = scmp.ne.s32.totalorder %s97, %s111
      %p113 = scmp.eq.s32.totalorder %s45, 0
      %p114 = por %p112, %p113
      %s116 = sadd.s32 %s115, 1
      %p119 = scmp.eq.s32.totalorder %s39, 1
      %p120 = scmp.ne.s32.totalorder %s115, %s117
      %p121 = scmp.eq.s32.totalorder %s39, 0
      %p122 = por %p120, %p121
      %p123 = scmp.ne.s32.totalorder %s115, %s117
      %p124 = scmp.eq.s32.totalorder %s44, 1
      %p125 = por %p123, %p124
      %p126 = scmp.ne.s32.totalorder %s117, %s118
      %p127 = scmp.eq.s32.totalorder %s44, 0
      %p128 = por %p126, %p127
      %p129 = scmp.ne.s32.totalorder %s117, %s118
      %p130 = scmp.eq.s32.totalorder %s45, 1
      %p131 = por %p129, %p130
      %p133 = scmp.ne.s32.totalorder %s118, %s132
      %p134 = scmp.eq.s32.totalorder %s45, 0
      %p135 = por %p133, %p134
      %s137 = sadd.s32 %s136, 1
      %p140 = scmp.eq.s32.totalorder %s39, 1
      %p141 = scmp.ne.s32.totalorder %s136, %s138
      %p142 = scmp.eq.s32.totalorder %s39, 0
      %p143 = por %p141, %p142
      %p144 = scmp.ne.s32.totalorder %s136, %s138
      %p145 = scmp.eq.s32.totalorder %s44, 1
      %p146 = por %p144, %p145
      %p147 = scmp.ne.s32.totalorder %s138, %s139
      %p148 = scmp.eq.s32.totalorder %s44, 0
      %p149 = por %p147, %p148
      %p150 = scmp.ne.s32.totalorder %s138, %s139
      %p151 = scmp.eq.s32.totalorder %s45, 1
      %p152 = por %p150, %p151
      %p154 = scmp.ne.s32.totalorder %s139, %s153
      %p155 = scmp.eq.s32.totalorder %s45, 0
      %p156 = por %p154, %p155
      %s158 = sadd.s32 %s157, 1
      %p161 = scmp.eq.s32.totalorder %s39, 1
      %p162 = scmp.ne.s32.totalorder %s157, %s159
      %p163 = scmp.eq.s32.totalorder %s39, 0
      %p164 = por %p162, %p163
      %p165 = scmp.ne.s32.totalorder %s157, %s159
      %p166 = scmp.eq.s32.totalorder %s44, 1
      %p167 = por %p165, %p166
      %p168 = scmp.ne.s32.totalorder %s159, %s160
      %p169 = scmp.eq.s32.totalorder %s44, 0
      %p170 = por %p168, %p169
      %p171 = scmp.ne.s32.totalorder %s159, %s160
      %p172 = scmp.eq.s32.totalorder %s45, 1
      %p173 = por %p171, %p172
      %p175 = scmp.ne.s32.totalorder %s160, %s174
      %p176 = scmp.eq.s32.totalorder %s45, 0
      %p177 = por %p175, %p176
      %s179 = sadd.s32 %s178, 1
      %p182 = scmp.eq.s32.totalorder %s39, 1
      %p183 = scmp.ne.s32.totalorder %s178, %s180
      %p184 = scmp.eq.s32.totalorder %s39, 0
      %p185 = por %p183, %p184
      %p186 = scmp.ne.s32.totalorder %s178, %s180
      %p187 = scmp.eq.s32.totalorder %s44, 1
      %p188 = por %p186, %p187
      %p189 = scmp.ne.s32.totalorder %s180, %s181
      %p190 = scmp.eq.s32.totalorder %s44, 0
      %p191 = por %p189, %p190
      %p192 = scmp.ne.s32.totalorder %s180, %s181
      %p193 = scmp.eq.s32.totalorder %s45, 1
      %p194 = por %p192, %p193
      %p196 = scmp.ne.s32.totalorder %s181, %s195
      %p197 = scmp.eq.s32.totalorder %s45, 0
      %p198 = por %p196, %p197
      %s200 = sadd.s32 %s199, 1
      %p203 = scmp.eq.s32.totalorder %s39, 1
      %p204 = scmp.ne.s32.totalorder %s199, %s201
      %p205 = scmp.eq.s32.totalorder %s39, 0
      %p206 = por %p204, %p205
      %p207 = scmp.ne.s32.totalorder %s199, %s201
      %p208 = scmp.eq.s32.totalorder %s44, 1
      %p209 = por %p207, %p208
      %p210 = scmp.ne.s32.totalorder %s201, %s202
      %p211 = scmp.eq.s32.totalorder %s44, 0
      %p212 = por %p210, %p211
      %p213 = scmp.ne.s32.totalorder %s201, %s202
      %p214 = scmp.eq.s32.totalorder %s45, 1
      %p215 = por %p213, %p214
      %p217 = scmp.ne.s32.totalorder %s202, %s216
      %p218 = scmp.eq.s32.totalorder %s45, 0
      %p219 = por %p217, %p218
      %s221 = sadd.s32 %s220, 1
      %p224 = scmp.eq.s32.totalorder %s39, 1
      %p225 = scmp.ne.s32.totalorder %s220, %s222
      %p226 = scmp.eq.s32.totalorder %s39, 0
      %p227 = por %p225, %p226
      %p228 = scmp.ne.s32.totalorder %s220, %s222
      %p229 = scmp.eq.s32.totalorder %s44, 1
      %p230 = por %p228, %p229
      %p231 = scmp.ne.s32.totalorder %s222, %s223
      %p232 = scmp.eq.s32.totalorder %s44, 0
      %p233 = por %p231, %p232
      %p234 = scmp.ne.s32.totalorder %s222, %s223
      %p235 = scmp.eq.s32.totalorder %s45, 1
      %p236 = por %p234, %p235
      %p238 = scmp.ne.s32.totalorder %s223, %s237
      %p239 = scmp.eq.s32.totalorder %s45, 0
      %p240 = por %p238, %p239
      %s242 = sadd.s32 %s241, 1
      %p245 = scmp.eq.s32.totalorder %s39, 1
      %p246 = scmp.ne.s32.totalorder %s241, %s243
      %p247 = scmp.eq.s32.totalorder %s39, 0
      %p248 = por %p246, %p247
      %p249 = scmp.ne.s32.totalorder %s241, %s243
      %p250 = scmp.eq.s32.totalorder %s44, 1
      %p251 = por %p249, %p250
      %p252 = scmp.ne.s32.totalorder %s243, %s244
      %p253 = scmp.eq.s32.totalorder %s44, 0
      %p254 = por %p252, %p253
      %p255 = scmp.ne.s32.totalorder %s243, %s244
      %p256 = scmp.eq.s32.totalorder %s45, 1
      %p257 = por %p255, %p256
      %p259 = scmp.ne.s32.totalorder %s244, %s258
      %p260 = scmp.eq.s32.totalorder %s45, 0
      %p261 = por %p259, %p260
      %s263 = sadd.s32 %s262, 1
      %p266 = scmp.eq.s32.totalorder %s39, 1
      %p267 = scmp.ne.s32.totalorder %s262, %s264
      %p268 = scmp.eq.s32.totalorder %s39, 0
      %p269 = por %p267, %p268
      %p270 = scmp.ne.s32.totalorder %s262, %s264
      %p271 = scmp.eq.s32.totalorder %s44, 1
      %p272 = por %p270, %p271
      %p273 = scmp.ne.s32.totalorder %s264, %s265
      %p274 = scmp.eq.s32.totalorder %s44, 0
      %p275 = por %p273, %p274
      %p276 = scmp.ne.s32.totalorder %s264, %s265
      %p277 = scmp.eq.s32.totalorder %s45, 1
      %p278 = por %p276, %p277
      %p280 = scmp.ne.s32.totalorder %s265, %s279
      %p281 = scmp.eq.s32.totalorder %s45, 0
      %p282 = por %p280, %p281
      %s284 = sadd.s32 %s283, 1
      %p287 = scmp.eq.s32.totalorder %s39, 1
      %p288 = scmp.ne.s32.totalorder %s283, %s285
      %p289 = scmp.eq.s32.totalorder %s39, 0
      %p290 = por %p288, %p289
      %p291 = scmp.ne.s32.totalorder %s283, %s285
      %p292 = scmp.eq.s32.totalorder %s44, 1
      %p293 = por %p291, %p292
      %p294 = scmp.ne.s32.totalorder %s285, %s286
      %p295 = scmp.eq.s32.totalorder %s44, 0
      %p296 = por %p294, %p295
      %p297 = scmp.ne.s32.totalorder %s285, %s286
      %p298 = scmp.eq.s32.totalorder %s45, 1
      %p299 = por %p297, %p298
      %p301 = scmp.ne.s32.totalorder %s286, %s300
      %p302 = scmp.eq.s32.totalorder %s45, 0
      %p303 = por %p301, %p302
      %s305 = sadd.s32 %s304, 1
      %p308 = scmp.eq.s32.totalorder %s39, 1
      %p309 = scmp.ne.s32.totalorder %s304, %s306
      %p310 = scmp.eq.s32.totalorder %s39, 0
      %p311 = por %p309, %p310
      %p312 = scmp.ne.s32.totalorder %s304, %s306
      %p313 = scmp.eq.s32.totalorder %s44, 1
      %p314 = por %p312, %p313
      %p315 = scmp.ne.s32.totalorder %s306, %s307
      %p316 = scmp.eq.s32.totalorder %s44, 0
      %p317 = por %p315, %p316
      %p318 = scmp.ne.s32.totalorder %s306, %s307
      %p319 = scmp.eq.s32.totalorder %s45, 1
      %p320 = por %p318, %p319
      %p322 = scmp.ne.s32.totalorder %s307, %s321
      %p323 = scmp.eq.s32.totalorder %s45, 0
      %p324 = por %p322, %p323
      %s326 = sadd.s32 %s325, 1
      %p329 = scmp.eq.s32.totalorder %s39, 1
      %p330 = scmp.ne.s32.totalorder %s325, %s327
      %p331 = scmp.eq.s32.totalorder %s39, 0
      %p332 = por %p330, %p331
      %p333 = scmp.ne.s32.totalorder %s325, %s327
      %p334 = scmp.eq.s32.totalorder %s44, 1
      %p335 = por %p333, %p334
      %p336 = scmp.ne.s32.totalorder %s327, %s328
      %p337 = scmp.eq.s32.totalorder %s44, 0
      %p338 = por %p336, %p337
      %p339 = scmp.ne.s32.totalorder %s327, %s328
      %p340 = scmp.eq.s32.totalorder %s45, 1
      %p341 = por %p339, %p340
      %p343 = scmp.ne.s32.totalorder %s328, %s342
      %p344 = scmp.eq.s32.totalorder %s45, 0
      %p345 = por %p343, %p344
      %s347 = sadd.s32 %s346, 1
      %p350 = scmp.eq.s32.totalorder %s39, 1
      %p351 = scmp.ne.s32.totalorder %s346, %s348
      %p352 = scmp.eq.s32.totalorder %s39, 0
      %p353 = por %p351, %p352
      %p354 = scmp.ne.s32.totalorder %s346, %s348
      %p355 = scmp.eq.s32.totalorder %s44, 1
      %p356 = por %p354, %p355
      %p357 = scmp.ne.s32.totalorder %s348, %s349
      %p358 = scmp.eq.s32.totalorder %s44, 0
      %p359 = por %p357, %p358
      %p360 = scmp.ne.s32.totalorder %s348, %s349
      %p361 = scmp.eq.s32.totalorder %s45, 1
      %p362 = por %p360, %p361
      %p364 = scmp.ne.s32.totalorder %s349, %s363
      %p365 = scmp.eq.s32.totalorder %s45, 0
      %p366 = por %p364, %p365
      %s368 = sadd.s32 %s367, 1
      %p371 = scmp.eq.s32.totalorder %s39, 1
      %p372 = scmp.ne.s32.totalorder %s367, %s369
      %p373 = scmp.eq.s32.totalorder %s39, 0
      %p374 = por %p372, %p373
      %p375 = scmp.ne.s32.totalorder %s367, %s369
      %p376 = scmp.eq.s32.totalorder %s44, 1
      %p377 = por %p375, %p376
      %p378 = scmp.ne.s32.totalorder %s369, %s370
      %p379 = scmp.eq.s32.totalorder %s44, 0
      %p380 = por %p378, %p379
      %p381 = scmp.ne.s32.totalorder %s369, %s370
      %p382 = scmp.eq.s32.totalorder %s45, 1
      %p383 = por %p381, %p382
      %p385 = scmp.ne.s32.totalorder %s370, %s384
      %p386 = scmp.eq.s32.totalorder %s45, 0
      %p387 = por %p385, %p386
      %s389 = sadd.s32 %s388, 1
      %p392 = scmp.eq.s32.totalorder %s39, 1
      %p393 = scmp.ne.s32.totalorder %s388, %s390
      %p394 = scmp.eq.s32.totalorder %s39, 0
      %p395 = por %p393, %p394
      %p396 = scmp.ne.s32.totalorder %s388, %s390
      %p397 = scmp.eq.s32.totalorder %s44, 1
      %p398 = por %p396, %p397
      %p399 = scmp.ne.s32.totalorder %s390, %s391
      %p400 = scmp.eq.s32.totalorder %s44, 0
      %p401 = por %p399, %p400
      %p402 = scmp.ne.s32.totalorder %s390, %s391
      %p403 = scmp.eq.s32.totalorder %s45, 1
      %p404 = por %p402, %p403
      %p406 = scmp.ne.s32.totalorder %s391, %s405
      %p407 = scmp.eq.s32.totalorder %s45, 0
      %p408 = por %p406, %p407
      %s410 = sadd.s32 %s409, 1
      %p413 = scmp.eq.s32.totalorder %s39, 1
      %p414 = scmp.ne.s32.totalorder %s409, %s411
      %p415 = scmp.eq.s32.totalorder %s39, 0
      %p416 = por %p414, %p415
      %p417 = scmp.ne.s32.totalorder %s409, %s411
      %p418 = scmp.eq.s32.totalorder %s44, 1
      %p419 = por %p417, %p418
      %p420 = scmp.ne.s32.totalorder %s411, %s412
      %p421 = scmp.eq.s32.totalorder %s44, 0
      %p422 = por %p420, %p421
      %p423 = scmp.ne.s32.totalorder %s411, %s412
      %p424 = scmp.eq.s32.totalorder %s45, 1
      %p425 = por %p423, %p424
      %p427 = scmp.ne.s32.totalorder %s412, %s426
      %p428 = scmp.eq.s32.totalorder %s45, 0
      %p429 = por %p427, %p428
      %s431 = sadd.s32 %s430, 1
      %p434 = scmp.eq.s32.totalorder %s39, 1
      %p435 = scmp.ne.s32.totalorder %s430, %s432
      %p436 = scmp.eq.s32.totalorder %s39, 0
      %p437 = por %p435, %p436
      %p438 = scmp.ne.s32.totalorder %s430, %s432
      %p439 = scmp.eq.s32.totalorder %s44, 1
      %p440 = por %p438, %p439
      %p441 = scmp.ne.s32.totalorder %s432, %s433
      %p442 = scmp.eq.s32.totalorder %s44, 0
      %p443 = por %p441, %p442
      %p444 = scmp.ne.s32.totalorder %s432, %s433
      %p445 = scmp.eq.s32.totalorder %s45, 1
      %p446 = por %p444, %p445
      %p448 = scmp.ne.s32.totalorder %s433, %s447
      %p449 = scmp.eq.s32.totalorder %s45, 0
      %p450 = por %p448, %p449
      %s452 = sadd.s32 %s451, 1
      %p455 = scmp.eq.s32.totalorder %s39, 1
      %p456 = scmp.ne.s32.totalorder %s451, %s453
      %p457 = scmp.eq.s32.totalorder %s39, 0
      %p458 = por %p456, %p457
      %p459 = scmp.ne.s32.totalorder %s451, %s453
      %p460 = scmp.eq.s32.totalorder %s44, 1
      %p461 = por %p459, %p460
      %p462 = scmp.ne.s32.totalorder %s453, %s454
      %p463 = scmp.eq.s32.totalorder %s44, 0
      %p464 = por %p462, %p463
      %p465 = scmp.ne.s32.totalorder %s453, %s454
      %p466 = scmp.eq.s32.totalorder %s45, 1
      %p467 = por %p465, %p466
      %p469 = scmp.ne.s32.totalorder %s454, %s468
      %p470 = scmp.eq.s32.totalorder %s45, 0
      %p471 = por %p469, %p470
      %s472 = ssub.s32 %s39, %s46
      %p473 = scmp.eq.s32.totalorder %s472, 0
      %s475 = sadd.s32 %s474, 1
      %s476 = scalar_select %p473, %s474, %s475
      %p479 = pneg %p473
      %p480 = scmp.eq.s32.totalorder %s39, 1
      %p481 = por %p479, %p480
      %p482 = scmp.ne.s32.totalorder %s474, %s477
      %p483 = scmp.eq.s32.totalorder %s39, 0
      %p484 = por %p482, %p483
      %p485 = scmp.ne.s32.totalorder %s474, %s477
      %p486 = scmp.eq.s32.totalorder %s44, 1
      %p487 = por %p485, %p486
      %p488 = scmp.ne.s32.totalorder %s477, %s478
      %p489 = scmp.eq.s32.totalorder %s44, 0
      %p490 = por %p488, %p489
      %p491 = scmp.ne.s32.totalorder %s477, %s478
      %p492 = scmp.eq.s32.totalorder %s45, 1
      %p493 = por %p491, %p492
      %p495 = scmp.ne.s32.totalorder %s478, %s494
      %p496 = scmp.eq.s32.totalorder %s45, 0
      %p497 = por %p495, %p496
      %s498 = ssub.s32 %s39, %s46
      %p499 = scmp.eq.s32.totalorder %s498, 0
      %s501 = sadd.s32 %s500, 1
      %s502 = scalar_select %p499, %s500, %s501
      %p505 = pneg %p499
      %p506 = scmp.eq.s32.totalorder %s39, 1
      %p507 = por %p505, %p506
      %p508 = scmp.ne.s32.totalorder %s500, %s503
      %p509 = scmp.eq.s32.totalorder %s39, 0
      %p510 = por %p508, %p509
      %p511 = scmp.ne.s32.totalorder %s500, %s503
      %p512 = scmp.eq.s32.totalorder %s44, 1
      %p513 = por %p511, %p512
      %p514 = scmp.ne.s32.totalorder %s503, %s504
      %p515 = scmp.eq.s32.totalorder %s44, 0
      %p516 = por %p514, %p515
      %p517 = scmp.ne.s32.totalorder %s503, %s504
      %p518 = scmp.eq.s32.totalorder %s45, 1
      %p519 = por %p517, %p518
      %p521 = scmp.ne.s32.totalorder %s504, %s520
      %p522 = scmp.eq.s32.totalorder %s45, 0
      %p523 = por %p521, %p522
      %s524 = ssub.s32 %s39, %s46
      %p525 = scmp.eq.s32.totalorder %s524, 0
      %s527 = sadd.s32 %s526, 1
      %s528 = scalar_select %p525, %s526, %s527
      %p531 = pneg %p525
      %p532 = scmp.eq.s32.totalorder %s39, 1
      %p533 = por %p531, %p532
      %p534 = scmp.ne.s32.totalorder %s526, %s529
      %p535 = scmp.eq.s32.totalorder %s39, 0
      %p536 = por %p534, %p535
      %p537 = scmp.ne.s32.totalorder %s526, %s529
      %p538 = scmp.eq.s32.totalorder %s44, 1
      %p539 = por %p537, %p538
      %p540 = scmp.ne.s32.totalorder %s529, %s530
      %p541 = scmp.eq.s32.totalorder %s44, 0
      %p542 = por %p540, %p541
      %p543 = scmp.ne.s32.totalorder %s529, %s530
      %p544 = scmp.eq.s32.totalorder %s45, 1
      %p545 = por %p543, %p544
      %p547 = scmp.ne.s32.totalorder %s530, %s546
      %p548 = scmp.eq.s32.totalorder %s45, 0
      %p549 = por %p547, %p548
      %s550 = ssub.s32 %s39, %s46
      %p551 = scmp.eq.s32.totalorder %s550, 0
      %s553 = sadd.s32 %s552, 1
      %s554 = scalar_select %p551, %s552, %s553
      %p557 = pneg %p551
      %p558 = scmp.eq.s32.totalorder %s39, 1
      %p559 = por %p557, %p558
      %p560 = scmp.ne.s32.totalorder %s552, %s555
      %p561 = scmp.eq.s32.totalorder %s39, 0
      %p562 = por %p560, %p561
      %p563 = scmp.ne.s32.totalorder %s552, %s555
      %p564 = scmp.eq.s32.totalorder %s44, 1
      %p565 = por %p563, %p564
      %p566 = scmp.ne.s32.totalorder %s555, %s556
      %p567 = scmp.eq.s32.totalorder %s44, 0
      %p568 = por %p566, %p567
      %p569 = scmp.ne.s32.totalorder %s555, %s556
      %p570 = scmp.eq.s32.totalorder %s45, 1
      %p571 = por %p569, %p570
      %p573 = scmp.ne.s32.totalorder %s556, %s572
      %p574 = scmp.eq.s32.totalorder %s45, 0
      %p575 = por %p573, %p574
      %p576 = scmp.le.s32.totalorder 1, %s39
      %p577 = scmp.lt.s32.totalorder %s39, 3
      %p578 = pnand %p576, %p577
      %p579 = pneg %p578
      // Predicated region
      $region9: #{encoder_forward.1} parent=5 // pred_check
        _
      $region10: #{encoder_forward.1} parent=5 // pred_check_branch
        %581 = sbr.rel (%p578) target = $region12
      $region11: #{encoder_forward.1} parent=5 // pred_region
        %s582 = ssub.s32 %s39, 1
        // Predicated region
        $region13: #{encoder_forward.1} parent=11 // pred_check
          %p583 = pneg %p86
        $region14: #{encoder_forward.1} parent=11 // pred_check_branch
          %585 = sbr.rel (%p583) target = $region16
        $region15: #{encoder_forward.1} parent=11 // pred_region
          _
        $region16: #{encoder_forward.1} parent=11 // pred_fallthru
          _
        // Predicated region
        $region17: #{encoder_forward.1} parent=11 // pred_check
          %p586 = pneg %p107
        $region18: #{encoder_forward.1} parent=11 // pred_check_branch
          %588 = sbr.rel (%p586) target = $region20
        $region19: #{encoder_forward.1} parent=11 // pred_region
          _
        $region20: #{encoder_forward.1} parent=11 // pred_fallthru
          _
        // Predicated region
        $region21: #{encoder_forward.1} parent=11 // pred_check
          %p589 = pneg %p128
        $region22: #{encoder_forward.1} parent=11 // pred_check_branch
          %591 = sbr.rel (%p589) target = $region24
        $region23: #{encoder_forward.1} parent=11 // pred_region
          _
        $region24: #{encoder_forward.1} parent=11 // pred_fallthru
          _
        // Predicated region
        $region25: #{encoder_forward.1} parent=11 // pred_check
          %p592 = pneg %p149
        $region26: #{encoder_forward.1} parent=11 // pred_check_branch
          %594 = sbr.rel (%p592) target = $region28
        $region27: #{encoder_forward.1} parent=11 // pred_region
          _
        $region28: #{encoder_forward.1} parent=11 // pred_fallthru
          _
        // Predicated region
        $region29: #{encoder_forward.1} parent=11 // pred_check
          %p595 = pneg %p170
        $region30: #{encoder_forward.1} parent=11 // pred_check_branch
          %597 = sbr.rel (%p595) target = $region32
        $region31: #{encoder_forward.1} parent=11 // pred_region
          _
        $region32: #{encoder_forward.1} parent=11 // pred_fallthru
          _
        // Predicated region
        $region33: #{encoder_forward.1} parent=11 // pred_check
          %p598 = pneg %p191
        $region34: #{encoder_forward.1} parent=11 // pred_check_branch
          %600 = sbr.rel (%p598) target = $region36
        $region35: #{encoder_forward.1} parent=11 // pred_region
          _
        $region36: #{encoder_forward.1} parent=11 // pred_fallthru
          _
        // Predicated region
        $region37: #{encoder_forward.1} parent=11 // pred_check
          %p601 = pneg %p212
        $region38: #{encoder_forward.1} parent=11 // pred_check_branch
          %603 = sbr.rel (%p601) target = $region40
        $region39: #{encoder_forward.1} parent=11 // pred_region
          _
        $region40: #{encoder_forward.1} parent=11 // pred_fallthru
          _
        // Predicated region
        $region41: #{encoder_forward.1} parent=11 // pred_check
          %p604 = pneg %p233
        $region42: #{encoder_forward.1} parent=11 // pred_check_branch
          %606 = sbr.rel (%p604) target = $region44
        $region43: #{encoder_forward.1} parent=11 // pred_region
          _
        $region44: #{encoder_forward.1} parent=11 // pred_fallthru
          _
        // Predicated region
        $region45: #{encoder_forward.1} parent=11 // pred_check
          %p607 = pneg %p254
        $region46: #{encoder_forward.1} parent=11 // pred_check_branch
          %609 = sbr.rel (%p607) target = $region48
        $region47: #{encoder_forward.1} parent=11 // pred_region
          _
        $region48: #{encoder_forward.1} parent=11 // pred_fallthru
          _
        // Predicated region
        $region49: #{encoder_forward.1} parent=11 // pred_check
          %p610 = pneg %p275
        $region50: #{encoder_forward.1} parent=11 // pred_check_branch
          %612 = sbr.rel (%p610) target = $region52
        $region51: #{encoder_forward.1} parent=11 // pred_region
          _
        $region52: #{encoder_forward.1} parent=11 // pred_fallthru
          _
        // Predicated region
        $region53: #{encoder_forward.1} parent=11 // pred_check
          %p613 = pneg %p296
        $region54: #{encoder_forward.1} parent=11 // pred_check_branch
          %615 = sbr.rel (%p613) target = $region56
        $region55: #{encoder_forward.1} parent=11 // pred_region
          _
        $region56: #{encoder_forward.1} parent=11 // pred_fallthru
          _
        // Predicated region
        $region57: #{encoder_forward.1} parent=11 // pred_check
          %p616 = pneg %p317
        $region58: #{encoder_forward.1} parent=11 // pred_check_branch
          %618 = sbr.rel (%p616) target = $region60
        $region59: #{encoder_forward.1} parent=11 // pred_region
          _
        $region60: #{encoder_forward.1} parent=11 // pred_fallthru
          _
        // Predicated region
        $region61: #{encoder_forward.1} parent=11 // pred_check
          %p619 = pneg %p338
        $region62: #{encoder_forward.1} parent=11 // pred_check_branch
          %621 = sbr.rel (%p619) target = $region64
        $region63: #{encoder_forward.1} parent=11 // pred_region
          _
        $region64: #{encoder_forward.1} parent=11 // pred_fallthru
          _
        // Predicated region
        $region65: #{encoder_forward.1} parent=11 // pred_check
          %p622 = pneg %p359
        $region66: #{encoder_forward.1} parent=11 // pred_check_branch
          %624 = sbr.rel (%p622) target = $region68
        $region67: #{encoder_forward.1} parent=11 // pred_region
          _
        $region68: #{encoder_forward.1} parent=11 // pred_fallthru
          _
        // Predicated region
        $region69: #{encoder_forward.1} parent=11 // pred_check
          %p625 = pneg %p380
        $region70: #{encoder_forward.1} parent=11 // pred_check_branch
          %627 = sbr.rel (%p625) target = $region72
        $region71: #{encoder_forward.1} parent=11 // pred_region
          _
        $region72: #{encoder_forward.1} parent=11 // pred_fallthru
          _
        // Predicated region
        $region73: #{encoder_forward.1} parent=11 // pred_check
          %p628 = pneg %p401
        $region74: #{encoder_forward.1} parent=11 // pred_check_branch
          %630 = sbr.rel (%p628) target = $region76
        $region75: #{encoder_forward.1} parent=11 // pred_region
          _
        $region76: #{encoder_forward.1} parent=11 // pred_fallthru
          _
        // Predicated region
        $region77: #{encoder_forward.1} parent=11 // pred_check
          %p631 = pneg %p422
        $region78: #{encoder_forward.1} parent=11 // pred_check_branch
          %633 = sbr.rel (%p631) target = $region80
        $region79: #{encoder_forward.1} parent=11 // pred_region
          _
        $region80: #{encoder_forward.1} parent=11 // pred_fallthru
          _
        // Predicated region
        $region81: #{encoder_forward.1} parent=11 // pred_check
          %p634 = pneg %p443
        $region82: #{encoder_forward.1} parent=11 // pred_check_branch
          %636 = sbr.rel (%p634) target = $region84
        $region83: #{encoder_forward.1} parent=11 // pred_region
          _
        $region84: #{encoder_forward.1} parent=11 // pred_fallthru
          _
        // Predicated region
        $region85: #{encoder_forward.1} parent=11 // pred_check
          %p637 = pneg %p464
        $region86: #{encoder_forward.1} parent=11 // pred_check_branch
          %639 = sbr.rel (%p637) target = $region88
        $region87: #{encoder_forward.1} parent=11 // pred_region
          _
        $region88: #{encoder_forward.1} parent=11 // pred_fallthru
          _
      $region12: #{encoder_forward.1} parent=5 // pred_fallthru
        _
      %p640 = scmp.lt.s32.totalorder %s39, 2
      // Predicated region
      $region89: #{encoder_forward.1} parent=5 // pred_check
        %p641 = pneg %p640
      $region90: #{encoder_forward.1} parent=5 // pred_check_branch
        %643 = sbr.rel (%p641) target = $region92
      $region91: #{encoder_forward.1} parent=5 // pred_region
        // Predicated region
        $region93: #{encoder_forward.1} parent=91 // pred_check
          %p644 = pneg %p59
        $region94: #{encoder_forward.1} parent=91 // pred_check_branch
          %646 = sbr.rel (%p644) target = $region96
        $region95: #{encoder_forward.1} parent=91 // pred_region
          %p647 = scmp.lt.s32.totalorder %s39, 1
          %s648 = scalar_select %p647, %s39, 1
          %s649 = smul.addr %s648, 8
          %s650 = smul.addr %s649, 8
          %s651 = scalar_lea.vmem %s0, %s650
        $region96: #{encoder_forward.1} parent=91 // pred_fallthru
          _
      $region92: #{encoder_forward.1} parent=5 // pred_fallthru
        _
      %p652 = scmp.le.s32.totalorder 1, %s39
      %p653 = scmp.lt.s32.totalorder %s39, 3
      %p654 = pnand %p652, %p653
      %p655 = pneg %p654
      // Predicated region
      $region97: #{encoder_forward.1} parent=5 // pred_check
        _
      $region98: #{encoder_forward.1} parent=5 // pred_check_branch
        %657 = sbr.rel (%p654) target = $region100
      $region99: #{encoder_forward.1} parent=5 // pred_region
        %s658 = ssub.s32 %s39, 1
        %p659 = scmp.lt.s32.totalorder %s44, 1
        %s660 = scalar_select %p659, %s44, 1
        %s661 = smul.addr %s660, 8
        %s662 = smul.addr %s661, 8
        %s663 = scalar_lea.vmem %s0, %s662
        %p664 = pneg %p65
        %p665 = pneg %p62
        %p666 = pneg %p86
        %p667 = pneg %p83
        %p668 = pneg %p107
        %p669 = pneg %p104
        %p670 = pneg %p128
        %p671 = pneg %p125
        %p672 = pneg %p149
        %p673 = pneg %p146
        %p674 = pneg %p170
        %p675 = pneg %p167
        %p676 = pneg %p191
        %p677 = pneg %p188
        %p678 = pneg %p212
        %p679 = pneg %p209
        %p680 = pneg %p233
        %p681 = pneg %p230
        %p682 = pneg %p254
        %p683 = pneg %p251
        %p684 = pneg %p275
        %p685 = pneg %p272
        %p686 = pneg %p296
        %p687 = pneg %p293
        %p688 = pneg %p317
        %p689 = pneg %p314
        %p690 = pneg %p338
        %p691 = pneg %p335
        %p692 = pneg %p359
        %p693 = pneg %p356
        %p694 = pneg %p380
        %p695 = pneg %p377
        %p696 = pneg %p401
        %p697 = pneg %p398
        %p698 = pneg %p422
        %p699 = pneg %p419
        %p700 = pneg %p443
        %p701 = pneg %p440
        %p702 = pneg %p464
        %p703 = pneg %p461
        %p704 = pneg %p490
        %p705 = pneg %p487
        %s706 = sand.u32 %s477, 1
        %s707 = scalar_lea.sflag [#allocation3], %s706
        %s708 = sand.u32 %s477, 1
        %s709 = smul.addr %s708, 64
        %s710 = scalar_lea.vmem [#allocation2], %s709
        %p711 = pneg %p516
        %p712 = pneg %p513
        %s713 = sand.u32 %s44, 1
        %s714 = scalar_lea.sflag [#allocation5], %s713
        %s715 = sand.u32 %s503, 1
        %s716 = smul.addr %s715, 16
        %s717 = scalar_lea.vmem [#allocation4], %s716
        %p718 = pneg %p542
        %p719 = pneg %p539
        %s720 = sand.u32 %s44, 1
        %s721 = scalar_lea.sflag [#allocation5], %s720
        %s722 = sand.u32 %s529, 1
        %s723 = smul.addr %s722, 4
        %s724 = scalar_lea.vmem [#allocation6], %s723
        %p725 = pneg %p568
        %p726 = pneg %p565
        %s727 = sand.u32 %s555, 1
        %s728 = scalar_lea.sflag [#allocation8], %s727
        %s729 = sand.u32 %s555, 1
        %s730 = smul.addr %s729, 2
        %s731 = scalar_lea.vmem [#allocation7], %s730
        %p732 = scmp.lt.s32.totalorder %s44, 1
        %s733 = scalar_select %p732, %s44, 1
        %s734 = smul.addr %s733, 8
        %s735 = smul.addr %s734, 8
        %s736 = scalar_lea.vmem %s0, %s735
        %v738 = vld [vmem:[%s736] sm:$0xff]
        %v739 = vld [vmem:[%s736 + $0x8] sm:$0xff]
        %v740 = vld [vmem:[%s736 + $0x10] sm:$0xff]
        %v741 = vld [vmem:[%s736 + $0x18] sm:$0xff]
        %v742 = vld [vmem:[%s736 + $0x20] sm:$0xff]
        %v743 = vld [vmem:[%s736 + $0x28] sm:$0xff]
        %v744 = vld [vmem:[%s736 + $0x30] sm:$0xff]
        %v745 = vld [vmem:[%s736 + $0x38] sm:$0xff]
        %v746 = vpack.c.bf16 %v739, %v738
        %v747 = vpack.c.bf16 %v741, %v740
        %v748 = vpack.c.bf16 %v743, %v742
        %v749 = vpack.c.bf16 %v745, %v744
        %v750 = vld [vmem:[%s1] sm:$0xf]
        %v751 = vld [vmem:[%s1 + $0x4] sm:$0xf]
        %v752 = vld [vmem:[%s1 + $0x8] sm:$0xf]
        %v753 = vld [vmem:[%s1 + $0xc] sm:$0xf]
        %v754 = vld [vmem:[%s1 + $0x10] sm:$0xf]
        %v755 = vld [vmem:[%s1 + $0x14] sm:$0xf]
        %v756 = vld [vmem:[%s1 + $0x18] sm:$0xf]
        %v757 = vld [vmem:[%s1 + $0x1c] sm:$0xf]
        %v758 = vld [vmem:[%s1 + $0x20] sm:$0xf]
        %v759 = vld [vmem:[%s1 + $0x24] sm:$0xf]
        %v760 = vld [vmem:[%s1 + $0x28] sm:$0xf]
        %v761 = vld [vmem:[%s1 + $0x2c] sm:$0xf]
        %v762 = vld [vmem:[%s1 + $0x30] sm:$0xf]
        %v763 = vld [vmem:[%s1 + $0x34] sm:$0xf]
        %v764 = vld [vmem:[%s1 + $0x38] sm:$0xf]
        %v765 = vld [vmem:[%s1 + $0x3c] sm:$0xf]
        %v766 = vld [vmem:[%s2] sm:$0x1]
        %v768 = vlaneseq
        %v769 = vshrl.u32 %v768, 7
        %v770 = vsub.s32 0, %v769
        %v771 = vrot.slane %v766, %v770
        %v789 = vunpack.c.l.b16 %v750
        %v790 = vunpack.c.l.b16 %v751
        %v791 = vunpack.c.l.b16 %v752
        %v792 = vunpack.c.l.b16 %v753
        %v793 = vunpack.c.l.b16 %v754
        %v794 = vunpack.c.l.b16 %v755
        %v795 = vunpack.c.l.b16 %v756
        %v796 = vunpack.c.l.b16 %v757
        %v797 = vunpack.c.l.b16 %v758
        %v798 = vunpack.c.l.b16 %v759
        %v799 = vunpack.c.l.b16 %v760
        %v800 = vunpack.c.l.b16 %v761
        %v801 = vunpack.c.l.b16 %v762
        %v802 = vunpack.c.l.b16 %v763
        %v803 = vunpack.c.l.b16 %v764
        %v804 = vunpack.c.l.b16 %v765
        %v805 = vpack.c.b16 %v790, %v789
        %v806 = vpack.c.b16 %v792, %v791
        %v807 = vpack.c.b16 %v794, %v793
        %v808 = vpack.c.b16 %v796, %v795
        %v809 = vpack.c.b16 %v798, %v797
        %v810 = vpack.c.b16 %v800, %v799
        %v811 = vpack.c.b16 %v802, %v801
        %v812 = vpack.c.b16 %v804, %v803
        %821 = vmatprep.subr.bf16.mxu0 0
        %822 = vmatpush1.bf16.msra.mxu0 %v805
        %823 = vmatprep.subr.bf16.mxu0 0
        %824 = vmatpush1.bf16.msra.mxu0 %v806
        %825 = vmatprep.subr.bf16.mxu0 0
        %826 = vmatpush1.bf16.msra.mxu0 %v807
        %827 = vmatprep.subr.bf16.mxu0 0
        %828 = vmatpush1.bf16.msra.mxu0 %v808
        %829 = vmatprep.subr.bf16.mxu0 0
        %830 = vmatpush1.bf16.msra.mxu0 %v809
        %831 = vmatprep.subr.bf16.mxu0 0
        %832 = vmatpush1.bf16.msra.mxu0 %v810
        %833 = vmatprep.subr.bf16.mxu0 0
        %834 = vmatpush1.bf16.msra.mxu0 %v811
        %835 = vmatprep.subr.bf16.mxu0 0
        %836 = vmatpush1.bf16.msra.mxu0 %v812
        %837 = vmatprep.subr.bf16.mxu0 0
        %838 = vmatpush1.bf16.msra.mxu0 0
        %839 = vmatprep.subr.bf16.mxu0 0
        %840 = vmatpush1.bf16.msra.mxu0 0
        %841 = vmatprep.subr.bf16.mxu0 0
        %842 = vmatpush1.bf16.msra.mxu0 0
        %843 = vmatprep.subr.bf16.mxu0 0
        %844 = vmatpush1.bf16.msra.mxu0 0
        %845 = vmatprep.subr.bf16.mxu0 0
        %846 = vmatpush1.bf16.msra.mxu0 0
        %847 = vmatprep.subr.bf16.mxu0 0
        %848 = vmatpush1.bf16.msra.mxu0 0
        %849 = vmatprep.subr.bf16.mxu0 0
        %850 = vmatpush1.bf16.msra.mxu0 0
        %851 = vmatprep.subr.bf16.mxu0 0
        %852 = vmatpush1.bf16.msra.mxu0 0
        %853 = vmatprep.mubr.bf16.mxu0 0
        %854 = vmatmul.mubr.bf16.gmra.mrb[0].mxu0 %v746
        %v855 = vpop.f32.mrb[0].mxu0
        %v856 = vadd.f32 %v771, %v855
        %v857 = vpop.f32.mrb[0].mxu0
        %v858 = vpop.f32.mrb[0].mxu0
        %v859 = vadd.f32 %v771, %v858
        %v860 = vpop.f32.mrb[0].mxu0
        %861 = vmatprep.mubr.bf16.mxu0 0
        %862 = vmatmul.mubr.bf16.gmra.mrb[0].mxu0 %v747
        %v863 = vpop.f32.mrb[0].mxu0
        %v864 = vadd.f32 %v771, %v863
        %v865 = vpop.f32.mrb[0].mxu0
        %v866 = vpop.f32.mrb[0].mxu0
        %v867 = vadd.f32 %v771, %v866
        %v868 = vpop.f32.mrb[0].mxu0
        %869 = vmatprep.mubr.bf16.mxu0 0
        %870 = vmatmul.mubr.bf16.gmra.mrb[0].mxu0 %v748
        %v871 = vpop.f32.mrb[0].mxu0
        %v872 = vadd.f32 %v771, %v871
        %v873 = vpop.f32.mrb[0].mxu0
        %v874 = vpop.f32.mrb[0].mxu0
        %v875 = vadd.f32 %v771, %v874
        %v876 = vpop.f32.mrb[0].mxu0
        %877 = vmatprep.mubr.bf16.mxu0 0
        %878 = vmatmul.mubr.bf16.gmra.mrb[0].mxu0 %v749
        %v879 = vpop.f32.mrb[0].mxu0
        %v880 = vadd.f32 %v771, %v879
        %v881 = vpop.f32.mrb[0].mxu0
        %v882 = vpop.f32.mrb[0].mxu0
        %v883 = vadd.f32 %v771, %v882
        %v884 = vpop.f32.mrb[0].mxu0
        %885 = vdwg.mxu0
        %v886 = vld [vmem:[%s3] sm:$0x1]
        %v887 = vld [vmem:[%s4] sm:$0x1]
        %vm888 = vcmask 261120
        %v889 = vsel %vm888, %v856, 0.0
        %890 = vadd.xlane.f32.xlu0 %v889
        %v891 = vpop.xlane.xlu0 %890
        %v892 = vsel %vm888, %v859, 0.0
        %893 = vadd.xlane.f32.xlu0 %v892
        %v894 = vpop.xlane.xlu0 %893
        %v895 = vsel %vm888, %v864, 0.0
        %896 = vadd.xlane.f32.xlu0 %v895
        %v897 = vpop.xlane.xlu0 %896
        %v898 = vsel %vm888, %v867, 0.0
        %899 = vadd.xlane.f32.xlu0 %v898
        %v900 = vpop.xlane.xlu0 %899
        %v901 = vsel %vm888, %v872, 0.0
        %902 = vadd.xlane.f32.xlu0 %v901
        %v903 = vpop.xlane.xlu0 %902
        %v904 = vsel %vm888, %v875, 0.0
        %905 = vadd.xlane.f32.xlu0 %v904
        %v906 = vpop.xlane.xlu0 %905
        %v907 = vsel %vm888, %v880, 0.0
        %908 = vadd.xlane.f32.xlu0 %v907
        %v909 = vpop.xlane.xlu0 %908
        %v910 = vsel %vm888, %v883, 0.0
        %911 = vadd.xlane.f32.xlu0 %v910
        %v912 = vpop.xlane.xlu0 %911
        %v913 = vrcp.pop 32.0
        %v914 = vmul.f32 %v891, %v913
        %v915 = vmul.f32 %v894, %v913
        %v916 = vmul.f32 %v897, %v913
        %v917 = vmul.f32 %v900, %v913
        %v918 = vmul.f32 %v903, %v913
        %v919 = vmul.f32 %v906, %v913
        %v920 = vmul.f32 %v909, %v913
        %v921 = vmul.f32 %v912, %v913
        %v922 = vsub.f32 %v856, %v914
        %v923 = vsub.f32 %v859, %v915
        %v924 = vsub.f32 %v864, %v916
        %v925 = vsub.f32 %v867, %v917
        %v926 = vsub.f32 %v872, %v918
        %v927 = vsub.f32 %v875, %v919
        %v928 = vsub.f32 %v880, %v920
        %v929 = vsub.f32 %v883, %v921
        %v930 = vmul.f32 %v922, %v922
        %v931 = vmul.f32 %v923, %v923
        %v932 = vmul.f32 %v924, %v924
        %v933 = vmul.f32 %v925, %v925
        %v934 = vmul.f32 %v926, %v926
        %v935 = vmul.f32 %v927, %v927
        %v936 = vmul.f32 %v928, %v928
        %v937 = vmul.f32 %v929, %v929
        %v938 = vsel %vm888, %v930, 0.0
        %939 = vadd.xlane.f32.xlu0 %v938
        %v940 = vpop.xlane.xlu0 %939
        %v941 = vsel %vm888, %v931, 0.0
        %942 = vadd.xlane.f32.xlu0 %v941
        %v943 = vpop.xlane.xlu0 %942
        %v944 = vsel %vm888, %v932, 0.0
        %945 = vadd.xlane.f32.xlu0 %v944
        %v946 = vpop.xlane.xlu0 %945
        %v947 = vsel %vm888, %v933, 0.0
        %948 = vadd.xlane.f32.xlu0 %v947
        %v949 = vpop.xlane.xlu0 %948
        %v950 = vsel %vm888, %v934, 0.0
        %951 = vadd.xlane.f32.xlu0 %v950
        %v952 = vpop.xlane.xlu0 %951
        %v953 = vsel %vm888, %v935, 0.0
        %954 = vadd.xlane.f32.xlu0 %v953
        %v955 = vpop.xlane.xlu0 %954
        %v956 = vsel %vm888, %v936, 0.0
        %957 = vadd.xlane.f32.xlu0 %v956
        %v958 = vpop.xlane.xlu0 %957
        %v959 = vsel %vm888, %v937, 0.0
        %960 = vadd.xlane.f32.xlu0 %v959
        %v961 = vpop.xlane.xlu0 %960
        %v962 = vmul.f32 %v940, %v913
        %v963 = vmul.f32 %v943, %v913
        %v964 = vmul.f32 %v946, %v913
        %v965 = vmul.f32 %v949, %v913
        %v966 = vmul.f32 %v952, %v913
        %v967 = vmul.f32 %v955, %v913
        %v968 = vmul.f32 %v958, %v913
        %v969 = vmul.f32 %v961, %v913
        %v970 = vadd.f32 %v962, 1e-06
        %v971 = vadd.f32 %v963, 1e-06
        %v972 = vadd.f32 %v964, 1e-06
        %v973 = vadd.f32 %v965, 1e-06
        %v974 = vadd.f32 %v966, 1e-06
        %v975 = vadd.f32 %v967, 1e-06
        %v976 = vadd.f32 %v968, 1e-06
        %v977 = vadd.f32 %v969, 1e-06
        %v978 = vrsqrt.pop %v970
        %v979 = vrsqrt.pop %v971
        %v980 = vrsqrt.pop %v972
        %v981 = vrsqrt.pop %v973
        %v982 = vrsqrt.pop %v974
        %v983 = vrsqrt.pop %v975
        %v984 = vrsqrt.pop %v976
        %v985 = vrsqrt.pop %v977
        %v986 = vmul.f32 %v922, %v978
        %v987 = vmul.f32 %v923, %v979
        %v988 = vmul.f32 %v924, %v980
        %v989 = vmul.f32 %v925, %v981
        %v990 = vmul.f32 %v926, %v982
        %v991 = vmul.f32 %v927, %v983
        %v992 = vmul.f32 %v928, %v984
        %v993 = vmul.f32 %v929, %v985
        %v995 = vlaneseq
        %v996 = vshrl.u32 %v995, 7
        %v997 = vsub.s32 0, %v996
        %v998 = vrot.slane %v886, %v997
        %v1000 = vmul.f32 %v986, %v998
        %v1001 = vmul.f32 %v987, %v998
        %v1002 = vmul.f32 %v988, %v998
        %v1003 = vmul.f32 %v989, %v998
        %v1004 = vmul.f32 %v990, %v998
        %v1005 = vmul.f32 %v991, %v998
        %v1006 = vmul.f32 %v992, %v998
        %v1007 = vmul.f32 %v993, %v998
        %v1009 = vlaneseq
        %v1010 = vshrl.u32 %v1009, 7
        %v1011 = vsub.s32 0, %v1010
        %v1012 = vrot.slane %v887, %v1011
        %v1014 = vadd.f32 %v1000, %v1012
        %v1015 = vadd.f32 %v1001, %v1012
        %v1016 = vadd.f32 %v1002, %v1012
        %v1017 = vadd.f32 %v1003, %v1012
        %v1018 = vadd.f32 %v1004, %v1012
        %v1019 = vadd.f32 %v1005, %v1012
        %v1020 = vadd.f32 %v1006, %v1012
        %v1021 = vadd.f32 %v1007, %v1012
        %1022 = vst.msk [vmem:[%s710] sm:$0xff] %vm888, %v1014
        %1023 = vst.msk [vmem:[%s710 + $0x8] sm:$0xff] %vm888, %v1015
        %1024 = vst.msk [vmem:[%s710 + $0x10] sm:$0xff] %vm888, %v1016
        %1025 = vst.msk [vmem:[%s710 + $0x18] sm:$0xff] %vm888, %v1017
        %1026 = vst.msk [vmem:[%s710 + $0x20] sm:$0xff] %vm888, %v1018
        %1027 = vst.msk [vmem:[%s710 + $0x28] sm:$0xff] %vm888, %v1019
        %1028 = vst.msk [vmem:[%s710 + $0x30] sm:$0xff] %vm888, %v1020
        %1029 = vst.msk [vmem:[%s710 + $0x38] sm:$0xff] %vm888, %v1021
        %v1030 = vld [vmem:[%s6] sm:$0x1]
        %v1031 = vld [vmem:[%s7] sm:$0x1]
        %v1032 = vsel %vm888, %v1014, 0.0
        %1033 = vadd.xlane.f32.xlu0 %v1032
        %v1034 = vpop.xlane.xlu0 %1033
        %v1035 = vsel %vm888, %v1015, 0.0
        %1036 = vadd.xlane.f32.xlu0 %v1035
        %v1037 = vpop.xlane.xlu0 %1036
        %v1038 = vsel %vm888, %v1016, 0.0
        %1039 = vadd.xlane.f32.xlu0 %v1038
        %v1040 = vpop.xlane.xlu0 %1039
        %v1041 = vsel %vm888, %v1017, 0.0
        %1042 = vadd.xlane.f32.xlu0 %v1041
        %v1043 = vpop.xlane.xlu0 %1042
        %v1044 = vsel %vm888, %v1018, 0.0
        %1045 = vadd.xlane.f32.xlu0 %v1044
        %v1046 = vpop.xlane.xlu0 %1045
        %v1047 = vsel %vm888, %v1019, 0.0
        %1048 = vadd.xlane.f32.xlu0 %v1047
        %v1049 = vpop.xlane.xlu0 %1048
        %v1050 = vsel %vm888, %v1020, 0.0
        %1051 = vadd.xlane.f32.xlu0 %v1050
        %v1052 = vpop.xlane.xlu0 %1051
        %v1053 = vsel %vm888, %v1021, 0.0
        %1054 = vadd.xlane.f32.xlu0 %v1053
        %v1055 = vpop.xlane.xlu0 %1054
        %v1056 = vmul.f32 %v1034, %v913
        %v1057 = vmul.f32 %v1037, %v913
        %v1058 = vmul.f32 %v1040, %v913
        %v1059 = vmul.f32 %v1043, %v913
        %v1060 = vmul.f32 %v1046, %v913
        %v1061 = vmul.f32 %v1049, %v913
        %v1062 = vmul.f32 %v1052, %v913
        %v1063 = vmul.f32 %v1055, %v913
        %v1064 = vsub.f32 %v1014, %v1056
        %v1065 = vsub.f32 %v1015, %v1057
        %v1066 = vsub.f32 %v1016, %v1058
        %v1067 = vsub.f32 %v1017, %v1059
        %v1068 = vsub.f32 %v1018, %v1060
        %v1069 = vsub.f32 %v1019, %v1061
        %v1070 = vsub.f32 %v1020, %v1062
        %v1071 = vsub.f32 %v1021, %v1063
        %v1072 = vmul.f32 %v1064, %v1064
        %v1073 = vmul.f32 %v1065, %v1065
        %v1074 = vmul.f32 %v1066, %v1066
        %v1075 = vmul.f32 %v1067, %v1067
        %v1076 = vmul.f32 %v1068, %v1068
        %v1077 = vmul.f32 %v1069, %v1069
        %v1078 = vmul.f32 %v1070, %v1070
        %v1079 = vmul.f32 %v1071, %v1071
        %v1080 = vsel %vm888, %v1072, 0.0
        %1081 = vadd.xlane.f32.xlu0 %v1080
        %v1082 = vpop.xlane.xlu0 %1081
        %v1083 = vsel %vm888, %v1073, 0.0
        %1084 = vadd.xlane.f32.xlu0 %v1083
        %v1085 = vpop.xlane.xlu0 %1084
        %v1086 = vsel %vm888, %v1074, 0.0
        %1087 = vadd.xlane.f32.xlu0 %v1086
        %v1088 = vpop.xlane.xlu0 %1087
        %v1089 = vsel %vm888, %v1075, 0.0
        %1090 = vadd.xlane.f32.xlu0 %v1089
        %v1091 = vpop.xlane.xlu0 %1090
        %v1092 = vsel %vm888, %v1076, 0.0
        %1093 = vadd.xlane.f32.xlu0 %v1092
        %v1094 = vpop.xlane.xlu0 %1093
        %v1095 = vsel %vm888, %v1077, 0.0
        %1096 = vadd.xlane.f32.xlu0 %v1095
        %v1097 = vpop.xlane.xlu0 %1096
        %v1098 = vsel %vm888, %v1078, 0.0
        %1099 = vadd.xlane.f32.xlu0 %v1098
        %v1100 = vpop.xlane.xlu0 %1099
        %v1101 = vsel %vm888, %v1079, 0.0
        %1102 = vadd.xlane.f32.xlu0 %v1101
        %v1103 = vpop.xlane.xlu0 %1102
        %v1104 = vmul.f32 %v1082, %v913
        %v1105 = vmul.f32 %v1085, %v913
        %v1106 = vmul.f32 %v1088, %v913
        %v1107 = vmul.f32 %v1091, %v913
        %v1108 = vmul.f32 %v1094, %v913
        %v1109 = vmul.f32 %v1097, %v913
        %v1110 = vmul.f32 %v1100, %v913
        %v1111 = vmul.f32 %v1103, %v913
        %v1112 = vadd.f32 %v1104, 1e-06
        %v1113 = vadd.f32 %v1105, 1e-06
        %v1114 = vadd.f32 %v1106, 1e-06
        %v1115 = vadd.f32 %v1107, 1e-06
        %v1116 = vadd.f32 %v1108, 1e-06
        %v1117 = vadd.f32 %v1109, 1e-06
        %v1118 = vadd.f32 %v1110, 1e-06
        %v1119 = vadd.f32 %v1111, 1e-06
        %v1120 = vrsqrt.pop %v1112
        %v1121 = vrsqrt.pop %v1113
        %v1122 = vrsqrt.pop %v1114
        %v1123 = vrsqrt.pop %v1115
        %v1124 = vrsqrt.pop %v1116
        %v1125 = vrsqrt.pop %v1117
        %v1126 = vrsqrt.pop %v1118
        %v1127 = vrsqrt.pop %v1119
        %v1128 = vmul.f32 %v1064, %v1120
        %v1129 = vmul.f32 %v1065, %v1121
        %v1130 = vmul.f32 %v1066, %v1122
        %v1131 = vmul.f32 %v1067, %v1123
        %v1132 = vmul.f32 %v1068, %v1124
        %v1133 = vmul.f32 %v1069, %v1125
        %v1134 = vmul.f32 %v1070, %v1126
        %v1135 = vmul.f32 %v1071, %v1127
        %v1137 = vlaneseq
        %v1138 = vshrl.u32 %v1137, 7
        %v1139 = vsub.s32 0, %v1138
        %v1140 = vrot.slane %v1030, %v1139
        %v1142 = vmul.f32 %v1128, %v1140
        %v1143 = vmul.f32 %v1129, %v1140
        %v1144 = vmul.f32 %v1130, %v1140
        %v1145 = vmul.f32 %v1131, %v1140
        %v1146 = vmul.f32 %v1132, %v1140
        %v1147 = vmul.f32 %v1133, %v1140
        %v1148 = vmul.f32 %v1134, %v1140
        %v1149 = vmul.f32 %v1135, %v1140
        %v1151 = vlaneseq
        %v1152 = vshrl.u32 %v1151, 7
        %v1153 = vsub.s32 0, %v1152
        %v1154 = vrot.slane %v1031, %v1153
        %v1156 = vadd.f32 %v1142, %v1154
        %v1157 = vadd.f32 %v1143, %v1154
        %v1158 = vadd.f32 %v1144, %v1154
        %v1159 = vadd.f32 %v1145, %v1154
        %v1160 = vadd.f32 %v1146, %v1154
        %v1161 = vadd.f32 %v1147, %v1154
        %v1162 = vadd.f32 %v1148, %v1154
        %v1163 = vadd.f32 %v1149, %v1154
        %v1164 = vpack.c.bf16 %v1157, %v1156
        %v1165 = vpack.c.bf16 %v1159, %v1158
        %v1166 = vpack.c.bf16 %v1161, %v1160
        %v1167 = vpack.c.bf16 %v1163, %v1162
        %v1168 = vld [vmem:[%s9] sm:$0x1]
        %v1169 = vld [vmem:[%s5] sm:$0xf]
        %v1170 = vld [vmem:[%s5 + $0x4] sm:$0xf]
        %v1173 = vunpack.c.l.b16 %v1169
        %v1174 = vunpack.c.l.b16 %v1170
        %v1175 = vpack.c.b16 %v1174, %v1173
        %vm1176 = vcmask 523264
        %v1178 = vsel %vm1176, %v1175, 0
        %1180 = vmatprep.subr.bf16.mxu0 0
        %1181 = vmatpush1.bf16.msra.mxu0 %v1164
        %1182 = vmatprep.subr.bf16.mxu0 0
        %1183 = vmatpush1.bf16.msra.mxu0 %v1165
        %1184 = vmatprep.subr.bf16.mxu0 0
        %1185 = vmatpush1.bf16.msra.mxu0 %v1166
        %1186 = vmatprep.subr.bf16.mxu0 0
        %1187 = vmatpush1.bf16.msra.mxu0 %v1167
        %1188 = vmatprep.subr.bf16.mxu0 0
        %1189 = vmatpush1.bf16.msra.mxu0 0
        %1190 = vmatprep.subr.bf16.mxu0 0
        %1191 = vmatpush1.bf16.msra.mxu0 0
        %1192 = vmatprep.subr.bf16.mxu0 0
        %1193 = vmatpush1.bf16.msra.mxu0 0
        %1194 = vmatprep.subr.bf16.mxu0 0
        %1195 = vmatpush1.bf16.msra.mxu0 0
        %1196 = vmatprep.subr.bf16.mxu0 0
        %1197 = vmatpush1.bf16.msra.mxu0 0
        %1198 = vmatprep.subr.bf16.mxu0 0
        %1199 = vmatpush1.bf16.msra.mxu0 0
        %1200 = vmatprep.subr.bf16.mxu0 0
        %1201 = vmatpush1.bf16.msra.mxu0 0
        %1202 = vmatprep.subr.bf16.mxu0 0
        %1203 = vmatpush1.bf16.msra.mxu0 0
        %1204 = vmatprep.subr.bf16.mxu0 0
        %1205 = vmatpush1.bf16.msra.mxu0 0
        %1206 = vmatprep.subr.bf16.mxu0 0
        %1207 = vmatpush1.bf16.msra.mxu0 0
        %1208 = vmatprep.subr.bf16.mxu0 0
        %1209 = vmatpush1.bf16.msra.mxu0 0
        %1210 = vmatprep.subr.bf16.mxu0 0
        %1211 = vmatpush1.bf16.msra.mxu0 0
        %1212 = vmatprep.mubr.bf16.mxu0 0
        %1213 = vmatmul.mubr.bf16.gmra.mrb[0].mxu0 %v1178
        %v1214 = vpop.f32.mrb[0].mxu0
        %v1215 = vadd.f32 0.0, %v1214
        %v1216 = vpop.f32.mrb[0].mxu0
        %v1217 = vpop.f32.mrb[0].mxu0
        %v1218 = vadd.f32 0.0, %v1217
        %v1219 = vpop.f32.mrb[0].mxu0
        %1220 = vdwg.mxu0
        %v1221 = vpack.c.bf16 %v1218, %v1215
        %v1222 = vld [vmem:[%s8] sm:$0xf]
        %v1223 = vld [vmem:[%s8 + $0x4] sm:$0xf]
        %v1224 = vld [vmem:[%s8 + $0x8] sm:$0xf]
        %v1225 = vld [vmem:[%s8 + $0xc] sm:$0xf]
        %v1230 = vunpack.c.l.b16 %v1222
        %v1231 = vunpack.c.l.b16 %v1223
        %v1232 = vunpack.c.l.b16 %v1224
        %v1233 = vunpack.c.l.b16 %v1225
        %v1234 = vpack.c.b16 %v1231, %v1230
        %v1235 = vpack.c.b16 %v1233, %v1232
        %v1239 = vsel %vm888, %v1221, 0
        %1241 = vmatprep.subr.bf16.mxu0 0
        %1242 = vmatpush1.bf16.msra.mxu0 %v1234
        %1243 = vmatprep.subr.bf16.mxu0 0
        %1244 = vmatpush1.bf16.msra.mxu0 %v1235
        %1245 = vmatprep.subr.bf16.mxu0 0
        %1246 = vmatpush1.bf16.msra.mxu0 0
        %1247 = vmatprep.subr.bf16.mxu0 0
        %1248 = vmatpush1.bf16.msra.mxu0 0
        %1249 = vmatprep.subr.bf16.mxu0 0
        %1250 = vmatpush1.bf16.msra.mxu0 0
        %1251 = vmatprep.subr.bf16.mxu0 0
        %1252 = vmatpush1.bf16.msra.mxu0 0
        %1253 = vmatprep.subr.bf16.mxu0 0
        %1254 = vmatpush1.bf16.msra.mxu0 0
        %1255 = vmatprep.subr.bf16.mxu0 0
        %1256 = vmatpush1.bf16.msra.mxu0 0
        %1257 = vmatprep.subr.bf16.mxu0 0
        %1258 = vmatpush1.bf16.msra.mxu0 0
        %1259 = vmatprep.subr.bf16.mxu0 0
        %1260 = vmatpush1.bf16.msra.mxu0 0
        %1261 = vmatprep.subr.bf16.mxu0 0
        %1262 = vmatpush1.bf16.msra.mxu0 0
        %1263 = vmatprep.subr.bf16.mxu0 0
        %1264 = vmatpush1.bf16.msra.mxu0 0
        %1265 = vmatprep.subr.bf16.mxu0 0
        %1266 = vmatpush1.bf16.msra.mxu0 0
        %1267 = vmatprep.subr.bf16.mxu0 0
        %1268 = vmatpush1.bf16.msra.mxu0 0
        %1269 = vmatprep.subr.bf16.mxu0 0
        %1270 = vmatpush1.bf16.msra.mxu0 0
        %1271 = vmatprep.subr.bf16.mxu0 0
        %1272 = vmatpush1.bf16.msra.mxu0 0
        %1273 = vmatprep.mubr.bf16.mxu0 0
        %1274 = vmatmul.mubr.bf16.gmra.mrb[0].mxu0 %v1239
        %v1275 = vpop.f32.mrb[0].mxu0
        %v1276 = vadd.f32 0.0, %v1275
        %v1277 = vpop.f32.mrb[0].mxu0
        %v1278 = vpop.f32.mrb[0].mxu0
        %v1279 = vadd.f32 0.0, %v1278
        %v1280 = vpop.f32.mrb[0].mxu0
        %1281 = vdwg.mxu0
        %v1283 = vlaneseq
        %v1284 = vshrl.u32 %v1283, 7
        %v1285 = vsub.s32 0, %v1284
        %v1286 = vrot.slane %v1168, %v1285
        %v1288 = vadd.f32 %v1286, %v1276
        %v1289 = vadd.f32 %v1286, %v1279
        %s1290 = scalar_lea.vmem %s5, 8
        %v1291 = vld [vmem:[%s1290] sm:$0xf]
        %v1292 = vld [vmem:[%s1290 + $0x4] sm:$0xf]
        %v1295 = vunpack.c.l.b16 %v1291
        %v1296 = vunpack.c.l.b16 %v1292
        %v1297 = vpack.c.b16 %v1296, %v1295
        %v1299 = vsel %vm1176, %v1297, 0
        %1301 = vmatprep.subr.bf16.mxu0 0
        %1302 = vmatpush1.bf16.msra.mxu0 %v1164
        %1303 = vmatprep.subr.bf16.mxu0 0
        %1304 = vmatpush1.bf16.msra.mxu0 %v1165
        %1305 = vmatprep.subr.bf16.mxu0 0
        %1306 = vmatpush1.bf16.msra.mxu0 %v1166
        %1307 = vmatprep.subr.bf16.mxu0 0
        %1308 = vmatpush1.bf16.msra.mxu0 %v1167
        %1309 = vmatprep.subr.bf16.mxu0 0
        %1310 = vmatpush1.bf16.msra.mxu0 0
        %1311 = vmatprep.subr.bf16.mxu0 0
        %1312 = vmatpush1.bf16.msra.mxu0 0
        %1313 = vmatprep.subr.bf16.mxu0 0
        %1314 = vmatpush1.bf16.msra.mxu0 0
        %1315 = vmatprep.subr.bf16.mxu0 0
        %1316 = vmatpush1.bf16.msra.mxu0 0
        %1317 = vmatprep.subr.bf16.mxu0 0
        %1318 = vmatpush1.bf16.msra.mxu0 0
        %1319 = vmatprep.subr.bf16.mxu0 0
        %1320 = vmatpush1.bf16.msra.mxu0 0
        %1321 = vmatprep.subr.bf16.mxu0 0
        %1322 = vmatpush1.bf16.msra.mxu0 0
        %1323 = vmatprep.subr.bf16.mxu0 0
        %1324 = vmatpush1.bf16.msra.mxu0 0
        %1325 = vmatprep.subr.bf16.mxu0 0
        %1326 = vmatpush1.bf16.msra.mxu0 0
        %1327 = vmatprep.subr.bf16.mxu0 0
        %1328 = vmatpush1.bf16.msra.mxu0 0
        %1329 = vmatprep.subr.bf16.mxu0 0
        %1330 = vmatpush1.bf16.msra.mxu0 0
        %1331 = vmatprep.subr.bf16.mxu0 0
        %1332 = vmatpush1.bf16.msra.mxu0 0
        %1333 = vmatprep.mubr.bf16.mxu0 0
        %1334 = vmatmul.mubr.bf16.gmra.mrb[0].mxu0 %v1299
        %v1335 = vpop.f32.mrb[0].mxu0
        %v1336 = vadd.f32 0.0, %v1335
        %v1337 = vpop.f32.mrb[0].mxu0
        %v1338 = vpop.f32.mrb[0].mxu0
        %v1339 = vadd.f32 0.0, %v1338
        %v1340 = vpop.f32.mrb[0].mxu0
        %1341 = vdwg.mxu0
        %v1342 = vpack.c.bf16 %v1339, %v1336
        %v1343 = vld [vmem:[%s8 + $0x10] sm:$0xf]
        %v1344 = vld [vmem:[%s8 + $0x14] sm:$0xf]
        %v1345 = vld [vmem:[%s8 + $0x18] sm:$0xf]
        %v1346 = vld [vmem:[%s8 + $0x1c] sm:$0xf]
        %v1351 = vunpack.c.l.b16 %v1343
        %v1352 = vunpack.c.l.b16 %v1344
        %v1353 = vunpack.c.l.b16 %v1345
        %v1354 = vunpack.c.l.b16 %v1346
        %v1355 = vpack.c.b16 %v1352, %v1351
        %v1356 = vpack.c.b16 %v1354, %v1353
        %v1360 = vsel %vm888, %v1342, 0
        %1362 = vmatprep.subr.bf16.mxu0 0
        %1363 = vmatpush1.bf16.msra.mxu0 %v1355
        %1364 = vmatprep.subr.bf16.mxu0 0
        %1365 = vmatpush1.bf16.msra.mxu0 %v1356
        %1366 = vmatprep.subr.bf16.mxu0 0
        %1367 = vmatpush1.bf16.msra.mxu0 0
        %1368 = vmatprep.subr.bf16.mxu0 0
        %1369 = vmatpush1.bf16.msra.mxu0 0
        %1370 = vmatprep.subr.bf16.mxu0 0
        %1371 = vmatpush1.bf16.msra.mxu0 0
        %1372 = vmatprep.subr.bf16.mxu0 0
        %1373 = vmatpush1.bf16.msra.mxu0 0
        %1374 = vmatprep.subr.bf16.mxu0 0
        %1375 = vmatpush1.bf16.msra.mxu0 0
        %1376 = vmatprep.subr.bf16.mxu0 0
        %1377 = vmatpush1.bf16.msra.mxu0 0
        %1378 = vmatprep.subr.bf16.mxu0 0
        %1379 = vmatpush1.bf16.msra.mxu0 0
        %1380 = vmatprep.subr.bf16.mxu0 0
        %1381 = vmatpush1.bf16.msra.mxu0 0
        %1382 = vmatprep.subr.bf16.mxu0 0
        %1383 = vmatpush1.bf16.msra.mxu0 0
        %1384 = vmatprep.subr.bf16.mxu0 0
        %1385 = vmatpush1.bf16.msra.mxu0 0
        %1386 = vmatprep.subr.bf16.mxu0 0
        %1387 = vmatpush1.bf16.msra.mxu0 0
        %1388 = vmatprep.subr.bf16.mxu0 0
        %1389 = vmatpush1.bf16.msra.mxu0 0
        %1390 = vmatprep.subr.bf16.mxu0 0
        %1391 = vmatpush1.bf16.msra.mxu0 0
        %1392 = vmatprep.subr.bf16.mxu0 0
        %1393 = vmatpush1.bf16.msra.mxu0 0
        %1394 = vmatprep.mubr.bf16.mxu0 0
        %1395 = vmatmul.mubr.bf16.gmra.mrb[0].mxu0 %v1360
        %v1396 = vpop.f32.mrb[0].mxu0
        %v1397 = vadd.f32 0.0, %v1396
        %v1398 = vpop.f32.mrb[0].mxu0
        %v1399 = vpop.f32.mrb[0].mxu0
        %v1400 = vadd.f32 0.0, %v1399
        %v1401 = vpop.f32.mrb[0].mxu0
        %1402 = vdwg.mxu0
        %v1403 = vadd.f32 %v1288, %v1397
        %v1404 = vadd.f32 %v1289, %v1400
        %s1405 = scalar_lea.vmem %s5, 16
        %v1406 = vld [vmem:[%s1405] sm:$0xf]
        %v1407 = vld [vmem:[%s1405 + $0x4] sm:$0xf]
        %v1410 = vunpack.c.l.b16 %v1406
        %v1411 = vunpack.c.l.b16 %v1407
        %v1412 = vpack.c.b16 %v1411, %v1410
        %v1414 = vsel %vm1176, %v1412, 0
        %1416 = vmatprep.subr.bf16.mxu0 0
        %1417 = vmatpush1.bf16.msra.mxu0 %v1164
        %1418 = vmatprep.subr.bf16.mxu0 0
        %1419 = vmatpush1.bf16.msra.mxu0 %v1165
        %1420 = vmatprep.subr.bf16.mxu0 0
        %1421 = vmatpush1.bf16.msra.mxu0 %v1166
        %1422 = vmatprep.subr.bf16.mxu0 0
        %1423 = vmatpush1.bf16.msra.mxu0 %v1167
        %1424 = vmatprep.subr.bf16.mxu0 0
        %1425 = vmatpush1.bf16.msra.mxu0 0
        %1426 = vmatprep.subr.bf16.mxu0 0
        %1427 = vmatpush1.bf16.msra.mxu0 0
        %1428 = vmatprep.subr.bf16.mxu0 0
        %1429 = vmatpush1.bf16.msra.mxu0 0
        %1430 = vmatprep.subr.bf16.mxu0 0
        %1431 = vmatpush1.bf16.msra.mxu0 0
        %1432 = vmatprep.subr.bf16.mxu0 0
        %1433 = vmatpush1.bf16.msra.mxu0 0
        %1434 = vmatprep.subr.bf16.mxu0 0
        %1435 = vmatpush1.bf16.msra.mxu0 0
        %1436 = vmatprep.subr.bf16.mxu0 0
        %1437 = vmatpush1.bf16.msra.mxu0 0
        %1438 = vmatprep.subr.bf16.mxu0 0
        %1439 = vmatpush1.bf16.msra.mxu0 0
        %1440 = vmatprep.subr.bf16.mxu0 0
        %1441 = vmatpush1.bf16.msra.mxu0 0
        %1442 = vmatprep.subr.bf16.mxu0 0
        %1443 = vmatpush1.bf16.msra.mxu0 0
        %1444 = vmatprep.subr.bf16.mxu0 0
        %1445 = vmatpush1.bf16.msra.mxu0 0
        %1446 = vmatprep.subr.bf16.mxu0 0
        %1447 = vmatpush1.bf16.msra.mxu0 0
        %1448 = vmatprep.mubr.bf16.mxu0 0
        %1449 = vmatmul.mubr.bf16.gmra.mrb[0].mxu0 %v1414
        %v1450 = vpop.f32.mrb[0].mxu0
        %v1451 = vadd.f32 0.0, %v1450
        %v1452 = vpop.f32.mrb[0].mxu0
        %v1453 = vpop.f32.mrb[0].mxu0
        %v1454 = vadd.f32 0.0, %v1453
        %v1455 = vpop.f32.mrb[0].mxu0
        %1456 = vdwg.mxu0
        %v1457 = vpack.c.bf16 %v1454, %v1451
        %v1458 = vld [vmem:[%s8 + $0x20] sm:$0xf]
        %v1459 = vld [vmem:[%s8 + $0x24] sm:$0xf]
        %v1460 = vld [vmem:[%s8 + $0x28] sm:$0xf]
        %v1461 = vld [vmem:[%s8 + $0x2c] sm:$0xf]
        %v1466 = vunpack.c.l.b16 %v1458
        %v1467 = vunpack.c.l.b16 %v1459
        %v1468 = vunpack.c.l.b16 %v1460
        %v1469 = vunpack.c.l.b16 %v1461
        %v1470 = vpack.c.b16 %v1467, %v1466
        %v1471 = vpack.c.b16 %v1469, %v1468
        %v1475 = vsel %vm888, %v1457, 0
        %1477 = vmatprep.subr.bf16.mxu0 0
        %1478 = vmatpush1.bf16.msra.mxu0 %v1470
        %1479 = vmatprep.subr.bf16.mxu0 0
        %1480 = vmatpush1.bf16.msra.mxu0 %v1471
        %1481 = vmatprep.subr.bf16.mxu0 0
        %1482 = vmatpush1.bf16.msra.mxu0 0
        %1483 = vmatprep.subr.bf16.mxu0 0
        %1484 = vmatpush1.bf16.msra.mxu0 0
        %1485 = vmatprep.subr.bf16.mxu0 0
        %1486 = vmatpush1.bf16.msra.mxu0 0
        %1487 = vmatprep.subr.bf16.mxu0 0
        %1488 = vmatpush1.bf16.msra.mxu0 0
        %1489 = vmatprep.subr.bf16.mxu0 0
        %1490 = vmatpush1.bf16.msra.mxu0 0
        %1491 = vmatprep.subr.bf16.mxu0 0
        %1492 = vmatpush1.bf16.msra.mxu0 0
        %1493 = vmatprep.subr.bf16.mxu0 0
        %1494 = vmatpush1.bf16.msra.mxu0 0
        %1495 = vmatprep.subr.bf16.mxu0 0
        %1496 = vmatpush1.bf16.msra.mxu0 0
        %1497 = vmatprep.subr.bf16.mxu0 0
        %1498 = vmatpush1.bf16.msra.mxu0 0
        %1499 = vmatprep.subr.bf16.mxu0 0
        %1500 = vmatpush1.bf16.msra.mxu0 0
        %1501 = vmatprep.subr.bf16.mxu0 0
        %1502 = vmatpush1.bf16.msra.mxu0 0
        %1503 = vmatprep.subr.bf16.mxu0 0
        %1504 = vmatpush1.bf16.msra.mxu0 0
        %1505 = vmatprep.subr.bf16.mxu0 0
        %1506 = vmatpush1.bf16.msra.mxu0 0
        %1507 = vmatprep.subr.bf16.mxu0 0
        %1508 = vmatpush1.bf16.msra.mxu0 0
        %1509 = vmatprep.mubr.bf16.mxu0 0
        %1510 = vmatmul.mubr.bf16.gmra.mrb[0].mxu0 %v1475
        %v1511 = vpop.f32.mrb[0].mxu0
        %v1512 = vadd.f32 0.0, %v1511
        %v1513 = vpop.f32.mrb[0].mxu0
        %v1514 = vpop.f32.mrb[0].mxu0
        %v1515 = vadd.f32 0.0, %v1514
        %v1516 = vpop.f32.mrb[0].mxu0
        %1517 = vdwg.mxu0
        %v1518 = vadd.f32 %v1403, %v1512
        %v1519 = vadd.f32 %v1404, %v1515
        %s1520 = scalar_lea.vmem %s5, 24
        %v1521 = vld [vmem:[%s1520] sm:$0xf]
        %v1522 = vld [vmem:[%s1520 + $0x4] sm:$0xf]
        %v1525 = vunpack.c.l.b16 %v1521
        %v1526 = vunpack.c.l.b16 %v1522
        %v1527 = vpack.c.b16 %v1526, %v1525
        %v1529 = vsel %vm1176, %v1527, 0
        %1531 = vmatprep.subr.bf16.mxu0 0
        %1532 = vmatpush1.bf16.msra.mxu0 %v1164
        %1533 = vmatprep.subr.bf16.mxu0 0
        %1534 = vmatpush1.bf16.msra.mxu0 %v1165
        %1535 = vmatprep.subr.bf16.mxu0 0
        %1536 = vmatpush1.bf16.msra.mxu0 %v1166
        %1537 = vmatprep.subr.bf16.mxu0 0
        %1538 = vmatpush1.bf16.msra.mxu0 %v1167
        %1539 = vmatprep.subr.bf16.mxu0 0
        %1540 = vmatpush1.bf16.msra.mxu0 0
        %1541 = vmatprep.subr.bf16.mxu0 0
        %1542 = vmatpush1.bf16.msra.mxu0 0
        %1543 = vmatprep.subr.bf16.mxu0 0
        %1544 = vmatpush1.bf16.msra.mxu0 0
        %1545 = vmatprep.subr.bf16.mxu0 0
        %1546 = vmatpush1.bf16.msra.mxu0 0
        %1547 = vmatprep.subr.bf16.mxu0 0
        %1548 = vmatpush1.bf16.msra.mxu0 0
        %1549 = vmatprep.subr.bf16.mxu0 0
        %1550 = vmatpush1.bf16.msra.mxu0 0
        %1551 = vmatprep.subr.bf16.mxu0 0
        %1552 = vmatpush1.bf16.msra.mxu0 0
        %1553 = vmatprep.subr.bf16.mxu0 0
        %1554 = vmatpush1.bf16.msra.mxu0 0
        %1555 = vmatprep.subr.bf16.mxu0 0
        %1556 = vmatpush1.bf16.msra.mxu0 0
        %1557 = vmatprep.subr.bf16.mxu0 0
        %1558 = vmatpush1.bf16.msra.mxu0 0
        %1559 = vmatprep.subr.bf16.mxu0 0
        %1560 = vmatpush1.bf16.msra.mxu0 0
        %1561 = vmatprep.subr.bf16.mxu0 0
        %1562 = vmatpush1.bf16.msra.mxu0 0
        %1563 = vmatprep.mubr.bf16.mxu0 0
        %1564 = vmatmul.mubr.bf16.gmra.mrb[0].mxu0 %v1529
        %v1565 = vpop.f32.mrb[0].mxu0
        %v1566 = vadd.f32 0.0, %v1565
        %v1567 = vpop.f32.mrb[0].mxu0
        %v1568 = vpop.f32.mrb[0].mxu0
        %v1569 = vadd.f32 0.0, %v1568
        %v1570 = vpop.f32.mrb[0].mxu0
        %1571 = vdwg.mxu0
        %v1572 = vpack.c.bf16 %v1569, %v1566
        %v1573 = vld [vmem:[%s8 + $0x30] sm:$0xf]
        %v1574 = vld [vmem:[%s8 + $0x34] sm:$0xf]
        %v1575 = vld [vmem:[%s8 + $0x38] sm:$0xf]
        %v1576 = vld [vmem:[%s8 + $0x3c] sm:$0xf]
        %v1581 = vunpack.c.l.b16 %v1573
        %v1582 = vunpack.c.l.b16 %v1574
        %v1583 = vunpack.c.l.b16 %v1575
        %v1584 = vunpack.c.l.b16 %v1576
        %v1585 = vpack.c.b16 %v1582, %v1581
        %v1586 = vpack.c.b16 %v1584, %v1583
        %v1590 = vsel %vm888, %v1572, 0
        %1592 = vmatprep.subr.bf16.mxu0 0
        %1593 = vmatpush1.bf16.msra.mxu0 %v1585
        %1594 = vmatprep.subr.bf16.mxu0 0
        %1595 = vmatpush1.bf16.msra.mxu0 %v1586
        %1596 = vmatprep.subr.bf16.mxu0 0
        %1597 = vmatpush1.bf16.msra.mxu0 0
        %1598 = vmatprep.subr.bf16.mxu0 0
        %1599 = vmatpush1.bf16.msra.mxu0 0
        %1600 = vmatprep.subr.bf16.mxu0 0
        %1601 = vmatpush1.bf16.msra.mxu0 0
        %1602 = vmatprep.subr.bf16.mxu0 0
        %1603 = vmatpush1.bf16.msra.mxu0 0
        %1604 = vmatprep.subr.bf16.mxu0 0
        %1605 = vmatpush1.bf16.msra.mxu0 0
        %1606 = vmatprep.subr.bf16.mxu0 0
        %1607 = vmatpush1.bf16.msra.mxu0 0
        %1608 = vmatprep.subr.bf16.mxu0 0
        %1609 = vmatpush1.bf16.msra.mxu0 0
        %1610 = vmatprep.subr.bf16.mxu0 0
        %1611 = vmatpush1.bf16.msra.mxu0 0
        %1612 = vmatprep.subr.bf16.mxu0 0
        %1613 = vmatpush1.bf16.msra.mxu0 0
        %1614 = vmatprep.subr.bf16.mxu0 0
        %1615 = vmatpush1.bf16.msra.mxu0 0
        %1616 = vmatprep.subr.bf16.mxu0 0
        %1617 = vmatpush1.bf16.msra.mxu0 0
        %1618 = vmatprep.subr.bf16.mxu0 0
        %1619 = vmatpush1.bf16.msra.mxu0 0
        %1620 = vmatprep.subr.bf16.mxu0 0
        %1621 = vmatpush1.bf16.msra.mxu0 0
        %1622 = vmatprep.subr.bf16.mxu0 0
        %1623 = vmatpush1.bf16.msra.mxu0 0
        %1624 = vmatprep.mubr.bf16.mxu0 0
        %1625 = vmatmul.mubr.bf16.gmra.mrb[0].mxu0 %v1590
        %v1626 = vpop.f32.mrb[0].mxu0
        %v1627 = vadd.f32 0.0, %v1626
        %v1628 = vpop.f32.mrb[0].mxu0
        %v1629 = vpop.f32.mrb[0].mxu0
        %v1630 = vadd.f32 0.0, %v1629
        %v1631 = vpop.f32.mrb[0].mxu0
        %1632 = vdwg.mxu0
        %v1633 = vadd.f32 %v1518, %v1627
        %v1634 = vadd.f32 %v1519, %v1630
        %1635 = vst.msk [vmem:[%s717] sm:$0xff] %vm1176, %v1633
        %1636 = vst.msk [vmem:[%s717 + $0x8] sm:$0xff] %vm1176, %v1634
        %v1637 = vld [vmem:[%s11] sm:$0x1]
        %v1638 = vld [vmem:[%s12] sm:$0x1]
        %v1639 = vsel %vm1176, %v1633, 0.0
        %1640 = vadd.xlane.f32.xlu0 %v1639
        %v1641 = vpop.xlane.xlu0 %1640
        %v1642 = vsel %vm1176, %v1634, 0.0
        %1643 = vadd.xlane.f32.xlu0 %v1642
        %v1644 = vpop.xlane.xlu0 %1643
        %v1645 = vrcp.pop 64.0
        %v1646 = vmul.f32 %v1641, %v1645
        %v1647 = vmul.f32 %v1644, %v1645
        %v1648 = vsub.f32 %v1633, %v1646
        %v1649 = vsub.f32 %v1634, %v1647
        %v1650 = vmul.f32 %v1648, %v1648
        %v1651 = vmul.f32 %v1649, %v1649
        %v1652 = vsel %vm1176, %v1650, 0.0
        %1653 = vadd.xlane.f32.xlu0 %v1652
        %v1654 = vpop.xlane.xlu0 %1653
        %v1655 = vsel %vm1176, %v1651, 0.0
        %1656 = vadd.xlane.f32.xlu0 %v1655
        %v1657 = vpop.xlane.xlu0 %1656
        %v1658 = vmul.f32 %v1654, %v1645
        %v1659 = vmul.f32 %v1657, %v1645
        %v1660 = vadd.f32 %v1658, 1e-06
        %v1661 = vadd.f32 %v1659, 1e-06
        %v1662 = vrsqrt.pop %v1660
        %v1663 = vrsqrt.pop %v1661
        %v1664 = vmul.f32 %v1648, %v1662
        %v1665 = vmul.f32 %v1649, %v1663
        %v1667 = vlaneseq
        %v1668 = vshrl.u32 %v1667, 7
        %v1669 = vsub.s32 0, %v1668
        %v1670 = vrot.slane %v1637, %v1669
        %v1672 = vmul.f32 %v1664, %v1670
        %v1673 = vmul.f32 %v1665, %v1670
        %v1675 = vlaneseq
        %v1676 = vshrl.u32 %v1675, 7
        %v1677 = vsub.s32 0, %v1676
        %v1678 = vrot.slane %v1638, %v1677
        %v1680 = vadd.f32 %v1672, %v1678
        %v1681 = vadd.f32 %v1673, %v1678
        %v1682 = vpack.c.bf16 %v1681, %v1680
        %v1683 = vld [vmem:[%s14] sm:$0x1]
        %v1684 = vld [vmem:[%s10] sm:$0x3]
        %vm1685 = vcmask 130048
        %v1687 = vsel %vm1685, %v1684, 0
        %1689 = vmatprep.subr.bf16.mxu0 0
        %1690 = vmatpush1.bf16.msra.mxu0 %v1682
        %1691 = vmatprep.subr.bf16.mxu0 0
        %1692 = vmatpush1.bf16.msra.mxu0 0
        %1693 = vmatprep.subr.bf16.mxu0 0
        %1694 = vmatpush1.bf16.msra.mxu0 0
        %1695 = vmatprep.subr.bf16.mxu0 0
        %1696 = vmatpush1.bf16.msra.mxu0 0
        %1697 = vmatprep.subr.bf16.mxu0 0
        %1698 = vmatpush1.bf16.msra.mxu0 0
        %1699 = vmatprep.subr.bf16.mxu0 0
        %1700 = vmatpush1.bf16.msra.mxu0 0
        %1701 = vmatprep.subr.bf16.mxu0 0
        %1702 = vmatpush1.bf16.msra.mxu0 0
        %1703 = vmatprep.subr.bf16.mxu0 0
        %1704 = vmatpush1.bf16.msra.mxu0 0
        %1705 = vmatprep.subr.bf16.mxu0 0
        %1706 = vmatpush1.bf16.msra.mxu0 0
        %1707 = vmatprep.subr.bf16.mxu0 0
        %1708 = vmatpush1.bf16.msra.mxu0 0
        %1709 = vmatprep.subr.bf16.mxu0 0
        %1710 = vmatpush1.bf16.msra.mxu0 0
        %1711 = vmatprep.subr.bf16.mxu0 0
        %1712 = vmatpush1.bf16.msra.mxu0 0
        %1713 = vmatprep.subr.bf16.mxu0 0
        %1714 = vmatpush1.bf16.msra.mxu0 0
        %1715 = vmatprep.subr.bf16.mxu0 0
        %1716 = vmatpush1.bf16.msra.mxu0 0
        %1717 = vmatprep.subr.bf16.mxu0 0
        %1718 = vmatpush1.bf16.msra.mxu0 0
        %1719 = vmatprep.subr.bf16.mxu0 0
        %1720 = vmatpush1.bf16.msra.mxu0 0
        %1721 = vmatprep.mubr.bf16.mxu0 0
        %1722 = vmatmul.mubr.bf16.gmra.mrb[0].mxu0 %v1687
        %v1723 = vpop.f32.mrb[0].mxu0
        %v1724 = vadd.f32 0.0, %v1723
        %v1725 = vpop.f32.mrb[0].mxu0
        %v1726 = vpop.f32.mrb[0].mxu0
        %v1727 = vpop.f32.mrb[0].mxu0
        %1728 = vdwg.mxu0
        %v1729 = vpack.c.bf16 %v1724, %v1724
        %v1730 = vld [vmem:[%s13] sm:$0xf]
        %v1731 = vld [vmem:[%s13 + $0x4] sm:$0xf]
        %v1732 = vld [vmem:[%s13 + $0x8] sm:$0xf]
        %v1733 = vld [vmem:[%s13 + $0xc] sm:$0xf]
        %v1734 = vld [vmem:[%s13 + $0x10] sm:$0xf]
        %v1735 = vld [vmem:[%s13 + $0x14] sm:$0xf]
        %v1736 = vld [vmem:[%s13 + $0x18] sm:$0xf]
        %v1737 = vld [vmem:[%s13 + $0x1c] sm:$0xf]
        %v1746 = vunpack.c.l.b16 %v1730
        %v1747 = vunpack.c.l.b16 %v1731
        %v1748 = vunpack.c.l.b16 %v1732
        %v1749 = vunpack.c.l.b16 %v1733
        %v1750 = vunpack.c.l.b16 %v1734
        %v1751 = vunpack.c.l.b16 %v1735
        %v1752 = vunpack.c.l.b16 %v1736
        %v1753 = vunpack.c.l.b16 %v1737
        %v1754 = vpack.c.b16 %v1747, %v1746
        %v1755 = vpack.c.b16 %v1749, %v1748
        %v1756 = vpack.c.b16 %v1751, %v1750
        %v1757 = vpack.c.b16 %v1753, %v1752
        %v1763 = vsel %vm1176, %v1729, 0
        %1765 = vmatprep.subr.bf16.mxu0 0
        %1766 = vmatpush1.bf16.msra.mxu0 %v1754
        %1767 = vmatprep.subr.bf16.mxu0 0
        %1768 = vmatpush1.bf16.msra.mxu0 %v1755
        %1769 = vmatprep.subr.bf16.mxu0 0
        %1770 = vmatpush1.bf16.msra.mxu0 %v1756
        %1771 = vmatprep.subr.bf16.mxu0 0
        %1772 = vmatpush1.bf16.msra.mxu0 %v1757
        %1773 = vmatprep.subr.bf16.mxu0 0
        %1774 = vmatpush1.bf16.msra.mxu0 0
        %1775 = vmatprep.subr.bf16.mxu0 0
        %1776 = vmatpush1.bf16.msra.mxu0 0
        %1777 = vmatprep.subr.bf16.mxu0 0
        %1778 = vmatpush1.bf16.msra.mxu0 0
        %1779 = vmatprep.subr.bf16.mxu0 0
        %1780 = vmatpush1.bf16.msra.mxu0 0
        %1781 = vmatprep.subr.bf16.mxu0 0
        %1782 = vmatpush1.bf16.msra.mxu0 0
        %1783 = vmatprep.subr.bf16.mxu0 0
        %1784 = vmatpush1.bf16.msra.mxu0 0
        %1785 = vmatprep.subr.bf16.mxu0 0
        %1786 = vmatpush1.bf16.msra.mxu0 0
        %1787 = vmatprep.subr.bf16.mxu0 0
        %1788 = vmatpush1.bf16.msra.mxu0 0
        %1789 = vmatprep.subr.bf16.mxu0 0
        %1790 = vmatpush1.bf16.msra.mxu0 0
        %1791 = vmatprep.subr.bf16.mxu0 0
        %1792 = vmatpush1.bf16.msra.mxu0 0
        %1793 = vmatprep.subr.bf16.mxu0 0
        %1794 = vmatpush1.bf16.msra.mxu0 0
        %1795 = vmatprep.subr.bf16.mxu0 0
        %1796 = vmatpush1.bf16.msra.mxu0 0
        %1797 = vmatprep.mubr.bf16.mxu0 0
        %1798 = vmatmul.mubr.bf16.gmra.mrb[0].mxu0 %v1763
        %v1799 = vpop.f32.mrb[0].mxu0
        %v1800 = vadd.f32 0.0, %v1799
        %v1801 = vpop.f32.mrb[0].mxu0
        %v1802 = vpop.f32.mrb[0].mxu0
        %v1803 = vpop.f32.mrb[0].mxu0
        %1804 = vdwg.mxu0
        %v1806 = vlaneseq
        %v1807 = vshrl.u32 %v1806, 7
        %v1808 = vsub.s32 0, %v1807
        %v1809 = vrot.slane %v1683, %v1808
        %v1811 = vadd.f32 %v1809, %v1800
        %s1812 = scalar_lea.vmem %s10, 2
        %v1813 = vld [vmem:[%s1812] sm:$0x3]
        %v1815 = vsel %vm1685, %v1813, 0
        %1817 = vmatprep.subr.bf16.mxu0 0
        %1818 = vmatpush1.bf16.msra.mxu0 %v1682
        %1819 = vmatprep.subr.bf16.mxu0 0
        %1820 = vmatpush1.bf16.msra.mxu0 0
        %1821 = vmatprep.subr.bf16.mxu0 0
        %1822 = vmatpush1.bf16.msra.mxu0 0
        %1823 = vmatprep.subr.bf16.mxu0 0
        %1824 = vmatpush1.bf16.msra.mxu0 0
        %1825 = vmatprep.subr.bf16.mxu0 0
        %1826 = vmatpush1.bf16.msra.mxu0 0
        %1827 = vmatprep.subr.bf16.mxu0 0
        %1828 = vmatpush1.bf16.msra.mxu0 0
        %1829 = vmatprep.subr.bf16.mxu0 0
        %1830 = vmatpush1.bf16.msra.mxu0 0
        %1831 = vmatprep.subr.bf16.mxu0 0
        %1832 = vmatpush1.bf16.msra.mxu0 0
        %1833 = vmatprep.subr.bf16.mxu0 0
        %1834 = vmatpush1.bf16.msra.mxu0 0
        %1835 = vmatprep.subr.bf16.mxu0 0
        %1836 = vmatpush1.bf16.msra.mxu0 0
        %1837 = vmatprep.subr.bf16.mxu0 0
        %1838 = vmatpush1.bf16.msra.mxu0 0
        %1839 = vmatprep.subr.bf16.mxu0 0
        %1840 = vmatpush1.bf16.msra.mxu0 0
        %1841 = vmatprep.subr.bf16.mxu0 0
        %1842 = vmatpush1.bf16.msra.mxu0 0
        %1843 = vmatprep.subr.bf16.mxu0 0
        %1844 = vmatpush1.bf16.msra.mxu0 0
        %1845 = vmatprep.subr.bf16.mxu0 0
        %1846 = vmatpush1.bf16.msra.mxu0 0
        %1847 = vmatprep.subr.bf16.mxu0 0
        %1848 = vmatpush1.bf16.msra.mxu0 0
        %1849 = vmatprep.mubr.bf16.mxu0 0
        %1850 = vmatmul.mubr.bf16.gmra.mrb[0].mxu0 %v1815
        %v1851 = vpop.f32.mrb[0].mxu0
        %v1852 = vadd.f32 0.0, %v1851
        %v1853 = vpop.f32.mrb[0].mxu0
        %v1854 = vpop.f32.mrb[0].mxu0
        %v1855 = vpop.f32.mrb[0].mxu0
        %1856 = vdwg.mxu0
        %v1857 = vpack.c.bf16 %v1852, %v1852
        %v1858 = vld [vmem:[%s13 + $0x20] sm:$0xf]
        %v1859 = vld [vmem:[%s13 + $0x24] sm:$0xf]
        %v1860 = vld [vmem:[%s13 + $0x28] sm:$0xf]
        %v1861 = vld [vmem:[%s13 + $0x2c] sm:$0xf]
        %v1862 = vld [vmem:[%s13 + $0x30] sm:$0xf]
        %v1863 = vld [vmem:[%s13 + $0x34] sm:$0xf]
        %v1864 = vld [vmem:[%s13 + $0x38] sm:$0xf]
        %v1865 = vld [vmem:[%s13 + $0x3c] sm:$0xf]
        %v1874 = vunpack.c.l.b16 %v1858
        %v1875 = vunpack.c.l.b16 %v1859
        %v1876 = vunpack.c.l.b16 %v1860
        %v1877 = vunpack.c.l.b16 %v1861
        %v1878 = vunpack.c.l.b16 %v1862
        %v1879 = vunpack.c.l.b16 %v1863
        %v1880 = vunpack.c.l.b16 %v1864
        %v1881 = vunpack.c.l.b16 %v1865
        %v1882 = vpack.c.b16 %v1875, %v1874
        %v1883 = vpack.c.b16 %v1877, %v1876
        %v1884 = vpack.c.b16 %v1879, %v1878
        %v1885 = vpack.c.b16 %v1881, %v1880
        %v1891 = vsel %vm1176, %v1857, 0
        %1893 = vmatprep.subr.bf16.mxu0 0
        %1894 = vmatpush1.bf16.msra.mxu0 %v1882
        %1895 = vmatprep.subr.bf16.mxu0 0
        %1896 = vmatpush1.bf16.msra.mxu0 %v1883
        %1897 = vmatprep.subr.bf16.mxu0 0
        %1898 = vmatpush1.bf16.msra.mxu0 %v1884
        %1899 = vmatprep.subr.bf16.mxu0 0
        %1900 = vmatpush1.bf16.msra.mxu0 %v1885
        %1901 = vmatprep.subr.bf16.mxu0 0
        %1902 = vmatpush1.bf16.msra.mxu0 0
        %1903 = vmatprep.subr.bf16.mxu0 0
        %1904 = vmatpush1.bf16.msra.mxu0 0
        %1905 = vmatprep.subr.bf16.mxu0 0
        %1906 = vmatpush1.bf16.msra.mxu0 0
        %1907 = vmatprep.subr.bf16.mxu0 0
        %1908 = vmatpush1.bf16.msra.mxu0 0
        %1909 = vmatprep.subr.bf16.mxu0 0
        %1910 = vmatpush1.bf16.msra.mxu0 0
        %1911 = vmatprep.subr.bf16.mxu0 0
        %1912 = vmatpush1.bf16.msra.mxu0 0
        %1913 = vmatprep.subr.bf16.mxu0 0
        %1914 = vmatpush1.bf16.msra.mxu0 0
        %1915 = vmatprep.subr.bf16.mxu0 0
        %1916 = vmatpush1.bf16.msra.mxu0 0
        %1917 = vmatprep.subr.bf16.mxu0 0
        %1918 = vmatpush1.bf16.msra.mxu0 0
        %1919 = vmatprep.subr.bf16.mxu0 0
        %1920 = vmatpush1.bf16.msra.mxu0 0
        %1921 = vmatprep.subr.bf16.mxu0 0
        %1922 = vmatpush1.bf16.msra.mxu0 0
        %1923 = vmatprep.subr.bf16.mxu0 0
        %1924 = vmatpush1.bf16.msra.mxu0 0
        %1925 = vmatprep.mubr.bf16.mxu0 0
        %1926 = vmatmul.mubr.bf16.gmra.mrb[0].mxu0 %v1891
        %v1927 = vpop.f32.mrb[0].mxu0
        %v1928 = vadd.f32 0.0, %v1927
        %v1929 = vpop.f32.mrb[0].mxu0
        %v1930 = vpop.f32.mrb[0].mxu0
        %v1931 = vpop.f32.mrb[0].mxu0
        %1932 = vdwg.mxu0
        %v1933 = vadd.f32 %v1811, %v1928
        %s1934 = scalar_lea.vmem %s10, 4
        %v1935 = vld [vmem:[%s1934] sm:$0x3]
        %v1937 = vsel %vm1685, %v1935, 0
        %1939 = vmatprep.subr.bf16.mxu0 0
        %1940 = vmatpush1.bf16.msra.mxu0 %v1682
        %1941 = vmatprep.subr.bf16.mxu0 0
        %1942 = vmatpush1.bf16.msra.mxu0 0
        %1943 = vmatprep.subr.bf16.mxu0 0
        %1944 = vmatpush1.bf16.msra.mxu0 0
        %1945 = vmatprep.subr.bf16.mxu0 0
        %1946 = vmatpush1.bf16.msra.mxu0 0
        %1947 = vmatprep.subr.bf16.mxu0 0
        %1948 = vmatpush1.bf16.msra.mxu0 0
        %1949 = vmatprep.subr.bf16.mxu0 0
        %1950 = vmatpush1.bf16.msra.mxu0 0
        %1951 = vmatprep.subr.bf16.mxu0 0
        %1952 = vmatpush1.bf16.msra.mxu0 0
        %1953 = vmatprep.subr.bf16.mxu0 0
        %1954 = vmatpush1.bf16.msra.mxu0 0
        %1955 = vmatprep.subr.bf16.mxu0 0
        %1956 = vmatpush1.bf16.msra.mxu0 0
        %1957 = vmatprep.subr.bf16.mxu0 0
        %1958 = vmatpush1.bf16.msra.mxu0 0
        %1959 = vmatprep.subr.bf16.mxu0 0
        %1960 = vmatpush1.bf16.msra.mxu0 0
        %1961 = vmatprep.subr.bf16.mxu0 0
        %1962 = vmatpush1.bf16.msra.mxu0 0
        %1963 = vmatprep.subr.bf16.mxu0 0
        %1964 = vmatpush1.bf16.msra.mxu0 0
        %1965 = vmatprep.subr.bf16.mxu0 0
        %1966 = vmatpush1.bf16.msra.mxu0 0
        %1967 = vmatprep.subr.bf16.mxu0 0
        %1968 = vmatpush1.bf16.msra.mxu0 0
        %1969 = vmatprep.subr.bf16.mxu0 0
        %1970 = vmatpush1.bf16.msra.mxu0 0
        %1971 = vmatprep.mubr.bf16.mxu0 0
        %1972 = vmatmul.mubr.bf16.gmra.mrb[0].mxu0 %v1937
        %v1973 = vpop.f32.mrb[0].mxu0
        %v1974 = vadd.f32 0.0, %v1973
        %v1975 = vpop.f32.mrb[0].mxu0
        %v1976 = vpop.f32.mrb[0].mxu0
        %v1977 = vpop.f32.mrb[0].mxu0
        %1978 = vdwg.mxu0
        %v1979 = vpack.c.bf16 %v1974, %v1974
        %v1980 = vld [vmem:[%s13 + $0x40] sm:$0xf]
        %v1981 = vld [vmem:[%s13 + $0x44] sm:$0xf]
        %v1982 = vld [vmem:[%s13 + $0x48] sm:$0xf]
        %v1983 = vld [vmem:[%s13 + $0x4c] sm:$0xf]
        %v1984 = vld [vmem:[%s13 + $0x50] sm:$0xf]
        %v1985 = vld [vmem:[%s13 + $0x54] sm:$0xf]
        %v1986 = vld [vmem:[%s13 + $0x58] sm:$0xf]
        %v1987 = vld [vmem:[%s13 + $0x5c] sm:$0xf]
        %v1996 = vunpack.c.l.b16 %v1980
        %v1997 = vunpack.c.l.b16 %v1981
        %v1998 = vunpack.c.l.b16 %v1982
        %v1999 = vunpack.c.l.b16 %v1983
        %v2000 = vunpack.c.l.b16 %v1984
        %v2001 = vunpack.c.l.b16 %v1985
        %v2002 = vunpack.c.l.b16 %v1986
        %v2003 = vunpack.c.l.b16 %v1987
        %v2004 = vpack.c.b16 %v1997, %v1996
        %v2005 = vpack.c.b16 %v1999, %v1998
        %v2006 = vpack.c.b16 %v2001, %v2000
        %v2007 = vpack.c.b16 %v2003, %v2002
        %v2013 = vsel %vm1176, %v1979, 0
        %2015 = vmatprep.subr.bf16.mxu0 0
        %2016 = vmatpush1.bf16.msra.mxu0 %v2004
        %2017 = vmatprep.subr.bf16.mxu0 0
        %2018 = vmatpush1.bf16.msra.mxu0 %v2005
        %2019 = vmatprep.subr.bf16.mxu0 0
        %2020 = vmatpush1.bf16.msra.mxu0 %v2006
        %2021 = vmatprep.subr.bf16.mxu0 0
        %2022 = vmatpush1.bf16.msra.mxu0 %v2007
        %2023 = vmatprep.subr.bf16.mxu0 0
        %2024 = vmatpush1.bf16.msra.mxu0 0
        %2025 = vmatprep.subr.bf16.mxu0 0
        %2026 = vmatpush1.bf16.msra.mxu0 0
        %2027 = vmatprep.subr.bf16.mxu0 0
        %2028 = vmatpush1.bf16.msra.mxu0 0
        %2029 = vmatprep.subr.bf16.mxu0 0
        %2030 = vmatpush1.bf16.msra.mxu0 0
        %2031 = vmatprep.subr.bf16.mxu0 0
        %2032 = vmatpush1.bf16.msra.mxu0 0
        %2033 = vmatprep.subr.bf16.mxu0 0
        %2034 = vmatpush1.bf16.msra.mxu0 0
        %2035 = vmatprep.subr.bf16.mxu0 0
        %2036 = vmatpush1.bf16.msra.mxu0 0
        %2037 = vmatprep.subr.bf16.mxu0 0
        %2038 = vmatpush1.bf16.msra.mxu0 0
        %2039 = vmatprep.subr.bf16.mxu0 0
        %2040 = vmatpush1.bf16.msra.mxu0 0
        %2041 = vmatprep.subr.bf16.mxu0 0
        %2042 = vmatpush1.bf16.msra.mxu0 0
        %2043 = vmatprep.subr.bf16.mxu0 0
        %2044 = vmatpush1.bf16.msra.mxu0 0
        %2045 = vmatprep.subr.bf16.mxu0 0
        %2046 = vmatpush1.bf16.msra.mxu0 0
        %2047 = vmatprep.mubr.bf16.mxu0 0
        %2048 = vmatmul.mubr.bf16.gmra.mrb[0].mxu0 %v2013
        %v2049 = vpop.f32.mrb[0].mxu0
        %v2050 = vadd.f32 0.0, %v2049
        %v2051 = vpop.f32.mrb[0].mxu0
        %v2052 = vpop.f32.mrb[0].mxu0
        %v2053 = vpop.f32.mrb[0].mxu0
        %2054 = vdwg.mxu0
        %v2055 = vadd.f32 %v1933, %v2050
        %s2056 = scalar_lea.vmem %s10, 6
        %v2057 = vld [vmem:[%s2056] sm:$0x3]
        %v2059 = vsel %vm1685, %v2057, 0
        %2061 = vmatprep.subr.bf16.mxu0 0
        %2062 = vmatpush1.bf16.msra.mxu0 %v1682
        %2063 = vmatprep.subr.bf16.mxu0 0
        %2064 = vmatpush1.bf16.msra.mxu0 0
        %2065 = vmatprep.subr.bf16.mxu0 0
        %2066 = vmatpush1.bf16.msra.mxu0 0
        %2067 = vmatprep.subr.bf16.mxu0 0
        %2068 = vmatpush1.bf16.msra.mxu0 0
        %2069 = vmatprep.subr.bf16.mxu0 0
        %2070 = vmatpush1.bf16.msra.mxu0 0
        %2071 = vmatprep.subr.bf16.mxu0 0
        %2072 = vmatpush1.bf16.msra.mxu0 0
        %2073 = vmatprep.subr.bf16.mxu0 0
        %2074 = vmatpush1.bf16.msra.mxu0 0
        %2075 = vmatprep.subr.bf16.mxu0 0
        %2076 = vmatpush1.bf16.msra.mxu0 0
        %2077 = vmatprep.subr.bf16.mxu0 0
        %2078 = vmatpush1.bf16.msra.mxu0 0
        %2079 = vmatprep.subr.bf16.mxu0 0
        %2080 = vmatpush1.bf16.msra.mxu0 0
        %2081 = vmatprep.subr.bf16.mxu0 0
        %2082 = vmatpush1.bf16.msra.mxu0 0
        %2083 = vmatprep.subr.bf16.mxu0 0
        %2084 = vmatpush1.bf16.msra.mxu0 0
        %2085 = vmatprep.subr.bf16.mxu0 0
        %2086 = vmatpush1.bf16.msra.mxu0 0
        %2087 = vmatprep.subr.bf16.mxu0 0
        %2088 = vmatpush1.bf16.msra.mxu0 0
        %2089 = vmatprep.subr.bf16.mxu0 0
        %2090 = vmatpush1.bf16.msra.mxu0 0
        %2091 = vmatprep.subr.bf16.mxu0 0
        %2092 = vmatpush1.bf16.msra.mxu0 0
        %2093 = vmatprep.mubr.bf16.mxu0 0
        %2094 = vmatmul.mubr.bf16.gmra.mrb[0].mxu0 %v2059
        %v2095 = vpop.f32.mrb[0].mxu0
        %v2096 = vadd.f32 0.0, %v2095
        %v2097 = vpop.f32.mrb[0].mxu0
        %v2098 = vpop.f32.mrb[0].mxu0
        %v2099 = vpop.f32.mrb[0].mxu0
        %2100 = vdwg.mxu0
        %v2101 = vpack.c.bf16 %v2096, %v2096
        %v2102 = vld [vmem:[%s13 + $0x60] sm:$0xf]
        %v2103 = vld [vmem:[%s13 + $0x64] sm:$0xf]
        %v2104 = vld [vmem:[%s13 + $0x68] sm:$0xf]
        %v2105 = vld [vmem:[%s13 + $0x6c] sm:$0xf]
        %v2106 = vld [vmem:[%s13 + $0x70] sm:$0xf]
        %v2107 = vld [vmem:[%s13 + $0x74] sm:$0xf]
        %v2108 = vld [vmem:[%s13 + $0x78] sm:$0xf]
        %v2109 = vld [vmem:[%s13 + $0x7c] sm:$0xf]
        %v2118 = vunpack.c.l.b16 %v2102
        %v2119 = vunpack.c.l.b16 %v2103
        %v2120 = vunpack.c.l.b16 %v2104
        %v2121 = vunpack.c.l.b16 %v2105
        %v2122 = vunpack.c.l.b16 %v2106
        %v2123 = vunpack.c.l.b16 %v2107
        %v2124 = vunpack.c.l.b16 %v2108
        %v2125 = vunpack.c.l.b16 %v2109
        %v2126 = vpack.c.b16 %v2119, %v2118
        %v2127 = vpack.c.b16 %v2121, %v2120
        %v2128 = vpack.c.b16 %v2123, %v2122
        %v2129 = vpack.c.b16 %v2125, %v2124
        %v2135 = vsel %vm1176, %v2101, 0
        %2137 = vmatprep.subr.bf16.mxu0 0
        %2138 = vmatpush1.bf16.msra.mxu0 %v2126
        %2139 = vmatprep.subr.bf16.mxu0 0
        %2140 = vmatpush1.bf16.msra.mxu0 %v2127
        %2141 = vmatprep.subr.bf16.mxu0 0
        %2142 = vmatpush1.bf16.msra.mxu0 %v2128
        %2143 = vmatprep.subr.bf16.mxu0 0
        %2144 = vmatpush1.bf16.msra.mxu0 %v2129
        %2145 = vmatprep.subr.bf16.mxu0 0
        %2146 = vmatpush1.bf16.msra.mxu0 0
        %2147 = vmatprep.subr.bf16.mxu0 0
        %2148 = vmatpush1.bf16.msra.mxu0 0
        %2149 = vmatprep.subr.bf16.mxu0 0
        %2150 = vmatpush1.bf16.msra.mxu0 0
        %2151 = vmatprep.subr.bf16.mxu0 0
        %2152 = vmatpush1.bf16.msra.mxu0 0
        %2153 = vmatprep.subr.bf16.mxu0 0
        %2154 = vmatpush1.bf16.msra.mxu0 0
        %2155 = vmatprep.subr.bf16.mxu0 0
        %2156 = vmatpush1.bf16.msra.mxu0 0
        %2157 = vmatprep.subr.bf16.mxu0 0
        %2158 = vmatpush1.bf16.msra.mxu0 0
        %2159 = vmatprep.subr.bf16.mxu0 0
        %2160 = vmatpush1.bf16.msra.mxu0 0
        %2161 = vmatprep.subr.bf16.mxu0 0
        %2162 = vmatpush1.bf16.msra.mxu0 0
        %2163 = vmatprep.subr.bf16.mxu0 0
        %2164 = vmatpush1.bf16.msra.mxu0 0
        %2165 = vmatprep.subr.bf16.mxu0 0
        %2166 = vmatpush1.bf16.msra.mxu0 0
        %2167 = vmatprep.subr.bf16.mxu0 0
        %2168 = vmatpush1.bf16.msra.mxu0 0
        %2169 = vmatprep.mubr.bf16.mxu0 0
        %2170 = vmatmul.mubr.bf16.gmra.mrb[0].mxu0 %v2135
        %v2171 = vpop.f32.mrb[0].mxu0
        %v2172 = vadd.f32 0.0, %v2171
        %v2173 = vpop.f32.mrb[0].mxu0
        %v2174 = vpop.f32.mrb[0].mxu0
        %v2175 = vpop.f32.mrb[0].mxu0
        %2176 = vdwg.mxu0
        %v2177 = vadd.f32 %v2055, %v2172
        %2178 = vst [vmem:[%s724] sm:$0xf] %v2177
        %v2179 = vld [vmem:[%s16] sm:$0x1]
        %v2180 = vld [vmem:[%s17] sm:$0x1]
        %vm2181 = vcmask 1043456
        %v2182 = vsel %vm2181, %v2177, 0.0
        %2183 = vadd.xlane.f32.xlu0 %v2182
        %v2184 = vpop.xlane.xlu0 %2183
        %v2185 = vrcp.pop 128.0
        %v2186 = vmul.f32 %v2184, %v2185
        %v2187 = vsub.f32 %v2177, %v2186
        %v2188 = vmul.f32 %v2187, %v2187
        %v2189 = vsel %vm2181, %v2188, 0.0
        %2190 = vadd.xlane.f32.xlu0 %v2189
        %v2191 = vpop.xlane.xlu0 %2190
        %v2192 = vmul.f32 %v2191, %v2185
        %v2193 = vadd.f32 %v2192, 1e-06
        %v2194 = vrsqrt.pop %v2193
        %v2195 = vmul.f32 %v2187, %v2194
        %v2197 = vlaneseq
        %v2198 = vshrl.u32 %v2197, 7
        %v2199 = vsub.s32 0, %v2198
        %v2200 = vrot.slane %v2179, %v2199
        %v2202 = vmul.f32 %v2195, %v2200
        %v2204 = vlaneseq
        %v2205 = vshrl.u32 %v2204, 7
        %v2206 = vsub.s32 0, %v2205
        %v2207 = vrot.slane %v2180, %v2206
        %v2209 = vadd.f32 %v2202, %v2207
        %v2210 = vpack.c.bf16 %v2209, %v2209
        %v2211 = vld [vmem:[%s19] sm:$0x3]
        %v2212 = vld [vmem:[%s15] sm:$0x1]
        %vm2213 = vcmask 31744
        %v2215 = vsel %vm2213, %v2212, 0
        %vm2217 = vcmask 1041408
        %v2219 = vsel %vm2217, %v2210, 0
        %2221 = vmatprep.subr.bf16.mxu0 0
        %2222 = vmatpush1.bf16.msra.mxu0 %v2219
        %2223 = vmatprep.subr.bf16.mxu0 0
        %2224 = vmatpush1.bf16.msra.mxu0 0
        %2225 = vmatprep.subr.bf16.mxu0 0
        %2226 = vmatpush1.bf16.msra.mxu0 0
        %2227 = vmatprep.subr.bf16.mxu0 0
        %2228 = vmatpush1.bf16.msra.mxu0 0
        %2229 = vmatprep.subr.bf16.mxu0 0
        %2230 = vmatpush1.bf16.msra.mxu0 0
        %2231 = vmatprep.subr.bf16.mxu0 0
        %2232 = vmatpush1.bf16.msra.mxu0 0
        %2233 = vmatprep.subr.bf16.mxu0 0
        %2234 = vmatpush1.bf16.msra.mxu0 0
        %2235 = vmatprep.subr.bf16.mxu0 0
        %2236 = vmatpush1.bf16.msra.mxu0 0
        %2237 = vmatprep.subr.bf16.mxu0 0
        %2238 = vmatpush1.bf16.msra.mxu0 0
        %2239 = vmatprep.subr.bf16.mxu0 0
        %2240 = vmatpush1.bf16.msra.mxu0 0
        %2241 = vmatprep.subr.bf16.mxu0 0
        %2242 = vmatpush1.bf16.msra.mxu0 0
        %2243 = vmatprep.subr.bf16.mxu0 0
        %2244 = vmatpush1.bf16.msra.mxu0 0
        %2245 = vmatprep.subr.bf16.mxu0 0
        %2246 = vmatpush1.bf16.msra.mxu0 0
        %2247 = vmatprep.subr.bf16.mxu0 0
        %2248 = vmatpush1.bf16.msra.mxu0 0
        %2249 = vmatprep.subr.bf16.mxu0 0
        %2250 = vmatpush1.bf16.msra.mxu0 0
        %2251 = vmatprep.subr.bf16.mxu0 0
        %2252 = vmatpush1.bf16.msra.mxu0 0
        %2253 = vmatprep.mubr.bf16.mxu0 0
        %2254 = vmatmul.mubr.bf16.gmra.mrb[0].mxu0 %v2215
        %v2255 = vpop.f32.mrb[0].mxu0
        %v2256 = vadd.f32 0.0, %v2255
        %v2257 = vpop.f32.mrb[0].mxu0
        %v2258 = vpop.f32.mrb[0].mxu0
        %v2259 = vpop.f32.mrb[0].mxu0
        %2260 = vdwg.mxu0
        %v2261 = vpack.c.bf16 %v2256, %v2256
        %v2262 = vld [vmem:[%s18] sm:$0xff]
        %v2263 = vld [vmem:[%s18 + $0x8] sm:$0xff]
        %v2264 = vld [vmem:[%s18 + $0x10] sm:$0xff]
        %v2265 = vld [vmem:[%s18 + $0x18] sm:$0xff]
        %v2266 = vld [vmem:[%s18 + $0x20] sm:$0xff]
        %v2267 = vld [vmem:[%s18 + $0x28] sm:$0xff]
        %v2268 = vld [vmem:[%s18 + $0x30] sm:$0xff]
        %v2269 = vld [vmem:[%s18 + $0x38] sm:$0xff]
        %v2270 = vld [vmem:[%s18 + $0x40] sm:$0xff]
        %v2271 = vld [vmem:[%s18 + $0x48] sm:$0xff]
        %v2272 = vld [vmem:[%s18 + $0x50] sm:$0xff]
        %v2273 = vld [vmem:[%s18 + $0x58] sm:$0xff]
        %v2274 = vld [vmem:[%s18 + $0x60] sm:$0xff]
        %v2275 = vld [vmem:[%s18 + $0x68] sm:$0xff]
        %v2276 = vld [vmem:[%s18 + $0x70] sm:$0xff]
        %v2277 = vld [vmem:[%s18 + $0x78] sm:$0xff]
        %v2294 = vunpack.c.l.b16 %v2262
        %v2295 = vunpack.c.h.b16 %v2262
        %v2296 = vunpack.c.l.b16 %v2263
        %v2297 = vunpack.c.h.b16 %v2263
        %v2298 = vunpack.c.l.b16 %v2264
        %v2299 = vunpack.c.h.b16 %v2264
        %v2300 = vunpack.c.l.b16 %v2265
        %v2301 = vunpack.c.h.b16 %v2265
        %v2302 = vunpack.c.l.b16 %v2266
        %v2303 = vunpack.c.h.b16 %v2266
        %v2304 = vunpack.c.l.b16 %v2267
        %v2305 = vunpack.c.h.b16 %v2267
        %v2306 = vunpack.c.l.b16 %v2268
        %v2307 = vunpack.c.h.b16 %v2268
        %v2308 = vunpack.c.l.b16 %v2269
        %v2309 = vunpack.c.h.b16 %v2269
        %v2310 = vunpack.c.l.b16 %v2270
        %v2311 = vunpack.c.h.b16 %v2270
        %v2312 = vunpack.c.l.b16 %v2271
        %v2313 = vunpack.c.h.b16 %v2271
        %v2314 = vunpack.c.l.b16 %v2272
        %v2315 = vunpack.c.h.b16 %v2272
        %v2316 = vunpack.c.l.b16 %v2273
        %v2317 = vunpack.c.h.b16 %v2273
        %v2318 = vunpack.c.l.b16 %v2274
        %v2319 = vunpack.c.h.b16 %v2274
        %v2320 = vunpack.c.l.b16 %v2275
        %v2321 = vunpack.c.h.b16 %v2275
        %v2322 = vunpack.c.l.b16 %v2276
        %v2323 = vunpack.c.h.b16 %v2276
        %v2324 = vunpack.c.l.b16 %v2277
        %v2325 = vunpack.c.h.b16 %v2277
        %v2326 = vpack.c.b16 %v2296, %v2294
        %v2327 = vpack.c.b16 %v2297, %v2295
        %v2328 = vpack.c.b16 %v2300, %v2298
        %v2329 = vpack.c.b16 %v2301, %v2299
        %v2330 = vpack.c.b16 %v2304, %v2302
        %v2331 = vpack.c.b16 %v2305, %v2303
        %v2332 = vpack.c.b16 %v2308, %v2306
        %v2333 = vpack.c.b16 %v2309, %v2307
        %v2334 = vpack.c.b16 %v2312, %v2310
        %v2335 = vpack.c.b16 %v2313, %v2311
        %v2336 = vpack.c.b16 %v2316, %v2314
        %v2337 = vpack.c.b16 %v2317, %v2315
        %v2338 = vpack.c.b16 %v2320, %v2318
        %v2339 = vpack.c.b16 %v2321, %v2319
        %v2340 = vpack.c.b16 %v2324, %v2322
        %v2341 = vpack.c.b16 %v2325, %v2323
        %2358 = vmatprep.subr.bf16.mxu0 %v2327
        %2359 = vmatpush1.bf16.msra.mxu0 %v2326
        %2360 = vmatprep.subr.bf16.mxu0 %v2329
        %2361 = vmatpush1.bf16.msra.mxu0 %v2328
        %2362 = vmatprep.subr.bf16.mxu0 %v2331
        %2363 = vmatpush1.bf16.msra.mxu0 %v2330
        %2364 = vmatprep.subr.bf16.mxu0 %v2333
        %2365 = vmatpush1.bf16.msra.mxu0 %v2332
        %2366 = vmatprep.subr.bf16.mxu0 %v2335
        %2367 = vmatpush1.bf16.msra.mxu0 %v2334
        %2368 = vmatprep.subr.bf16.mxu0 %v2337
        %2369 = vmatpush1.bf16.msra.mxu0 %v2336
        %2370 = vmatprep.subr.bf16.mxu0 %v2339
        %2371 = vmatpush1.bf16.msra.mxu0 %v2338
        %2372 = vmatprep.subr.bf16.mxu0 %v2341
        %2373 = vmatpush1.bf16.msra.mxu0 %v2340
        %2374 = vmatprep.subr.bf16.mxu0 0
        %2375 = vmatpush1.bf16.msra.mxu0 0
        %2376 = vmatprep.subr.bf16.mxu0 0
        %2377 = vmatpush1.bf16.msra.mxu0 0
        %2378 = vmatprep.subr.bf16.mxu0 0
        %2379 = vmatpush1.bf16.msra.mxu0 0
        %2380 = vmatprep.subr.bf16.mxu0 0
        %2381 = vmatpush1.bf16.msra.mxu0 0
        %2382 = vmatprep.subr.bf16.mxu0 0
        %2383 = vmatpush1.bf16.msra.mxu0 0
        %2384 = vmatprep.subr.bf16.mxu0 0
        %2385 = vmatpush1.bf16.msra.mxu0 0
        %2386 = vmatprep.subr.bf16.mxu0 0
        %2387 = vmatpush1.bf16.msra.mxu0 0
        %2388 = vmatprep.subr.bf16.mxu0 0
        %2389 = vmatpush1.bf16.msra.mxu0 0
        %2390 = vmatprep.mubr.bf16.mxu0 0
        %2391 = vmatmul.mubr.bf16.gmra.mrb[0].mxu0 %v2261
        %v2392 = vpop.f32.mrb[0].mxu0
        %v2393 = vadd.f32 0.0, %v2392
        %v2394 = vpop.f32.mrb[0].mxu0
        %v2395 = vadd.f32 0.0, %v2394
        %v2396 = vpop.f32.mrb[0].mxu0
        %v2397 = vpop.f32.mrb[0].mxu0
        %2398 = vdwg.mxu0
        %v2401 = vcombine.low %v2393, %v2395
        %v2403 = vunpack.c.l.s4 1966171168
        %v2404 = vunpack.c.0.s8 %v2403
        %v2405 = vlaneseq
        %v2406 = vshrl.u32 %v2405, 7
        %v2407 = vsub.s32 %v2404, %v2406
        %v2408 = vrot.slane %v2401, %v2407
        %v2410 = vunpack.c.l.s4 1966171168
        %v2411 = vunpack.c.0.s8 %v2410
        %v2412 = vlaneseq
        %v2413 = vshrl.u32 %v2412, 7
        %v2414 = vsub.s32 %v2411, %v2413
        %v2415 = vrot.slane %v2408, %v2414
        %v2417 = vadd.f32 %v2211, %v2415
        %s2418 = scalar_lea.vmem %s15, 1
        %v2419 = vld [vmem:[%s2418] sm:$0x1]
        %v2421 = vsel %vm2213, %v2419, 0
        %2423 = vmatprep.subr.bf16.mxu0 0
        %2424 = vmatpush1.bf16.msra.mxu0 %v2219
        %2425 = vmatprep.subr.bf16.mxu0 0
        %2426 = vmatpush1.bf16.msra.mxu0 0
        %2427 = vmatprep.subr.bf16.mxu0 0
        %2428 = vmatpush1.bf16.msra.mxu0 0
        %2429 = vmatprep.subr.bf16.mxu0 0
        %2430 = vmatpush1.bf16.msra.mxu0 0
        %2431 = vmatprep.subr.bf16.mxu0 0
        %2432 = vmatpush1.bf16.msra.mxu0 0
        %2433 = vmatprep.subr.bf16.mxu0 0
        %2434 = vmatpush1.bf16.msra.mxu0 0
        %2435 = vmatprep.subr.bf16.mxu0 0
        %2436 = vmatpush1.bf16.msra.mxu0 0
        %2437 = vmatprep.subr.bf16.mxu0 0
        %2438 = vmatpush1.bf16.msra.mxu0 0
        %2439 = vmatprep.subr.bf16.mxu0 0
        %2440 = vmatpush1.bf16.msra.mxu0 0
        %2441 = vmatprep.subr.bf16.mxu0 0
        %2442 = vmatpush1.bf16.msra.mxu0 0
        %2443 = vmatprep.subr.bf16.mxu0 0
        %2444 = vmatpush1.bf16.msra.mxu0 0
        %2445 = vmatprep.subr.bf16.mxu0 0
        %2446 = vmatpush1.bf16.msra.mxu0 0
        %2447 = vmatprep.subr.bf16.mxu0 0
        %2448 = vmatpush1.bf16.msra.mxu0 0
        %2449 = vmatprep.subr.bf16.mxu0 0
        %2450 = vmatpush1.bf16.msra.mxu0 0
        %2451 = vmatprep.subr.bf16.mxu0 0
        %2452 = vmatpush1.bf16.msra.mxu0 0
        %2453 = vmatprep.subr.bf16.mxu0 0
        %2454 = vmatpush1.bf16.msra.mxu0 0
        %2455 = vmatprep.mubr.bf16.mxu0 0
        %2456 = vmatmul.mubr.bf16.gmra.mrb[0].mxu0 %v2421
        %v2457 = vpop.f32.mrb[0].mxu0
        %v2458 = vadd.f32 0.0, %v2457
        %v2459 = vpop.f32.mrb[0].mxu0
        %v2460 = vpop.f32.mrb[0].mxu0
        %v2461 = vpop.f32.mrb[0].mxu0
        %2462 = vdwg.mxu0
        %v2463 = vpack.c.bf16 %v2458, %v2458
        %v2464 = vld [vmem:[%s18 + $0x80] sm:$0xff]
        %v2465 = vld [vmem:[%s18 + $0x88] sm:$0xff]
        %v2466 = vld [vmem:[%s18 + $0x90] sm:$0xff]
        %v2467 = vld [vmem:[%s18 + $0x98] sm:$0xff]
        %v2468 = vld [vmem:[%s18 + $0xa0] sm:$0xff]
        %v2469 = vld [vmem:[%s18 + $0xa8] sm:$0xff]
        %v2470 = vld [vmem:[%s18 + $0xb0] sm:$0xff]
        %v2471 = vld [vmem:[%s18 + $0xb8] sm:$0xff]
        %v2472 = vld [vmem:[%s18 + $0xc0] sm:$0xff]
        %v2473 = vld [vmem:[%s18 + $0xc8] sm:$0xff]
        %v2474 = vld [vmem:[%s18 + $0xd0] sm:$0xff]
        %v2475 = vld [vmem:[%s18 + $0xd8] sm:$0xff]
        %v2476 = vld [vmem:[%s18 + $0xe0] sm:$0xff]
        %v2477 = vld [vmem:[%s18 + $0xe8] sm:$0xff]
        %v2478 = vld [vmem:[%s18 + $0xf0] sm:$0xff]
        %v2479 = vld [vmem:[%s18 + $0xf8] sm:$0xff]
        %v2496 = vunpack.c.l.b16 %v2464
        %v2497 = vunpack.c.h.b16 %v2464
        %v2498 = vunpack.c.l.b16 %v2465
        %v2499 = vunpack.c.h.b16 %v2465
        %v2500 = vunpack.c.l.b16 %v2466
        %v2501 = vunpack.c.h.b16 %v2466
        %v2502 = vunpack.c.l.b16 %v2467
        %v2503 = vunpack.c.h.b16 %v2467
        %v2504 = vunpack.c.l.b16 %v2468
        %v2505 = vunpack.c.h.b16 %v2468
        %v2506 = vunpack.c.l.b16 %v2469
        %v2507 = vunpack.c.h.b16 %v2469
        %v2508 = vunpack.c.l.b16 %v2470
        %v2509 = vunpack.c.h.b16 %v2470
        %v2510 = vunpack.c.l.b16 %v2471
        %v2511 = vunpack.c.h.b16 %v2471
        %v2512 = vunpack.c.l.b16 %v2472
        %v2513 = vunpack.c.h.b16 %v2472
        %v2514 = vunpack.c.l.b16 %v2473
        %v2515 = vunpack.c.h.b16 %v2473
        %v2516 = vunpack.c.l.b16 %v2474
        %v2517 = vunpack.c.h.b16 %v2474
        %v2518 = vunpack.c.l.b16 %v2475
        %v2519 = vunpack.c.h.b16 %v2475
        %v2520 = vunpack.c.l.b16 %v2476
        %v2521 = vunpack.c.h.b16 %v2476
        %v2522 = vunpack.c.l.b16 %v2477
        %v2523 = vunpack.c.h.b16 %v2477
        %v2524 = vunpack.c.l.b16 %v2478
        %v2525 = vunpack.c.h.b16 %v2478
        %v2526 = vunpack.c.l.b16 %v2479
        %v2527 = vunpack.c.h.b16 %v2479
        %v2528 = vpack.c.b16 %v2498, %v2496
        %v2529 = vpack.c.b16 %v2499, %v2497
        %v2530 = vpack.c.b16 %v2502, %v2500
        %v2531 = vpack.c.b16 %v2503, %v2501
        %v2532 = vpack.c.b16 %v2506, %v2504
        %v2533 = vpack.c.b16 %v2507, %v2505
        %v2534 = vpack.c.b16 %v2510, %v2508
        %v2535 = vpack.c.b16 %v2511, %v2509
        %v2536 = vpack.c.b16 %v2514, %v2512
        %v2537 = vpack.c.b16 %v2515, %v2513
        %v2538 = vpack.c.b16 %v2518, %v2516
        %v2539 = vpack.c.b16 %v2519, %v2517
        %v2540 = vpack.c.b16 %v2522, %v2520
        %v2541 = vpack.c.b16 %v2523, %v2521
        %v2542 = vpack.c.b16 %v2526, %v2524
        %v2543 = vpack.c.b16 %v2527, %v2525
        %2560 = vmatprep.subr.bf16.mxu0 %v2529
        %2561 = vmatpush1.bf16.msra.mxu0 %v2528
        %2562 = vmatprep.subr.bf16.mxu0 %v2531
        %2563 = vmatpush1.bf16.msra.mxu0 %v2530
        %2564 = vmatprep.subr.bf16.mxu0 %v2533
        %2565 = vmatpush1.bf16.msra.mxu0 %v2532
        %2566 = vmatprep.subr.bf16.mxu0 %v2535
        %2567 = vmatpush1.bf16.msra.mxu0 %v2534
        %2568 = vmatprep.subr.bf16.mxu0 %v2537
        %2569 = vmatpush1.bf16.msra.mxu0 %v2536
        %2570 = vmatprep.subr.bf16.mxu0 %v2539
        %2571 = vmatpush1.bf16.msra.mxu0 %v2538
        %2572 = vmatprep.subr.bf16.mxu0 %v2541
        %2573 = vmatpush1.bf16.msra.mxu0 %v2540
        %2574 = vmatprep.subr.bf16.mxu0 %v2543
        %2575 = vmatpush1.bf16.msra.mxu0 %v2542
        %2576 = vmatprep.subr.bf16.mxu0 0
        %2577 = vmatpush1.bf16.msra.mxu0 0
        %2578 = vmatprep.subr.bf16.mxu0 0
        %2579 = vmatpush1.bf16.msra.mxu0 0
        %2580 = vmatprep.subr.bf16.mxu0 0
        %2581 = vmatpush1.bf16.msra.mxu0 0
        %2582 = vmatprep.subr.bf16.mxu0 0
        %2583 = vmatpush1.bf16.msra.mxu0 0
        %2584 = vmatprep.subr.bf16.mxu0 0
        %2585 = vmatpush1.bf16.msra.mxu0 0
        %2586 = vmatprep.subr.bf16.mxu0 0
        %2587 = vmatpush1.bf16.msra.mxu0 0
        %2588 = vmatprep.subr.bf16.mxu0 0
        %2589 = vmatpush1.bf16.msra.mxu0 0
        %2590 = vmatprep.subr.bf16.mxu0 0
        %2591 = vmatpush1.bf16.msra.mxu0 0
        %2592 = vmatprep.mubr.bf16.mxu0 0
        %2593 = vmatmul.mubr.bf16.gmra.mrb[0].mxu0 %v2463
        %v2594 = vpop.f32.mrb[0].mxu0
        %v2595 = vadd.f32 0.0, %v2594
        %v2596 = vpop.f32.mrb[0].mxu0
        %v2597 = vadd.f32 0.0, %v2596
        %v2598 = vpop.f32.mrb[0].mxu0
        %v2599 = vpop.f32.mrb[0].mxu0
        %2600 = vdwg.mxu0
        %v2603 = vcombine.low %v2595, %v2597
        %v2605 = vunpack.c.l.s4 1966171168
        %v2606 = vunpack.c.0.s8 %v2605
        %v2607 = vlaneseq
        %v2608 = vshrl.u32 %v2607, 7
        %v2609 = vsub.s32 %v2606, %v2608
        %v2610 = vrot.slane %v2603, %v2609
        %v2612 = vunpack.c.l.s4 1966171168
        %v2613 = vunpack.c.0.s8 %v2612
        %v2614 = vlaneseq
        %v2615 = vshrl.u32 %v2614, 7
        %v2616 = vsub.s32 %v2613, %v2615
        %v2617 = vrot.slane %v2610, %v2616
        %v2619 = vadd.f32 %v2417, %v2617
        %s2620 = scalar_lea.vmem %s15, 2
        %v2621 = vld [vmem:[%s2620] sm:$0x1]
        %v2623 = vsel %vm2213, %v2621, 0
        %2625 = vmatprep.subr.bf16.mxu0 0
        %2626 = vmatpush1.bf16.msra.mxu0 %v2219
        %2627 = vmatprep.subr.bf16.mxu0 0
        %2628 = vmatpush1.bf16.msra.mxu0 0
        %2629 = vmatprep.subr.bf16.mxu0 0
        %2630 = vmatpush1.bf16.msra.mxu0 0
        %2631 = vmatprep.subr.bf16.mxu0 0
        %2632 = vmatpush1.bf16.msra.mxu0 0
        %2633 = vmatprep.subr.bf16.mxu0 0
        %2634 = vmatpush1.bf16.msra.mxu0 0
        %2635 = vmatprep.subr.bf16.mxu0 0
        %2636 = vmatpush1.bf16.msra.mxu0 0
        %2637 = vmatprep.subr.bf16.mxu0 0
        %2638 = vmatpush1.bf16.msra.mxu0 0
        %2639 = vmatprep.subr.bf16.mxu0 0
        %2640 = vmatpush1.bf16.msra.mxu0 0
        %2641 = vmatprep.subr.bf16.mxu0 0
        %2642 = vmatpush1.bf16.msra.mxu0 0
        %2643 = vmatprep.subr.bf16.mxu0 0
        %2644 = vmatpush1.bf16.msra.mxu0 0
        %2645 = vmatprep.subr.bf16.mxu0 0
        %2646 = vmatpush1.bf16.msra.mxu0 0
        %2647 = vmatprep.subr.bf16.mxu0 0
        %2648 = vmatpush1.bf16.msra.mxu0 0
        %2649 = vmatprep.subr.bf16.mxu0 0
        %2650 = vmatpush1.bf16.msra.mxu0 0
        %2651 = vmatprep.subr.bf16.mxu0 0
        %2652 = vmatpush1.bf16.msra.mxu0 0
        %2653 = vmatprep.subr.bf16.mxu0 0
        %2654 = vmatpush1.bf16.msra.mxu0 0
        %2655 = vmatprep.subr.bf16.mxu0 0
        %2656 = vmatpush1.bf16.msra.mxu0 0
        %2657 = vmatprep.mubr.bf16.mxu0 0
        %2658 = vmatmul.mubr.bf16.gmra.mrb[0].mxu0 %v2623
        %v2659 = vpop.f32.mrb[0].mxu0
        %v2660 = vadd.f32 0.0, %v2659
        %v2661 = vpop.f32.mrb[0].mxu0
        %v2662 = vpop.f32.mrb[0].mxu0
        %v2663 = vpop.f32.mrb[0].mxu0
        %2664 = vdwg.mxu0
        %v2665 = vpack.c.bf16 %v2660, %v2660
        %v2666 = vld [vmem:[%s18 + $0x100] sm:$0xff]
        %v2667 = vld [vmem:[%s18 + $0x108] sm:$0xff]
        %v2668 = vld [vmem:[%s18 + $0x110] sm:$0xff]
        %v2669 = vld [vmem:[%s18 + $0x118] sm:$0xff]
        %v2670 = vld [vmem:[%s18 + $0x120] sm:$0xff]
        %v2671 = vld [vmem:[%s18 + $0x128] sm:$0xff]
        %v2672 = vld [vmem:[%s18 + $0x130] sm:$0xff]
        %v2673 = vld [vmem:[%s18 + $0x138] sm:$0xff]
        %v2674 = vld [vmem:[%s18 + $0x140] sm:$0xff]
        %v2675 = vld [vmem:[%s18 + $0x148] sm:$0xff]
        %v2676 = vld [vmem:[%s18 + $0x150] sm:$0xff]
        %v2677 = vld [vmem:[%s18 + $0x158] sm:$0xff]
        %v2678 = vld [vmem:[%s18 + $0x160] sm:$0xff]
        %v2679 = vld [vmem:[%s18 + $0x168] sm:$0xff]
        %v2680 = vld [vmem:[%s18 + $0x170] sm:$0xff]
        %v2681 = vld [vmem:[%s18 + $0x178] sm:$0xff]
        %v2698 = vunpack.c.l.b16 %v2666
        %v2699 = vunpack.c.h.b16 %v2666
        %v2700 = vunpack.c.l.b16 %v2667
        %v2701 = vunpack.c.h.b16 %v2667
        %v2702 = vunpack.c.l.b16 %v2668
        %v2703 = vunpack.c.h.b16 %v2668
        %v2704 = vunpack.c.l.b16 %v2669
        %v2705 = vunpack.c.h.b16 %v2669
        %v2706 = vunpack.c.l.b16 %v2670
        %v2707 = vunpack.c.h.b16 %v2670
        %v2708 = vunpack.c.l.b16 %v2671
        %v2709 = vunpack.c.h.b16 %v2671
        %v2710 = vunpack.c.l.b16 %v2672
        %v2711 = vunpack.c.h.b16 %v2672
        %v2712 = vunpack.c.l.b16 %v2673
        %v2713 = vunpack.c.h.b16 %v2673
        %v2714 = vunpack.c.l.b16 %v2674
        %v2715 = vunpack.c.h.b16 %v2674
        %v2716 = vunpack.c.l.b16 %v2675
        %v2717 = vunpack.c.h.b16 %v2675
        %v2718 = vunpack.c.l.b16 %v2676
        %v2719 = vunpack.c.h.b16 %v2676
        %v2720 = vunpack.c.l.b16 %v2677
        %v2721 = vunpack.c.h.b16 %v2677
        %v2722 = vunpack.c.l.b16 %v2678
        %v2723 = vunpack.c.h.b16 %v2678
        %v2724 = vunpack.c.l.b16 %v2679
        %v2725 = vunpack.c.h.b16 %v2679
        %v2726 = vunpack.c.l.b16 %v2680
        %v2727 = vunpack.c.h.b16 %v2680
        %v2728 = vunpack.c.l.b16 %v2681
        %v2729 = vunpack.c.h.b16 %v2681
        %v2730 = vpack.c.b16 %v2700, %v2698
        %v2731 = vpack.c.b16 %v2701, %v2699
        %v2732 = vpack.c.b16 %v2704, %v2702
        %v2733 = vpack.c.b16 %v2705, %v2703
        %v2734 = vpack.c.b16 %v2708, %v2706
        %v2735 = vpack.c.b16 %v2709, %v2707
        %v2736 = vpack.c.b16 %v2712, %v2710
        %v2737 = vpack.c.b16 %v2713, %v2711
        %v2738 = vpack.c.b16 %v2716, %v2714
        %v2739 = vpack.c.b16 %v2717, %v2715
        %v2740 = vpack.c.b16 %v2720, %v2718
        %v2741 = vpack.c.b16 %v2721, %v2719
        %v2742 = vpack.c.b16 %v2724, %v2722
        %v2743 = vpack.c.b16 %v2725, %v2723
        %v2744 = vpack.c.b16 %v2728, %v2726
        %v2745 = vpack.c.b16 %v2729, %v2727
        %2762 = vmatprep.subr.bf16.mxu0 %v2731
        %2763 = vmatpush1.bf16.msra.mxu0 %v2730
        %2764 = vmatprep.subr.bf16.mxu0 %v2733
        %2765 = vmatpush1.bf16.msra.mxu0 %v2732
        %2766 = vmatprep.subr.bf16.mxu0 %v2735
        %2767 = vmatpush1.bf16.msra.mxu0 %v2734
        %2768 = vmatprep.subr.bf16.mxu0 %v2737
        %2769 = vmatpush1.bf16.msra.mxu0 %v2736
        %2770 = vmatprep.subr.bf16.mxu0 %v2739
        %2771 = vmatpush1.bf16.msra.mxu0 %v2738
        %2772 = vmatprep.subr.bf16.mxu0 %v2741
        %2773 = vmatpush1.bf16.msra.mxu0 %v2740
        %2774 = vmatprep.subr.bf16.mxu0 %v2743
        %2775 = vmatpush1.bf16.msra.mxu0 %v2742
        %2776 = vmatprep.subr.bf16.mxu0 %v2745
        %2777 = vmatpush1.bf16.msra.mxu0 %v2744
        %2778 = vmatprep.subr.bf16.mxu0 0
        %2779 = vmatpush1.bf16.msra.mxu0 0
        %2780 = vmatprep.subr.bf16.mxu0 0
        %2781 = vmatpush1.bf16.msra.mxu0 0
        %2782 = vmatprep.subr.bf16.mxu0 0
        %2783 = vmatpush1.bf16.msra.mxu0 0
        %2784 = vmatprep.subr.bf16.mxu0 0
        %2785 = vmatpush1.bf16.msra.mxu0 0
        %2786 = vmatprep.subr.bf16.mxu0 0
        %2787 = vmatpush1.bf16.msra.mxu0 0
        %2788 = vmatprep.subr.bf16.mxu0 0
        %2789 = vmatpush1.bf16.msra.mxu0 0
        %2790 = vmatprep.subr.bf16.mxu0 0
        %2791 = vmatpush1.bf16.msra.mxu0 0
        %2792 = vmatprep.subr.bf16.mxu0 0
        %2793 = vmatpush1.bf16.msra.mxu0 0
        %2794 = vmatprep.mubr.bf16.mxu0 0
        %2795 = vmatmul.mubr.bf16.gmra.mrb[0].mxu0 %v2665
        %v2796 = vpop.f32.mrb[0].mxu0
        %v2797 = vadd.f32 0.0, %v2796
        %v2798 = vpop.f32.mrb[0].mxu0
        %v2799 = vadd.f32 0.0, %v2798
        %v2800 = vpop.f32.mrb[0].mxu0
        %v2801 = vpop.f32.mrb[0].mxu0
        %2802 = vdwg.mxu0
        %v2805 = vcombine.low %v2797, %v2799
        %v2807 = vunpack.c.l.s4 1966171168
        %v2808 = vunpack.c.0.s8 %v2807
        %v2809 = vlaneseq
        %v2810 = vshrl.u32 %v2809, 7
        %v2811 = vsub.s32 %v2808, %v2810
        %v2812 = vrot.slane %v2805, %v2811
        %v2814 = vunpack.c.l.s4 1966171168
        %v2815 = vunpack.c.0.s8 %v2814
        %v2816 = vlaneseq
        %v2817 = vshrl.u32 %v2816, 7
        %v2818 = vsub.s32 %v2815, %v2817
        %v2819 = vrot.slane %v2812, %v2818
        %v2821 = vadd.f32 %v2619, %v2819
        %s2822 = scalar_lea.vmem %s15, 3
        %v2823 = vld [vmem:[%s2822] sm:$0x1]
        %v2825 = vsel %vm2213, %v2823, 0
        %2827 = vmatprep.subr.bf16.mxu0 0
        %2828 = vmatpush1.bf16.msra.mxu0 %v2219
        %2829 = vmatprep.subr.bf16.mxu0 0
        %2830 = vmatpush1.bf16.msra.mxu0 0
        %2831 = vmatprep.subr.bf16.mxu0 0
        %2832 = vmatpush1.bf16.msra.mxu0 0
        %2833 = vmatprep.subr.bf16.mxu0 0
        %2834 = vmatpush1.bf16.msra.mxu0 0
        %2835 = vmatprep.subr.bf16.mxu0 0
        %2836 = vmatpush1.bf16.msra.mxu0 0
        %2837 = vmatprep.subr.bf16.mxu0 0
        %2838 = vmatpush1.bf16.msra.mxu0 0
        %2839 = vmatprep.subr.bf16.mxu0 0
        %2840 = vmatpush1.bf16.msra.mxu0 0
        %2841 = vmatprep.subr.bf16.mxu0 0
        %2842 = vmatpush1.bf16.msra.mxu0 0
        %2843 = vmatprep.subr.bf16.mxu0 0
        %2844 = vmatpush1.bf16.msra.mxu0 0
        %2845 = vmatprep.subr.bf16.mxu0 0
        %2846 = vmatpush1.bf16.msra.mxu0 0
        %2847 = vmatprep.subr.bf16.mxu0 0
        %2848 = vmatpush1.bf16.msra.mxu0 0
        %2849 = vmatprep.subr.bf16.mxu0 0
        %2850 = vmatpush1.bf16.msra.mxu0 0
        %2851 = vmatprep.subr.bf16.mxu0 0
        %2852 = vmatpush1.bf16.msra.mxu0 0
        %2853 = vmatprep.subr.bf16.mxu0 0
        %2854 = vmatpush1.bf16.msra.mxu0 0
        %2855 = vmatprep.subr.bf16.mxu0 0
        %2856 = vmatpush1.bf16.msra.mxu0 0
        %2857 = vmatprep.subr.bf16.mxu0 0
        %2858 = vmatpush1.bf16.msra.mxu0 0
        %2859 = vmatprep.mubr.bf16.mxu0 0
        %2860 = vmatmul.mubr.bf16.gmra.mrb[0].mxu0 %v2825
        %v2861 = vpop.f32.mrb[0].mxu0
        %v2862 = vadd.f32 0.0, %v2861
        %v2863 = vpop.f32.mrb[0].mxu0
        %v2864 = vpop.f32.mrb[0].mxu0
        %v2865 = vpop.f32.mrb[0].mxu0
        %2866 = vdwg.mxu0
        %v2867 = vpack.c.bf16 %v2862, %v2862
        %v2868 = vld [vmem:[%s18 + $0x180] sm:$0xff]
        %v2869 = vld [vmem:[%s18 + $0x188] sm:$0xff]
        %v2870 = vld [vmem:[%s18 + $0x190] sm:$0xff]
        %v2871 = vld [vmem:[%s18 + $0x198] sm:$0xff]
        %v2872 = vld [vmem:[%s18 + $0x1a0] sm:$0xff]
        %v2873 = vld [vmem:[%s18 + $0x1a8] sm:$0xff]
        %v2874 = vld [vmem:[%s18 + $0x1b0] sm:$0xff]
        %v2875 = vld [vmem:[%s18 + $0x1b8] sm:$0xff]
        %v2876 = vld [vmem:[%s18 + $0x1c0] sm:$0xff]
        %v2877 = vld [vmem:[%s18 + $0x1c8] sm:$0xff]
        %v2878 = vld [vmem:[%s18 + $0x1d0] sm:$0xff]
        %v2879 = vld [vmem:[%s18 + $0x1d8] sm:$0xff]
        %v2880 = vld [vmem:[%s18 + $0x1e0] sm:$0xff]
        %v2881 = vld [vmem:[%s18 + $0x1e8] sm:$0xff]
        %v2882 = vld [vmem:[%s18 + $0x1f0] sm:$0xff]
        %v2883 = vld [vmem:[%s18 + $0x1f8] sm:$0xff]
        %v2900 = vunpack.c.l.b16 %v2868
        %v2901 = vunpack.c.h.b16 %v2868
        %v2902 = vunpack.c.l.b16 %v2869
        %v2903 = vunpack.c.h.b16 %v2869
        %v2904 = vunpack.c.l.b16 %v2870
        %v2905 = vunpack.c.h.b16 %v2870
        %v2906 = vunpack.c.l.b16 %v2871
        %v2907 = vunpack.c.h.b16 %v2871
        %v2908 = vunpack.c.l.b16 %v2872
        %v2909 = vunpack.c.h.b16 %v2872
        %v2910 = vunpack.c.l.b16 %v2873
        %v2911 = vunpack.c.h.b16 %v2873
        %v2912 = vunpack.c.l.b16 %v2874
        %v2913 = vunpack.c.h.b16 %v2874
        %v2914 = vunpack.c.l.b16 %v2875
        %v2915 = vunpack.c.h.b16 %v2875
        %v2916 = vunpack.c.l.b16 %v2876
        %v2917 = vunpack.c.h.b16 %v2876
        %v2918 = vunpack.c.l.b16 %v2877
        %v2919 = vunpack.c.h.b16 %v2877
        %v2920 = vunpack.c.l.b16 %v2878
        %v2921 = vunpack.c.h.b16 %v2878
        %v2922 = vunpack.c.l.b16 %v2879
        %v2923 = vunpack.c.h.b16 %v2879
        %v2924 = vunpack.c.l.b16 %v2880
        %v2925 = vunpack.c.h.b16 %v2880
        %v2926 = vunpack.c.l.b16 %v2881
        %v2927 = vunpack.c.h.b16 %v2881
        %v2928 = vunpack.c.l.b16 %v2882
        %v2929 = vunpack.c.h.b16 %v2882
        %v2930 = vunpack.c.l.b16 %v2883
        %v2931 = vunpack.c.h.b16 %v2883
        %v2932 = vpack.c.b16 %v2902, %v2900
        %v2933 = vpack.c.b16 %v2903, %v2901
        %v2934 = vpack.c.b16 %v2906, %v2904
        %v2935 = vpack.c.b16 %v2907, %v2905
        %v2936 = vpack.c.b16 %v2910, %v2908
        %v2937 = vpack.c.b16 %v2911, %v2909
        %v2938 = vpack.c.b16 %v2914, %v2912
        %v2939 = vpack.c.b16 %v2915, %v2913
        %v2940 = vpack.c.b16 %v2918, %v2916
        %v2941 = vpack.c.b16 %v2919, %v2917
        %v2942 = vpack.c.b16 %v2922, %v2920
        %v2943 = vpack.c.b16 %v2923, %v2921
        %v2944 = vpack.c.b16 %v2926, %v2924
        %v2945 = vpack.c.b16 %v2927, %v2925
        %v2946 = vpack.c.b16 %v2930, %v2928
        %v2947 = vpack.c.b16 %v2931, %v2929
        %2964 = vmatprep.subr.bf16.mxu0 %v2933
        %2965 = vmatpush1.bf16.msra.mxu0 %v2932
        %2966 = vmatprep.subr.bf16.mxu0 %v2935
        %2967 = vmatpush1.bf16.msra.mxu0 %v2934
        %2968 = vmatprep.subr.bf16.mxu0 %v2937
        %2969 = vmatpush1.bf16.msra.mxu0 %v2936
        %2970 = vmatprep.subr.bf16.mxu0 %v2939
        %2971 = vmatpush1.bf16.msra.mxu0 %v2938
        %2972 = vmatprep.subr.bf16.mxu0 %v2941
        %2973 = vmatpush1.bf16.msra.mxu0 %v2940
        %2974 = vmatprep.subr.bf16.mxu0 %v2943
        %2975 = vmatpush1.bf16.msra.mxu0 %v2942
        %2976 = vmatprep.subr.bf16.mxu0 %v2945
        %2977 = vmatpush1.bf16.msra.mxu0 %v2944
        %2978 = vmatprep.subr.bf16.mxu0 %v2947
        %2979 = vmatpush1.bf16.msra.mxu0 %v2946
        %2980 = vmatprep.subr.bf16.mxu0 0
        %2981 = vmatpush1.bf16.msra.mxu0 0
        %2982 = vmatprep.subr.bf16.mxu0 0
        %2983 = vmatpush1.bf16.msra.mxu0 0
        %2984 = vmatprep.subr.bf16.mxu0 0
        %2985 = vmatpush1.bf16.msra.mxu0 0
        %2986 = vmatprep.subr.bf16.mxu0 0
        %2987 = vmatpush1.bf16.msra.mxu0 0
        %2988 = vmatprep.subr.bf16.mxu0 0
        %2989 = vmatpush1.bf16.msra.mxu0 0
        %2990 = vmatprep.subr.bf16.mxu0 0
        %2991 = vmatpush1.bf16.msra.mxu0 0
        %2992 = vmatprep.subr.bf16.mxu0 0
        %2993 = vmatpush1.bf16.msra.mxu0 0
        %2994 = vmatprep.subr.bf16.mxu0 0
        %2995 = vmatpush1.bf16.msra.mxu0 0
        %2996 = vmatprep.mubr.bf16.mxu0 0
        %2997 = vmatmul.mubr.bf16.gmra.mrb[0].mxu0 %v2867
        %v2998 = vpop.f32.mrb[0].mxu0
        %v2999 = vadd.f32 0.0, %v2998
        %v3000 = vpop.f32.mrb[0].mxu0
        %v3001 = vadd.f32 0.0, %v3000
        %v3002 = vpop.f32.mrb[0].mxu0
        %v3003 = vpop.f32.mrb[0].mxu0
        %3004 = vdwg.mxu0
        %v3007 = vcombine.low %v2999, %v3001
        %v3009 = vunpack.c.l.s4 1966171168
        %v3010 = vunpack.c.0.s8 %v3009
        %v3011 = vlaneseq
        %v3012 = vshrl.u32 %v3011, 7
        %v3013 = vsub.s32 %v3010, %v3012
        %v3014 = vrot.slane %v3007, %v3013
        %v3016 = vunpack.c.l.s4 1966171168
        %v3017 = vunpack.c.0.s8 %v3016
        %v3018 = vlaneseq
        %v3019 = vshrl.u32 %v3018, 7
        %v3020 = vsub.s32 %v3017, %v3019
        %v3021 = vrot.slane %v3014, %v3020
        %v3023 = vadd.f32 %v2821, %v3021
        %v3024 = vlaneseq
        %vm3025 = vcmp.ge.s32.totalorder %v3024, 0
        %vm3026 = vcmp.lt.s32.totalorder %v3024, 256
        %vm3027 = vmand %vm3025, %vm3026
        %3028 = vst.msk [vmem:[%s731] sm:$0x3] %vm3027, %v3023
        %s3029 = sand.u32 %s477, 1
        %s3030 = scalar_lea.sflag [#allocation3], %s3029
        %s3031 = sand.u32 %s477, 1
        %s3032 = smul.addr %s3031, 64
        %s3033 = scalar_lea.vmem [#allocation2], %s3032
        %s3034 = sand.u32 %s44, 1
        %s3035 = scalar_lea.sflag [#allocation5], %s3034
        %s3036 = sand.u32 %s503, 1
        %s3037 = smul.addr %s3036, 16
        %s3038 = scalar_lea.vmem [#allocation4], %s3037
        %s3039 = sand.u32 %s44, 1
        %s3040 = scalar_lea.sflag [#allocation5], %s3039
        %s3041 = sand.u32 %s529, 1
        %s3042 = smul.addr %s3041, 4
        %s3043 = scalar_lea.vmem [#allocation6], %s3042
        %s3044 = sand.u32 %s555, 1
        %s3045 = scalar_lea.sflag [#allocation8], %s3044
        %s3046 = sand.u32 %s555, 1
        %s3047 = smul.addr %s3046, 2
        %s3048 = scalar_lea.vmem [#allocation7], %s3047
        // Predicated region
        $region101: #{encoder_forward.1} parent=99 // pred_check
          %p3049 = pneg %p487
        $region102: #{encoder_forward.1} parent=99 // pred_check_branch
          %3051 = sbr.rel (%p3049) target = $region104
        $region103: #{encoder_forward.1} parent=99 // pred_region
          %s3053 = ssub.s32 1024, 1024
          %3054 = vsyncadd %s3030, %s3053
          %s3055 = smul.addr %s44, 8
          %s3056 = smul.addr %s3055, 128
          %s3057 = scalar_lea.hbm %s20, %s3056
          %s3058 = sshll.u32 %s3033, 4
          %s3059 = int_to_ptr.vmem [resolvable:$true] %s3058
          %3064 = dma.vmem_to_hbm [thread:$0]  %s3059, 1024, %s3057, %s3030, 128, 128, 8
        $region104: #{encoder_forward.1} parent=99 // pred_fallthru
          _
        // Predicated region
        $region105: #{encoder_forward.1} parent=99 // pred_check
          %p3065 = pneg %p513
        $region106: #{encoder_forward.1} parent=99 // pred_check_branch
          %3067 = sbr.rel (%p3065) target = $region108
        $region107: #{encoder_forward.1} parent=99 // pred_region
          %s3069 = ssub.s32 256, 256
          %3070 = vsyncadd %s3035, %s3069
          %s3071 = smul.addr %s44, 2
          %s3072 = smul.addr %s3071, 128
          %s3073 = scalar_lea.hbm %s21, %s3072
          %s3074 = sshll.u32 %s3038, 4
          %s3075 = int_to_ptr.vmem [resolvable:$true] %s3074
          %3080 = dma.vmem_to_hbm [thread:$0]  %s3075, 256, %s3073, %s3035, 128, 128, 8
        $region108: #{encoder_forward.1} parent=99 // pred_fallthru
          _
        // Predicated region
        $region109: #{encoder_forward.1} parent=99 // pred_check
          %p3081 = pneg %p539
        $region110: #{encoder_forward.1} parent=99 // pred_check_branch
          %3083 = sbr.rel (%p3081) target = $region112
        $region111: #{encoder_forward.1} parent=99 // pred_region
          %s3085 = ssub.s32 64, 64
          %3086 = vsyncadd %s3040, %s3085
          %s3087 = smul.addr %s44, 64
          %s3088 = scalar_lea.hbm %s22, %s3087
          %s3090 = sshll.u32 %s3043, 4
          %s3091 = int_to_ptr.vmem [resolvable:$true] %s3090
          %3093 = dma.vmem_to_hbm [thread:$0]  %s3091, 64, %s3088, %s3040
        $region112: #{encoder_forward.1} parent=99 // pred_fallthru
          _
        // Predicated region
        $region113: #{encoder_forward.1} parent=99 // pred_check
          %p3094 = pneg %p565
        $region114: #{encoder_forward.1} parent=99 // pred_check_branch
          %3096 = sbr.rel (%p3094) target = $region116
        $region115: #{encoder_forward.1} parent=99 // pred_region
          %s3098 = ssub.s32 32, 32
          %3099 = vsyncadd %s3045, %s3098
          %s3100 = smul.addr %s44, 2
          %s3101 = smul.addr %s3100, 16
          %s3102 = scalar_lea.hbm %s23, %s3101
          %s3104 = sshll.u32 %s3048, 4
          %s3105 = int_to_ptr.vmem [resolvable:$true] %s3104
          %3107 = dma.vmem_to_hbm [thread:$0]  %s3105, 32, %s3102, %s3045
        $region116: #{encoder_forward.1} parent=99 // pred_fallthru
          _
      $region100: #{encoder_forward.1} parent=5 // pred_fallthru
        _
      %p3108 = scmp.le.s32.totalorder 2, %s39
      // Predicated region
      $region117: #{encoder_forward.1} parent=5 // pred_check
        %p3109 = pneg %p3108
      $region118: #{encoder_forward.1} parent=5 // pred_check_branch
        %3111 = sbr.rel (%p3109) target = $region120
      $region119: #{encoder_forward.1} parent=5 // pred_region
        %s3112 = ssub.s32 %s39, 2
        // Predicated region
        $region121: #{encoder_forward.1} parent=119 // pred_check
          %p3113 = pneg %p493
        $region122: #{encoder_forward.1} parent=119 // pred_check_branch
          %3115 = sbr.rel (%p3113) target = $region124
        $region123: #{encoder_forward.1} parent=119 // pred_region
          %s3116 = sand.u32 %s478, 1
          %s3117 = scalar_lea.sflag [#allocation3], %s3116
          %s3118 = sand.u32 %s478, 1
          %s3119 = smul.addr %s3118, 64
          %s3120 = scalar_lea.vmem [#allocation2], %s3119
          %3121 = dma.done %s3117, 1024
        $region124: #{encoder_forward.1} parent=119 // pred_fallthru
          _
        // Predicated region
        $region125: #{encoder_forward.1} parent=119 // pred_check
          %p3122 = pneg %p519
        $region126: #{encoder_forward.1} parent=119 // pred_check_branch
          %3124 = sbr.rel (%p3122) target = $region128
        $region127: #{encoder_forward.1} parent=119 // pred_region
          %s3125 = sand.u32 %s45, 1
          %s3126 = scalar_lea.sflag [#allocation5], %s3125
          %s3127 = sand.u32 %s504, 1
          %s3128 = smul.addr %s3127, 16
          %s3129 = scalar_lea.vmem [#allocation4], %s3128
          %3130 = dma.done %s3126, 256
        $region128: #{encoder_forward.1} parent=119 // pred_fallthru
          _
        // Predicated region
        $region129: #{encoder_forward.1} parent=119 // pred_check
          %p3131 = pneg %p545
        $region130: #{encoder_forward.1} parent=119 // pred_check_branch
          %3133 = sbr.rel (%p3131) target = $region132
        $region131: #{encoder_forward.1} parent=119 // pred_region
          %s3134 = sand.u32 %s45, 1
          %s3135 = scalar_lea.sflag [#allocation5], %s3134
          %s3136 = sand.u32 %s530, 1
          %s3137 = smul.addr %s3136, 4
          %s3138 = scalar_lea.vmem [#allocation6], %s3137
          %3139 = dma.done %s3135, 64
        $region132: #{encoder_forward.1} parent=119 // pred_fallthru
          _
        // Predicated region
        $region133: #{encoder_forward.1} parent=119 // pred_check
          %p3140 = pneg %p571
        $region134: #{encoder_forward.1} parent=119 // pred_check_branch
          %3142 = sbr.rel (%p3140) target = $region136
        $region135: #{encoder_forward.1} parent=119 // pred_region
          %s3143 = sand.u32 %s556, 1
          %s3144 = scalar_lea.sflag [#allocation8], %s3143
          %s3145 = sand.u32 %s556, 1
          %s3146 = smul.addr %s3145, 2
          %s3147 = scalar_lea.vmem [#allocation7], %s3146
          %3148 = dma.done %s3144, 32
        $region136: #{encoder_forward.1} parent=119 // pred_fallthru
          _
      $region120: #{encoder_forward.1} parent=5 // pred_fallthru
        _
    $region6: #{encoder_forward.1} parent=1 // loop_footer
      %s43 = sadd.s32 1, %s39
    $region7: #{encoder_forward.1} parent=1 // loop_footer_branch
      %38 = sbr.rel target = $region3
    $region8: #{encoder_forward.1} parent=1 // loop_exit
      _
    %3149 = vsyncpa [#allocation3], 1
    %s3150 = scalar_lea.sflag [#allocation3], 1
    %3151 = vsyncpa %s3150, 1
    %3152 = vsyncpa [#allocation5], 1
    %s3153 = scalar_lea.sflag [#allocation5], 1
    %3154 = vsyncpa %s3153, 1
    %3155 = vsyncpa [#allocation8], 1
    %s3156 = scalar_lea.sflag [#allocation8], 1
    %3157 = vsyncpa %s3156, 1

</llo_original>
